<compile_context>
chip_gen: v7x
topology: tpu7x:2x2x1
jax: 0.10.0
libtpu: 0.0.40
codegen_flags: <defaults>
</compile_context>

<pallas_src>
import functools

import numpy as np
import jax
import jax.numpy as jnp
from jax.experimental import pallas as pl
from jax.experimental.pallas import tpu as pltpu

H = 768            # GPT2 hidden size (fixed by the module)
N_REL = 7          # number of natural-logic relations
N_REL_PAD = 128    # lane-dense padded relation dimension (keep at 128:
                   # 2nd matmul is ~6% of FLOPs; widening only adds EUP work)
NEG_MASK = 1.0e6   # same large-negative mask constant the module uses
N_CLASS = 3
MAX_TM = 512                      # largest row tile (~85% of HBM/MXU roofline)
VMEM_LIMIT = 32 * 1024 * 1024     # safe on v5e/v6e/v7x, ample for tm<=512
label2rel = {0: [0, 1], 1: [3, 4], 2: [2, 5, 6], 3: [2]}


def _round_up(x, m):
    return -(-x // m) * m


def _choose_tile(n):
    """Pick (tm, n_pad) for the row dimension.

    * rows padded only to a multiple of 16 (bf16 sublane packing); tiny calls
      run a single right-sized tile instead of a mostly-padding 128-row tile,
    * large calls use tm <= 512 to amortize per-grid-step overhead,
    * once the problem is split at all, keep grid >= 2 so the "parallel"
      axis can be sharded across the two v7x TensorCores.
    """
    n16 = _round_up(n, 16)
    if n16 <= 128:
        return n16, n16                                  # one small tile
    tm = min(MAX_TM, _round_up(-(-n16 // 2), 16))        # ceil(n/2), 16-aligned
    n_pad = _round_up(n16, tm)
    return tm, n_pad


# ----------------------------------------------------------------------------
# Pallas kernel: fused MLP (Linear -> ReLU -> Linear) + masked softmax
# ----------------------------------------------------------------------------
def _local_relation_kernel(x_ref, w1_ref, b1_ref, w2_ref, b2_ref, o_ref):
    # x: (tm, 2H) bf16 | w1: (2H, H) bf16 | b1: (1, H) f32
    # w2: (H, 128) bf16 | b2: (1, 128) f32 (rm mask + pad-lane mask folded in)
    h = jnp.dot(x_ref[...], w1_ref[...], preferred_element_type=jnp.float32)
    h = jnp.maximum(h + b1_ref[...], 0.0)                       # bias + ReLU (f32)
    logits = jnp.dot(h.astype(jnp.bfloat16), w2_ref[...],
                     preferred_element_type=jnp.float32) + b2_ref[...]
    m = jnp.max(logits, axis=-1, keepdims=True)                 # stable softmax
    e = jnp.exp(logits - m)
    denom = jnp.sum(e, axis=-1, keepdims=True)
    o_ref[...] = e * pl.reciprocal(denom, approx=True)


def local_relation_softmax(phrase_rep, w1, b1, w2, b2, rm):
    """phrase_rep: [N, 2H] (f32 or bf16)  ->  [N, 7] f32 softmax probs."""
    n, k = phrase_rep.shape
    tm, n_pad = _choose_tile(n)
    if n_pad != n:
        phrase_rep = jnp.pad(phrase_rep, ((0, n_pad - n), (0, 0)))

    x = phrase_rep.astype(jnp.bfloat16)          # no-op if already bf16
    w1b = w1.astype(jnp.bfloat16)
    w2p = jnp.pad(w2, ((0, 0), (0, N_REL_PAD - N_REL))).astype(jnp.bfloat16)
    # fold rm mask into the bias; kill the 121 pad lanes with -1e6 (f32 epilogue,
    # exp underflows cleanly) so no probability mass leaks into pad lanes.
    b2_eff = jnp.concatenate(
        [b2 - NEG_MASK * rm,
         jnp.full((1, N_REL_PAD - N_REL), -NEG_MASK, jnp.float32)], axis=-1)

    cost = pl.CostEstimate(
        flops=2 * n_pad * (k * H + H * N_REL_PAD),
        transcendentals=n_pad * N_REL_PAD,
        bytes_accessed=(n_pad * k * 2 + k * H * 2 + H * N_REL_PAD * 2
                        + n_pad * N_REL_PAD * 4),
    )

    out = pl.pallas_call(
        _local_relation_kernel,
        out_shape=jax.ShapeDtypeStruct((n_pad, N_REL_PAD), jnp.float32),
        grid=(n_pad // tm,),
        in_specs=[
            pl.BlockSpec((tm, k), lambda i: (i, 0)),             # phrase rows
            # Weight/bias operands are grid-invariant: constant index_map, so
            # the pipeline never re-fetches them across steps.  (Dropping their
            # second buffer via pl.Buffered(1) would only buy VMEM headroom,
            # which the explicit 32 MiB limit + tm<=512 already provides.)
            pl.BlockSpec((k, H), lambda i: (0, 0)),              # W1 (2H, H)
            pl.BlockSpec((1, H), lambda i: (0, 0)),              # b1
            pl.BlockSpec((H, N_REL_PAD), lambda i: (0, 0)),      # W2 padded
            pl.BlockSpec((1, N_REL_PAD), lambda i: (0, 0)),      # b2_eff
        ],
        out_specs=pl.BlockSpec((tm, N_REL_PAD), lambda i: (i, 0)),
        compiler_params=pltpu.CompilerParams(
            dimension_semantics=("parallel",),
            vmem_limit_bytes=VMEM_LIMIT),
        cost_estimate=cost,
    )(x, w1b, b1, w2p, b2_eff)
    return out[:n, :N_REL]


# ----------------------------------------------------------------------------
# Device-side forward: gather + Pallas MLP/softmax + aggregation loop (scan)
# ----------------------------------------------------------------------------
@functools.partial(jax.jit, static_argnames=("max_agg",))
def _device_forward(params, hidden_states, projections, phrase_start,
                    phrase_end, max_agg):
    B, S, Hh = hidden_states.shape
    P = phrase_start.shape[1]

    # get_vectors: gather per-batch token representations at phrase indices.
    # Cast to bf16 *before* the gather: halves gather + [N, 2H] intermediate
    # traffic; the Pallas kernel consumes bf16 MXU operands anyway.
    # TODO(synk): could be fused into the Pallas call via manual per-row DMA
    # gather (PrefetchScalarGridSpec + pl.ANY); only worthwhile for large B*P.
    hs16 = hidden_states.astype(jnp.bfloat16)
    b_idx = jnp.arange(B)[:, None]
    start_rep = hs16[b_idx, phrase_start]                        # [B, P, H] bf16
    end_rep = hs16[b_idx, phrase_end]                            # [B, P, H] bf16
    phrase_rep = jnp.concatenate([start_rep, end_rep], axis=-1)  # [B, P, 2H]
    phrase_rep = phrase_rep.reshape(B * P, 2 * Hh)

    local_relations = local_relation_softmax(
        phrase_rep, params["w1"], params["b1"], params["w2"], params["b2"],
        params["rm"]).reshape(B, P, N_REL)

    batch_range = jnp.arange(B)
    logic = params["logic"]

    def step(prev_relation, i):
        transition = local_relations[:, i]                       # [B, 7]
        sampled = jnp.argmax(transition, axis=-1).astype(jnp.int32)
        sampled_prob = transition[batch_range, sampled]
        proj = projections[batch_range, phrase_start[:, i]]      # [B, 7]
        projected = proj[batch_range, sampled]                   # project()
        agg = logic[prev_relation, projected].astype(jnp.int32)
        return agg, (sampled, sampled_prob, agg)

    init = jnp.zeros((B,), jnp.int32)
    _, (actions, sprobs, hist) = jax.lax.scan(step, init, jnp.arange(max_agg))

    relation_action = jnp.concatenate(
        [jnp.zeros((B, 1), jnp.int32), actions.T], axis=1)
    relation_history = jnp.concatenate(
        [jnp.zeros((B, 1), jnp.int32), hist.T], axis=1)
    probs = jnp.concatenate(
        [0.5 * jnp.ones((B, 1), jnp.float32), sprobs.T.astype(jnp.float32)],
        axis=1)
    return local_relations, relation_action, relation_history, probs


# ----------------------------------------------------------------------------
# Host-side glue: reward shaping + policy-gradient loss (faithful to PyTorch;
# data-dependent scalar loop with `break`, kept in numpy)
# ----------------------------------------------------------------------------
def _compute_reward(history, y, hp_len, gamma):
    rwd = np.zeros(history.shape[0], dtype=np.float32)
    label_rel = label2rel[int(y)]
    hit_obj = int(history[hp_len]) in label_rel
    final_rwd = 2 * int(hit_obj) - 1
    gamma_ = 1.0 if hit_obj else gamma
    for i in range(1, int(hp_len) + 1):
        rwd[i] = final_rwd * (gamma_ ** (int(hp_len) - i))
        if int(history[i]) in [2, 5, 6] and (not hit_obj):
            rwd[i] = -1.0
            break
        if hit_obj and int(history[hp_len]) == 0:
            rwd[i] = min(0.0, rwd[i])
        if int(history[i]) in label_rel:
            rwd[i] = max(0.0, rwd[i])
    return rwd


def _shape_reward(relation_history, ys, hypo_len, gamma):
    B = relation_history.shape[0]
    reward = np.zeros(relation_history.shape, dtype=np.float32)
    for i in range(B):
        reward[i, :] = _compute_reward(relation_history[i], ys[i],
                                       hypo_len[i], gamma)
    return reward


def _pg_loss(probs, reward, hypo_len):
    B, T = probs.shape
    mask = np.ones((B, T), dtype=np.float32)
    for i in range(B):
        mask[i, int(hypo_len[i]) + 1:] = 0.0
    loss_ = (-np.log(probs) * reward * (reward > 0).astype(np.float32) * mask
             - np.log(1.0 - probs + 0.001) * np.abs(reward)
             * (reward < 0).astype(np.float32) * mask)
    return loss_.sum(axis=-1)


# ----------------------------------------------------------------------------
# Forward (eval path, train=False)
# ----------------------------------------------------------------------------
def gpt2_classifier_forward(params, hidden_states, projections,
                            hypothesis_len, phrase_start, phrase_end, ys):
    # TODO(synk): GPT2Model.from_pretrained('gpt2') backbone requires a
    # pretrained checkpoint; its output `hidden_states` is taken as an input.
    hypo_len_np = np.asarray(hypothesis_len)
    max_agg = int(hypo_len_np.max())          # same host read as torch .item()

    local_relations, relation_action, relation_history, probs = _device_forward(
        params, hidden_states, projections, phrase_start, phrase_end, max_agg)

    # Single device->host transfer of the small per-step results.
    relation_history_np = np.asarray(relation_history)
    probs_np = np.asarray(probs)
    ys_np = np.asarray(ys)

    B = relation_history_np.shape[0]
    batch_range = np.arange(B)
    last_state = relation_history_np[batch_range, hypo_len_np]

    reward_raw = _shape_reward(relation_history_np, ys_np, hypo_len_np, gamma=0.5)
    pg_loss_raw = _pg_loss(probs_np, reward_raw, hypo_len_np)

    logit_entail = (last_state == 0) | (last_state == 1)
    logit_contra = (last_state == 3) | (last_state == 4)
    logit_neutral = (last_state == 2) | (last_state == 5) | (last_state == 6)
    logits = np.stack([logit_entail, logit_contra, logit_neutral],
                      axis=-1).astype(np.int32)

    # TODO(synk): train=True branch uses torch.multinomial sampling and
    # back_search/fix_nnl_path (external, undefined) — not implemented.
    reward = _shape_reward(relation_history_np, ys_np, hypo_len_np, gamma=1.0)
    pg_loss = _pg_loss(probs_np, reward, hypo_len_np)
    policy_gradient_loss = 0.5 * pg_loss_raw + 0.5 * pg_loss

    return (jnp.asarray(logits),
            jnp.asarray(policy_gradient_loss),
            (relation_history, relation_action))


# ----------------------------------------------------------------------------
# Deterministic parameter initialization (shapes from the module __init__)
# ----------------------------------------------------------------------------
def init_params(key):
    k1, k2, k3 = jax.random.split(key, 3)
    w1 = jax.random.normal(k1, (2 * H, H), jnp.float32) * 0.02   # Linear(1536,768)
    b1 = jnp.zeros((1, H), jnp.float32)
    w2 = jax.random.normal(k2, (H, N_REL), jnp.float32) * 0.02   # Linear(768,7)
    b2 = jnp.zeros((1, N_REL), jnp.float32)
    rm = jnp.array([[0, 0, 0, 1, 0, 1, 0]], jnp.float32)
    # TODO(synk): construct_table(map=True) is external/undefined; use a
    # deterministic synthetic 7x7 relation-join table instead.
    logic = jax.random.randint(k3, (N_REL, N_REL), 0, N_REL, jnp.int32)
    return {"w1": w1, "b1": b1, "w2": w2, "b2": b2, "rm": rm, "logic": logic}


if __name__ == "__main__":
    B, S, P = 2, 16, 4

    key = jax.random.PRNGKey(0)
    kp, kh, ks, ke, kj = jax.random.split(key, 5)

    params = init_params(kp)

    hidden_states = jax.random.normal(kh, (B, S, H), jnp.float32)   # GPT2 output
    phrase_start = jax.random.randint(ks, (B, P), 0, S, jnp.int32)
    phrase_end = jax.random.randint(ke, (B, P), 0, S, jnp.int32)
    projections = jax.random.randint(kj, (B, S, N_REL), 0, N_REL, jnp.int32)
    hypothesis_len = jnp.array([3, 4], jnp.int32)
    ys = jnp.array([0, 2], jnp.int32)

    logits, pg_loss, (rel_hist, rel_act) = gpt2_classifier_forward(
        params, hidden_states, projections, hypothesis_len,
        phrase_start, phrase_end, ys)

    jax.block_until_ready((logits, pg_loss, rel_hist, rel_act))
    print("KERNEL_OK")
</pallas_src>

<mosaic_0001>
module attributes {stable_mosaic.version = 11 : i64} {
  func.func @_local_relation_kernel(%arg0: i32, %arg1: memref<16x1536xbf16, #tpu.memory_space<vmem>>, %arg2: memref<1536x768xbf16, #tpu.memory_space<vmem>>, %arg3: memref<1x768xf32, #tpu.memory_space<vmem>>, %arg4: memref<768x128xbf16, #tpu.memory_space<vmem>>, %arg5: memref<1x128xf32, #tpu.memory_space<vmem>>, %arg6: memref<16x128xf32, #tpu.memory_space<vmem>>) attributes {dimension_semantics = [#tpu.dimension_semantics<parallel>], iteration_bounds = array<i64: 1>, scalar_prefetch = 0 : i64, scratch_operands = 0 : i64, tpu.core_type = #tpu.core_type<tc>, window_params = [{transform_indices = @transform_0, window_bounds = array<i64: 16, 1536>}, {pipeline_mode = #tpu.pipeline_mode<synchronous>, transform_indices = @transform_1, window_bounds = array<i64: 1536, 768>}, {pipeline_mode = #tpu.pipeline_mode<synchronous>, transform_indices = @transform_2, window_bounds = array<i64: 1, 768>}, {pipeline_mode = #tpu.pipeline_mode<synchronous>, transform_indices = @transform_3, window_bounds = array<i64: 768, 128>}, {pipeline_mode = #tpu.pipeline_mode<synchronous>, transform_indices = @transform_4, window_bounds = array<i64: 1, 128>}, {transform_indices = @transform_5, window_bounds = array<i64: 16, 128>}]} {
    %c0 = arith.constant 0 : index
    %c0_0 = arith.constant 0 : index
    %0 = vector.load %arg1[%c0, %c0_0] : memref<16x1536xbf16, #tpu.memory_space<vmem>>, vector<16x1536xbf16>
    %c0_1 = arith.constant 0 : index
    %c0_2 = arith.constant 0 : index
    %1 = vector.load %arg2[%c0_1, %c0_2] : memref<1536x768xbf16, #tpu.memory_space<vmem>>, vector<1536x768xbf16>
    %cst = arith.constant dense<0.000000e+00> : vector<16x768xf32>
    %2 = tpu.matmul %0, %1, %cst {dimension_numbers = #tpu.dot_dimension_numbers<[1], [0], [0], [1], [0, 0, 1, 1], [], []>} : vector<16x1536xbf16>, vector<1536x768xbf16>, vector<16x768xf32> -> vector<16x768xf32>
    %c0_3 = arith.constant 0 : index
    %c0_4 = arith.constant 0 : index
    %3 = vector.load %arg3[%c0_3, %c0_4] : memref<1x768xf32, #tpu.memory_space<vmem>>, vector<1x768xf32>
    %4 = vector.broadcast %3 : vector<1x768xf32> to vector<16x768xf32>
    %5 = arith.addf %2, %4 : vector<16x768xf32>
    %cst_5 = arith.constant 0.000000e+00 : f32
    %6 = vector.broadcast %cst_5 : f32 to vector<16x768xf32>
    %7 = arith.maximumf %5, %6 : vector<16x768xf32>
    %8 = arith.truncf %7 : vector<16x768xf32> to vector<16x768xbf16>
    %c0_6 = arith.constant 0 : index
    %c0_7 = arith.constant 0 : index
    %9 = vector.load %arg4[%c0_6, %c0_7] : memref<768x128xbf16, #tpu.memory_space<vmem>>, vector<768x128xbf16>
    %cst_8 = arith.constant dense<0.000000e+00> : vector<16x128xf32>
    %10 = tpu.matmul %8, %9, %cst_8 {dimension_numbers = #tpu.dot_dimension_numbers<[1], [0], [0], [1], [0, 0, 1, 1], [], []>} : vector<16x768xbf16>, vector<768x128xbf16>, vector<16x128xf32> -> vector<16x128xf32>
    %c0_9 = arith.constant 0 : index
    %c0_10 = arith.constant 0 : index
    %11 = vector.load %arg5[%c0_9, %c0_10] : memref<1x128xf32, #tpu.memory_space<vmem>>, vector<1x128xf32>
    %12 = vector.broadcast %11 : vector<1x128xf32> to vector<16x128xf32>
    %13 = arith.addf %10, %12 : vector<16x128xf32>
    %cst_11 = arith.constant dense<0xFF800000> : vector<16xf32>
    %14 = vector.multi_reduction <maximumf>, %13, %cst_11 [1] : vector<16x128xf32> to vector<16xf32>
    %15 = vector.shape_cast %14 : vector<16xf32> to vector<16x1xf32>
    %16 = vector.broadcast %15 : vector<16x1xf32> to vector<16x128xf32>
    %17 = arith.subf %13, %16 : vector<16x128xf32>
    %18 = math.exp %17 : vector<16x128xf32>
    %cst_12 = arith.constant dense<0.000000e+00> : vector<16xf32>
    %19 = vector.multi_reduction <add>, %18, %cst_12 [1] : vector<16x128xf32> to vector<16xf32>
    %20 = vector.shape_cast %19 : vector<16xf32> to vector<16x1xf32>
    %21 = tpu.reciprocal %20 {approx = true} : vector<16x1xf32> -> vector<16x1xf32>
    %22 = vector.broadcast %21 : vector<16x1xf32> to vector<16x128xf32>
    %23 = arith.mulf %18, %22 : vector<16x128xf32>
    %c0_13 = arith.constant 0 : index
    %c0_14 = arith.constant 0 : index
    %24 = vector.load %arg6[%c0_13, %c0_14] : memref<16x128xf32, #tpu.memory_space<vmem>>, vector<16x128xf32>
    tpu.vector_store %arg6[%c0_13, %c0_14], %23 {strides = array<i32>} : memref<16x128xf32, #tpu.memory_space<vmem>>, vector<16x128xf32>,
    return
  }
  func.func @transform_0(%arg0: i32) -> (i32, i32) {
    %c0_i32 = arith.constant 0 : i32
    %c0_i32_0 = arith.constant 0 : i32
    return %arg0, %c0_i32 : i32, i32
  }
  func.func @transform_1(%arg0: i32) -> (i32, i32) {
    %c0_i32 = arith.constant 0 : i32
    %c0_i32_0 = arith.constant 0 : i32
    %c0_i32_1 = arith.constant 0 : i32
    return %c0_i32, %c0_i32_0 : i32, i32
  }
  func.func @transform_2(%arg0: i32) -> (i32, i32) {
    %c0_i32 = arith.constant 0 : i32
    %c0_i32_0 = arith.constant 0 : i32
    %c0_i32_1 = arith.constant 0 : i32
    return %c0_i32, %c0_i32_0 : i32, i32
  }
  func.func @transform_3(%arg0: i32) -> (i32, i32) {
    %c0_i32 = arith.constant 0 : i32
    %c0_i32_0 = arith.constant 0 : i32
    %c0_i32_1 = arith.constant 0 : i32
    return %c0_i32, %c0_i32_0 : i32, i32
  }
  func.func @transform_4(%arg0: i32) -> (i32, i32) {
    %c0_i32 = arith.constant 0 : i32
    %c0_i32_0 = arith.constant 0 : i32
    %c0_i32_1 = arith.constant 0 : i32
    return %c0_i32, %c0_i32_0 : i32, i32
  }
  func.func @transform_5(%arg0: i32) -> (i32, i32) {
    %c0_i32 = arith.constant 0 : i32
    %c0_i32_0 = arith.constant 0 : i32
    return %arg0, %c0_i32 : i32, i32
  }
}

</mosaic_0001>

<llo_original>
// kernel: custom-call.18
$region0: #{custom-call.18}
  %s0 = inlined_call_operand.vmem [shape: s32[4,2], index: 0, kind: output, shape index: {}]

// kernel: custom-call.17
$region0: #{custom-call.17}
  %s0 = inlined_call_operand.vmem [shape: f32[4,2], index: 0, kind: output, shape index: {}]

// kernel: _device_forward.1
$region0: #{_device_forward.1}
  #allocation0 [shape = 'u32[]', space=smem, size = 0x4, offset = 0x4, fixed_abs, tag = 'smem constant byte address 0x4 - core index']
  #allocation1 [shape = 'u32[144,128]{1,0:T(1,128)}', space=vmem, size = 0x12000, scoped, tag = 'internal scratch']
  %s0 = inlined_call_operand.vmem [shape: bf16[16,1536], index: 0, kind: input, shape index: {}]
  %s1 = inlined_call_operand.vmem [shape: bf16[1536,768], index: 1, kind: input, shape index: {}]
  %s2 = inlined_call_operand.vmem [shape: f32[1,768], index: 2, kind: input, shape index: {}]
  %s3 = inlined_call_operand.vmem [shape: bf16[768,128], index: 3, kind: input, shape index: {}]
  %s4 = inlined_call_operand.vmem [shape: f32[1,128], index: 4, kind: input, shape index: {}]
  %s5 = inlined_call_operand.vmem [shape: f32[16,128], index: 5, kind: output, shape index: {}]
  %s6 = sld [smem:[#allocation0]]
  $region30: #{_device_forward.1} parent=0
    _
  %s8 = ssub.s32 1, %s6
  %s9 = scalar_select 0, %s8, %s6
  // Predicated region
  $region2: #{_device_forward.1} parent=0 // pred_check
    _
  $region3: #{_device_forward.1} parent=0 // pred_check_branch
    %11 = sbr.rel (0) target = $region5
  $region4: #{_device_forward.1} parent=0 // pred_region
    _
  $region5: #{_device_forward.1} parent=0 // pred_fallthru
    _
  // Predicated region
  $region6: #{_device_forward.1} parent=0 // pred_check
    _
  $region7: #{_device_forward.1} parent=0 // pred_check_branch
    %13 = sbr.rel (0) target = $region9
  $region8: #{_device_forward.1} parent=0 // pred_region
    _
  $region9: #{_device_forward.1} parent=0 // pred_fallthru
    _
  // Predicated region
  $region10: #{_device_forward.1} parent=0 // pred_check
    _
  $region11: #{_device_forward.1} parent=0 // pred_check_branch
    %15 = sbr.rel (0) target = $region13
  $region12: #{_device_forward.1} parent=0 // pred_region
    _
  $region13: #{_device_forward.1} parent=0 // pred_fallthru
    _
  // Predicated region
  $region14: #{_device_forward.1} parent=0 // pred_check
    _
  $region15: #{_device_forward.1} parent=0 // pred_check_branch
    %17 = sbr.rel (0) target = $region17
  $region16: #{_device_forward.1} parent=0 // pred_region
    _
  $region17: #{_device_forward.1} parent=0 // pred_fallthru
    _
  // Predicated region
  $region18: #{_device_forward.1} parent=0 // pred_check
    _
  $region19: #{_device_forward.1} parent=0 // pred_check_branch
    %19 = sbr.rel (0) target = $region21
  $region20: #{_device_forward.1} parent=0 // pred_region
    _
  $region21: #{_device_forward.1} parent=0 // pred_fallthru
    _
  %v21 = vld [vmem:[%s0] sm:$0xff]
  %v22 = vld [vmem:[%s0 + $0x8] sm:$0xff]
  %v23 = vld [vmem:[%s0 + $0x10] sm:$0xff]
  %v24 = vld [vmem:[%s0 + $0x18] sm:$0xff]
  %v25 = vld [vmem:[%s0 + $0x20] sm:$0xff]
  %v26 = vld [vmem:[%s0 + $0x28] sm:$0xff]
  %v27 = vld [vmem:[%s0 + $0x30] sm:$0xff]
  %v28 = vld [vmem:[%s0 + $0x38] sm:$0xff]
  %v29 = vld [vmem:[%s0 + $0x40] sm:$0xff]
  %v30 = vld [vmem:[%s0 + $0x48] sm:$0xff]
  %v31 = vld [vmem:[%s0 + $0x50] sm:$0xff]
  %v32 = vld [vmem:[%s0 + $0x58] sm:$0xff]
  %v33 = vld [vmem:[%s1] sm:$0xff]
  %v34 = vld [vmem:[%s1 + $0x8] sm:$0xff]
  %v35 = vld [vmem:[%s1 + $0x10] sm:$0xff]
  %v36 = vld [vmem:[%s1 + $0x18] sm:$0xff]
  %v37 = vld [vmem:[%s1 + $0x20] sm:$0xff]
  %v38 = vld [vmem:[%s1 + $0x28] sm:$0xff]
  %v39 = vld [vmem:[%s1 + $0x30] sm:$0xff]
  %v40 = vld [vmem:[%s1 + $0x38] sm:$0xff]
  %v41 = vld [vmem:[%s1 + $0x40] sm:$0xff]
  %v42 = vld [vmem:[%s1 + $0x48] sm:$0xff]
  %v43 = vld [vmem:[%s1 + $0x50] sm:$0xff]
  %v44 = vld [vmem:[%s1 + $0x58] sm:$0xff]
  %v45 = vld [vmem:[%s1 + $0x60] sm:$0xff]
  %v46 = vld [vmem:[%s1 + $0x68] sm:$0xff]
  %v47 = vld [vmem:[%s1 + $0x70] sm:$0xff]
  %v48 = vld [vmem:[%s1 + $0x78] sm:$0xff]
  %v49 = vld [vmem:[%s1 + $0x80] sm:$0xff]
  %v50 = vld [vmem:[%s1 + $0x88] sm:$0xff]
  %v51 = vld [vmem:[%s1 + $0x90] sm:$0xff]
  %v52 = vld [vmem:[%s1 + $0x98] sm:$0xff]
  %v53 = vld [vmem:[%s1 + $0xa0] sm:$0xff]
  %v54 = vld [vmem:[%s1 + $0xa8] sm:$0xff]
  %v55 = vld [vmem:[%s1 + $0xb0] sm:$0xff]
  %v56 = vld [vmem:[%s1 + $0xb8] sm:$0xff]
  %v57 = vld [vmem:[%s1 + $0xc0] sm:$0xff]
  %v58 = vld [vmem:[%s1 + $0xc8] sm:$0xff]
  %v59 = vld [vmem:[%s1 + $0xd0] sm:$0xff]
  %v60 = vld [vmem:[%s1 + $0xd8] sm:$0xff]
  %v61 = vld [vmem:[%s1 + $0xe0] sm:$0xff]
  %v62 = vld [vmem:[%s1 + $0xe8] sm:$0xff]
  %v63 = vld [vmem:[%s1 + $0xf0] sm:$0xff]
  %v64 = vld [vmem:[%s1 + $0xf8] sm:$0xff]
  %v65 = vld [vmem:[%s1 + $0x100] sm:$0xff]
  %v66 = vld [vmem:[%s1 + $0x108] sm:$0xff]
  %v67 = vld [vmem:[%s1 + $0x110] sm:$0xff]
  %v68 = vld [vmem:[%s1 + $0x118] sm:$0xff]
  %v69 = vld [vmem:[%s1 + $0x120] sm:$0xff]
  %v70 = vld [vmem:[%s1 + $0x128] sm:$0xff]
  %v71 = vld [vmem:[%s1 + $0x130] sm:$0xff]
  %v72 = vld [vmem:[%s1 + $0x138] sm:$0xff]
  %v73 = vld [vmem:[%s1 + $0x140] sm:$0xff]
  %v74 = vld [vmem:[%s1 + $0x148] sm:$0xff]
  %v75 = vld [vmem:[%s1 + $0x150] sm:$0xff]
  %v76 = vld [vmem:[%s1 + $0x158] sm:$0xff]
  %v77 = vld [vmem:[%s1 + $0x160] sm:$0xff]
  %v78 = vld [vmem:[%s1 + $0x168] sm:$0xff]
  %v79 = vld [vmem:[%s1 + $0x170] sm:$0xff]
  %v80 = vld [vmem:[%s1 + $0x178] sm:$0xff]
  %v81 = vld [vmem:[%s1 + $0x180] sm:$0xff]
  %v82 = vld [vmem:[%s1 + $0x188] sm:$0xff]
  %v83 = vld [vmem:[%s1 + $0x190] sm:$0xff]
  %v84 = vld [vmem:[%s1 + $0x198] sm:$0xff]
  %v85 = vld [vmem:[%s1 + $0x1a0] sm:$0xff]
  %v86 = vld [vmem:[%s1 + $0x1a8] sm:$0xff]
  %v87 = vld [vmem:[%s1 + $0x1b0] sm:$0xff]
  %v88 = vld [vmem:[%s1 + $0x1b8] sm:$0xff]
  %v89 = vld [vmem:[%s1 + $0x1c0] sm:$0xff]
  %v90 = vld [vmem:[%s1 + $0x1c8] sm:$0xff]
  %v91 = vld [vmem:[%s1 + $0x1d0] sm:$0xff]
  %v92 = vld [vmem:[%s1 + $0x1d8] sm:$0xff]
  %v93 = vld [vmem:[%s1 + $0x1e0] sm:$0xff]
  %v94 = vld [vmem:[%s1 + $0x1e8] sm:$0xff]
  %v95 = vld [vmem:[%s1 + $0x1f0] sm:$0xff]
  %v96 = vld [vmem:[%s1 + $0x1f8] sm:$0xff]
  %v97 = vld [vmem:[%s1 + $0x200] sm:$0xff]
  %v98 = vld [vmem:[%s1 + $0x208] sm:$0xff]
  %v99 = vld [vmem:[%s1 + $0x210] sm:$0xff]
  %v100 = vld [vmem:[%s1 + $0x218] sm:$0xff]
  %v101 = vld [vmem:[%s1 + $0x220] sm:$0xff]
  %v102 = vld [vmem:[%s1 + $0x228] sm:$0xff]
  %v103 = vld [vmem:[%s1 + $0x230] sm:$0xff]
  %v104 = vld [vmem:[%s1 + $0x238] sm:$0xff]
  %v105 = vld [vmem:[%s1 + $0x240] sm:$0xff]
  %v106 = vld [vmem:[%s1 + $0x248] sm:$0xff]
  %v107 = vld [vmem:[%s1 + $0x250] sm:$0xff]
  %v108 = vld [vmem:[%s1 + $0x258] sm:$0xff]
  %v109 = vld [vmem:[%s1 + $0x260] sm:$0xff]
  %v110 = vld [vmem:[%s1 + $0x268] sm:$0xff]
  %v111 = vld [vmem:[%s1 + $0x270] sm:$0xff]
  %v112 = vld [vmem:[%s1 + $0x278] sm:$0xff]
  %v113 = vld [vmem:[%s1 + $0x280] sm:$0xff]
  %v114 = vld [vmem:[%s1 + $0x288] sm:$0xff]
  %v115 = vld [vmem:[%s1 + $0x290] sm:$0xff]
  %v116 = vld [vmem:[%s1 + $0x298] sm:$0xff]
  %v117 = vld [vmem:[%s1 + $0x2a0] sm:$0xff]
  %v118 = vld [vmem:[%s1 + $0x2a8] sm:$0xff]
  %v119 = vld [vmem:[%s1 + $0x2b0] sm:$0xff]
  %v120 = vld [vmem:[%s1 + $0x2b8] sm:$0xff]
  %v121 = vld [vmem:[%s1 + $0x2c0] sm:$0xff]
  %v122 = vld [vmem:[%s1 + $0x2c8] sm:$0xff]
  %v123 = vld [vmem:[%s1 + $0x2d0] sm:$0xff]
  %v124 = vld [vmem:[%s1 + $0x2d8] sm:$0xff]
  %v125 = vld [vmem:[%s1 + $0x2e0] sm:$0xff]
  %v126 = vld [vmem:[%s1 + $0x2e8] sm:$0xff]
  %v127 = vld [vmem:[%s1 + $0x2f0] sm:$0xff]
  %v128 = vld [vmem:[%s1 + $0x2f8] sm:$0xff]
  %v129 = vld [vmem:[%s1 + $0x300] sm:$0xff]
  %v130 = vld [vmem:[%s1 + $0x308] sm:$0xff]
  %v131 = vld [vmem:[%s1 + $0x310] sm:$0xff]
  %v132 = vld [vmem:[%s1 + $0x318] sm:$0xff]
  %v133 = vld [vmem:[%s1 + $0x320] sm:$0xff]
  %v134 = vld [vmem:[%s1 + $0x328] sm:$0xff]
  %v135 = vld [vmem:[%s1 + $0x330] sm:$0xff]
  %v136 = vld [vmem:[%s1 + $0x338] sm:$0xff]
  %v137 = vld [vmem:[%s1 + $0x340] sm:$0xff]
  %v138 = vld [vmem:[%s1 + $0x348] sm:$0xff]
  %v139 = vld [vmem:[%s1 + $0x350] sm:$0xff]
  %v140 = vld [vmem:[%s1 + $0x358] sm:$0xff]
  %v141 = vld [vmem:[%s1 + $0x360] sm:$0xff]
  %v142 = vld [vmem:[%s1 + $0x368] sm:$0xff]
  %v143 = vld [vmem:[%s1 + $0x370] sm:$0xff]
  %v144 = vld [vmem:[%s1 + $0x378] sm:$0xff]
  %v145 = vld [vmem:[%s1 + $0x380] sm:$0xff]
  %v146 = vld [vmem:[%s1 + $0x388] sm:$0xff]
  %v147 = vld [vmem:[%s1 + $0x390] sm:$0xff]
  %v148 = vld [vmem:[%s1 + $0x398] sm:$0xff]
  %v149 = vld [vmem:[%s1 + $0x3a0] sm:$0xff]
  %v150 = vld [vmem:[%s1 + $0x3a8] sm:$0xff]
  %v151 = vld [vmem:[%s1 + $0x3b0] sm:$0xff]
  %v152 = vld [vmem:[%s1 + $0x3b8] sm:$0xff]
  %v153 = vld [vmem:[%s1 + $0x3c0] sm:$0xff]
  %v154 = vld [vmem:[%s1 + $0x3c8] sm:$0xff]
  %v155 = vld [vmem:[%s1 + $0x3d0] sm:$0xff]
  %v156 = vld [vmem:[%s1 + $0x3d8] sm:$0xff]
  %v157 = vld [vmem:[%s1 + $0x3e0] sm:$0xff]
  %v158 = vld [vmem:[%s1 + $0x3e8] sm:$0xff]
  %v159 = vld [vmem:[%s1 + $0x3f0] sm:$0xff]
  %v160 = vld [vmem:[%s1 + $0x3f8] sm:$0xff]
  %v161 = vld [vmem:[%s1 + $0x400] sm:$0xff]
  %v162 = vld [vmem:[%s1 + $0x408] sm:$0xff]
  %v163 = vld [vmem:[%s1 + $0x410] sm:$0xff]
  %v164 = vld [vmem:[%s1 + $0x418] sm:$0xff]
  %v165 = vld [vmem:[%s1 + $0x420] sm:$0xff]
  %v166 = vld [vmem:[%s1 + $0x428] sm:$0xff]
  %v167 = vld [vmem:[%s1 + $0x430] sm:$0xff]
  %v168 = vld [vmem:[%s1 + $0x438] sm:$0xff]
  %v169 = vld [vmem:[%s1 + $0x440] sm:$0xff]
  %v170 = vld [vmem:[%s1 + $0x448] sm:$0xff]
  %v171 = vld [vmem:[%s1 + $0x450] sm:$0xff]
  %v172 = vld [vmem:[%s1 + $0x458] sm:$0xff]
  %v173 = vld [vmem:[%s1 + $0x460] sm:$0xff]
  %v174 = vld [vmem:[%s1 + $0x468] sm:$0xff]
  %v175 = vld [vmem:[%s1 + $0x470] sm:$0xff]
  %v176 = vld [vmem:[%s1 + $0x478] sm:$0xff]
  %v177 = vld [vmem:[%s1 + $0x480] sm:$0xff]
  %v178 = vld [vmem:[%s1 + $0x488] sm:$0xff]
  %v179 = vld [vmem:[%s1 + $0x490] sm:$0xff]
  %v180 = vld [vmem:[%s1 + $0x498] sm:$0xff]
  %v181 = vld [vmem:[%s1 + $0x4a0] sm:$0xff]
  %v182 = vld [vmem:[%s1 + $0x4a8] sm:$0xff]
  %v183 = vld [vmem:[%s1 + $0x4b0] sm:$0xff]
  %v184 = vld [vmem:[%s1 + $0x4b8] sm:$0xff]
  %v185 = vld [vmem:[%s1 + $0x4c0] sm:$0xff]
  %v186 = vld [vmem:[%s1 + $0x4c8] sm:$0xff]
  %v187 = vld [vmem:[%s1 + $0x4d0] sm:$0xff]
  %v188 = vld [vmem:[%s1 + $0x4d8] sm:$0xff]
  %v189 = vld [vmem:[%s1 + $0x4e0] sm:$0xff]
  %v190 = vld [vmem:[%s1 + $0x4e8] sm:$0xff]
  %v191 = vld [vmem:[%s1 + $0x4f0] sm:$0xff]
  %v192 = vld [vmem:[%s1 + $0x4f8] sm:$0xff]
  %v193 = vld [vmem:[%s1 + $0x500] sm:$0xff]
  %v194 = vld [vmem:[%s1 + $0x508] sm:$0xff]
  %v195 = vld [vmem:[%s1 + $0x510] sm:$0xff]
  %v196 = vld [vmem:[%s1 + $0x518] sm:$0xff]
  %v197 = vld [vmem:[%s1 + $0x520] sm:$0xff]
  %v198 = vld [vmem:[%s1 + $0x528] sm:$0xff]
  %v199 = vld [vmem:[%s1 + $0x530] sm:$0xff]
  %v200 = vld [vmem:[%s1 + $0x538] sm:$0xff]
  %v201 = vld [vmem:[%s1 + $0x540] sm:$0xff]
  %v202 = vld [vmem:[%s1 + $0x548] sm:$0xff]
  %v203 = vld [vmem:[%s1 + $0x550] sm:$0xff]
  %v204 = vld [vmem:[%s1 + $0x558] sm:$0xff]
  %v205 = vld [vmem:[%s1 + $0x560] sm:$0xff]
  %v206 = vld [vmem:[%s1 + $0x568] sm:$0xff]
  %v207 = vld [vmem:[%s1 + $0x570] sm:$0xff]
  %v208 = vld [vmem:[%s1 + $0x578] sm:$0xff]
  %v209 = vld [vmem:[%s1 + $0x580] sm:$0xff]
  %v210 = vld [vmem:[%s1 + $0x588] sm:$0xff]
  %v211 = vld [vmem:[%s1 + $0x590] sm:$0xff]
  %v212 = vld [vmem:[%s1 + $0x598] sm:$0xff]
  %v213 = vld [vmem:[%s1 + $0x5a0] sm:$0xff]
  %v214 = vld [vmem:[%s1 + $0x5a8] sm:$0xff]
  %v215 = vld [vmem:[%s1 + $0x5b0] sm:$0xff]
  %v216 = vld [vmem:[%s1 + $0x5b8] sm:$0xff]
  %v217 = vld [vmem:[%s1 + $0x5c0] sm:$0xff]
  %v218 = vld [vmem:[%s1 + $0x5c8] sm:$0xff]
  %v219 = vld [vmem:[%s1 + $0x5d0] sm:$0xff]
  %v220 = vld [vmem:[%s1 + $0x5d8] sm:$0xff]
  %v221 = vld [vmem:[%s1 + $0x5e0] sm:$0xff]
  %v222 = vld [vmem:[%s1 + $0x5e8] sm:$0xff]
  %v223 = vld [vmem:[%s1 + $0x5f0] sm:$0xff]
  %v224 = vld [vmem:[%s1 + $0x5f8] sm:$0xff]
  %v225 = vld [vmem:[%s1 + $0x600] sm:$0xff]
  %v226 = vld [vmem:[%s1 + $0x608] sm:$0xff]
  %v227 = vld [vmem:[%s1 + $0x610] sm:$0xff]
  %v228 = vld [vmem:[%s1 + $0x618] sm:$0xff]
  %v229 = vld [vmem:[%s1 + $0x620] sm:$0xff]
  %v230 = vld [vmem:[%s1 + $0x628] sm:$0xff]
  %v231 = vld [vmem:[%s1 + $0x630] sm:$0xff]
  %v232 = vld [vmem:[%s1 + $0x638] sm:$0xff]
  %v233 = vld [vmem:[%s1 + $0x640] sm:$0xff]
  %v234 = vld [vmem:[%s1 + $0x648] sm:$0xff]
  %v235 = vld [vmem:[%s1 + $0x650] sm:$0xff]
  %v236 = vld [vmem:[%s1 + $0x658] sm:$0xff]
  %v237 = vld [vmem:[%s1 + $0x660] sm:$0xff]
  %v238 = vld [vmem:[%s1 + $0x668] sm:$0xff]
  %v239 = vld [vmem:[%s1 + $0x670] sm:$0xff]
  %v240 = vld [vmem:[%s1 + $0x678] sm:$0xff]
  %v241 = vld [vmem:[%s1 + $0x680] sm:$0xff]
  %v242 = vld [vmem:[%s1 + $0x688] sm:$0xff]
  %v243 = vld [vmem:[%s1 + $0x690] sm:$0xff]
  %v244 = vld [vmem:[%s1 + $0x698] sm:$0xff]
  %v245 = vld [vmem:[%s1 + $0x6a0] sm:$0xff]
  %v246 = vld [vmem:[%s1 + $0x6a8] sm:$0xff]
  %v247 = vld [vmem:[%s1 + $0x6b0] sm:$0xff]
  %v248 = vld [vmem:[%s1 + $0x6b8] sm:$0xff]
  %v249 = vld [vmem:[%s1 + $0x6c0] sm:$0xff]
  %v250 = vld [vmem:[%s1 + $0x6c8] sm:$0xff]
  %v251 = vld [vmem:[%s1 + $0x6d0] sm:$0xff]
  %v252 = vld [vmem:[%s1 + $0x6d8] sm:$0xff]
  %v253 = vld [vmem:[%s1 + $0x6e0] sm:$0xff]
  %v254 = vld [vmem:[%s1 + $0x6e8] sm:$0xff]
  %v255 = vld [vmem:[%s1 + $0x6f0] sm:$0xff]
  %v256 = vld [vmem:[%s1 + $0x6f8] sm:$0xff]
  %v257 = vld [vmem:[%s1 + $0x700] sm:$0xff]
  %v258 = vld [vmem:[%s1 + $0x708] sm:$0xff]
  %v259 = vld [vmem:[%s1 + $0x710] sm:$0xff]
  %v260 = vld [vmem:[%s1 + $0x718] sm:$0xff]
  %v261 = vld [vmem:[%s1 + $0x720] sm:$0xff]
  %v262 = vld [vmem:[%s1 + $0x728] sm:$0xff]
  %v263 = vld [vmem:[%s1 + $0x730] sm:$0xff]
  %v264 = vld [vmem:[%s1 + $0x738] sm:$0xff]
  %v265 = vld [vmem:[%s1 + $0x740] sm:$0xff]
  %v266 = vld [vmem:[%s1 + $0x748] sm:$0xff]
  %v267 = vld [vmem:[%s1 + $0x750] sm:$0xff]
  %v268 = vld [vmem:[%s1 + $0x758] sm:$0xff]
  %v269 = vld [vmem:[%s1 + $0x760] sm:$0xff]
  %v270 = vld [vmem:[%s1 + $0x768] sm:$0xff]
  %v271 = vld [vmem:[%s1 + $0x770] sm:$0xff]
  %v272 = vld [vmem:[%s1 + $0x778] sm:$0xff]
  %v273 = vld [vmem:[%s1 + $0x780] sm:$0xff]
  %v274 = vld [vmem:[%s1 + $0x788] sm:$0xff]
  %v275 = vld [vmem:[%s1 + $0x790] sm:$0xff]
  %v276 = vld [vmem:[%s1 + $0x798] sm:$0xff]
  %v277 = vld [vmem:[%s1 + $0x7a0] sm:$0xff]
  %v278 = vld [vmem:[%s1 + $0x7a8] sm:$0xff]
  %v279 = vld [vmem:[%s1 + $0x7b0] sm:$0xff]
  %v280 = vld [vmem:[%s1 + $0x7b8] sm:$0xff]
  %v281 = vld [vmem:[%s1 + $0x7c0] sm:$0xff]
  %v282 = vld [vmem:[%s1 + $0x7c8] sm:$0xff]
  %v283 = vld [vmem:[%s1 + $0x7d0] sm:$0xff]
  %v284 = vld [vmem:[%s1 + $0x7d8] sm:$0xff]
  %v285 = vld [vmem:[%s1 + $0x7e0] sm:$0xff]
  %v286 = vld [vmem:[%s1 + $0x7e8] sm:$0xff]
  %v287 = vld [vmem:[%s1 + $0x7f0] sm:$0xff]
  %v288 = vld [vmem:[%s1 + $0x7f8] sm:$0xff]
  %v289 = vld [vmem:[%s1 + $0x800] sm:$0xff]
  %v290 = vld [vmem:[%s1 + $0x808] sm:$0xff]
  %v291 = vld [vmem:[%s1 + $0x810] sm:$0xff]
  %v292 = vld [vmem:[%s1 + $0x818] sm:$0xff]
  %v293 = vld [vmem:[%s1 + $0x820] sm:$0xff]
  %v294 = vld [vmem:[%s1 + $0x828] sm:$0xff]
  %v295 = vld [vmem:[%s1 + $0x830] sm:$0xff]
  %v296 = vld [vmem:[%s1 + $0x838] sm:$0xff]
  %v297 = vld [vmem:[%s1 + $0x840] sm:$0xff]
  %v298 = vld [vmem:[%s1 + $0x848] sm:$0xff]
  %v299 = vld [vmem:[%s1 + $0x850] sm:$0xff]
  %v300 = vld [vmem:[%s1 + $0x858] sm:$0xff]
  %v301 = vld [vmem:[%s1 + $0x860] sm:$0xff]
  %v302 = vld [vmem:[%s1 + $0x868] sm:$0xff]
  %v303 = vld [vmem:[%s1 + $0x870] sm:$0xff]
  %v304 = vld [vmem:[%s1 + $0x878] sm:$0xff]
  %v305 = vld [vmem:[%s1 + $0x880] sm:$0xff]
  %v306 = vld [vmem:[%s1 + $0x888] sm:$0xff]
  %v307 = vld [vmem:[%s1 + $0x890] sm:$0xff]
  %v308 = vld [vmem:[%s1 + $0x898] sm:$0xff]
  %v309 = vld [vmem:[%s1 + $0x8a0] sm:$0xff]
  %v310 = vld [vmem:[%s1 + $0x8a8] sm:$0xff]
  %v311 = vld [vmem:[%s1 + $0x8b0] sm:$0xff]
  %v312 = vld [vmem:[%s1 + $0x8b8] sm:$0xff]
  %v313 = vld [vmem:[%s1 + $0x8c0] sm:$0xff]
  %v314 = vld [vmem:[%s1 + $0x8c8] sm:$0xff]
  %v315 = vld [vmem:[%s1 + $0x8d0] sm:$0xff]
  %v316 = vld [vmem:[%s1 + $0x8d8] sm:$0xff]
  %v317 = vld [vmem:[%s1 + $0x8e0] sm:$0xff]
  %v318 = vld [vmem:[%s1 + $0x8e8] sm:$0xff]
  %v319 = vld [vmem:[%s1 + $0x8f0] sm:$0xff]
  %v320 = vld [vmem:[%s1 + $0x8f8] sm:$0xff]
  %v321 = vld [vmem:[%s1 + $0x900] sm:$0xff]
  %v322 = vld [vmem:[%s1 + $0x908] sm:$0xff]
  %v323 = vld [vmem:[%s1 + $0x910] sm:$0xff]
  %v324 = vld [vmem:[%s1 + $0x918] sm:$0xff]
  %v325 = vld [vmem:[%s1 + $0x920] sm:$0xff]
  %v326 = vld [vmem:[%s1 + $0x928] sm:$0xff]
  %v327 = vld [vmem:[%s1 + $0x930] sm:$0xff]
  %v328 = vld [vmem:[%s1 + $0x938] sm:$0xff]
  %v329 = vld [vmem:[%s1 + $0x940] sm:$0xff]
  %v330 = vld [vmem:[%s1 + $0x948] sm:$0xff]
  %v331 = vld [vmem:[%s1 + $0x950] sm:$0xff]
  %v332 = vld [vmem:[%s1 + $0x958] sm:$0xff]
  %v333 = vld [vmem:[%s1 + $0x960] sm:$0xff]
  %v334 = vld [vmem:[%s1 + $0x968] sm:$0xff]
  %v335 = vld [vmem:[%s1 + $0x970] sm:$0xff]
  %v336 = vld [vmem:[%s1 + $0x978] sm:$0xff]
  %v337 = vld [vmem:[%s1 + $0x980] sm:$0xff]
  %v338 = vld [vmem:[%s1 + $0x988] sm:$0xff]
  %v339 = vld [vmem:[%s1 + $0x990] sm:$0xff]
  %v340 = vld [vmem:[%s1 + $0x998] sm:$0xff]
  %v341 = vld [vmem:[%s1 + $0x9a0] sm:$0xff]
  %v342 = vld [vmem:[%s1 + $0x9a8] sm:$0xff]
  %v343 = vld [vmem:[%s1 + $0x9b0] sm:$0xff]
  %v344 = vld [vmem:[%s1 + $0x9b8] sm:$0xff]
  %v345 = vld [vmem:[%s1 + $0x9c0] sm:$0xff]
  %v346 = vld [vmem:[%s1 + $0x9c8] sm:$0xff]
  %v347 = vld [vmem:[%s1 + $0x9d0] sm:$0xff]
  %v348 = vld [vmem:[%s1 + $0x9d8] sm:$0xff]
  %v349 = vld [vmem:[%s1 + $0x9e0] sm:$0xff]
  %v350 = vld [vmem:[%s1 + $0x9e8] sm:$0xff]
  %v351 = vld [vmem:[%s1 + $0x9f0] sm:$0xff]
  %v352 = vld [vmem:[%s1 + $0x9f8] sm:$0xff]
  %v353 = vld [vmem:[%s1 + $0xa00] sm:$0xff]
  %v354 = vld [vmem:[%s1 + $0xa08] sm:$0xff]
  %v355 = vld [vmem:[%s1 + $0xa10] sm:$0xff]
  %v356 = vld [vmem:[%s1 + $0xa18] sm:$0xff]
  %v357 = vld [vmem:[%s1 + $0xa20] sm:$0xff]
  %v358 = vld [vmem:[%s1 + $0xa28] sm:$0xff]
  %v359 = vld [vmem:[%s1 + $0xa30] sm:$0xff]
  %v360 = vld [vmem:[%s1 + $0xa38] sm:$0xff]
  %v361 = vld [vmem:[%s1 + $0xa40] sm:$0xff]
  %v362 = vld [vmem:[%s1 + $0xa48] sm:$0xff]
  %v363 = vld [vmem:[%s1 + $0xa50] sm:$0xff]
  %v364 = vld [vmem:[%s1 + $0xa58] sm:$0xff]
  %v365 = vld [vmem:[%s1 + $0xa60] sm:$0xff]
  %v366 = vld [vmem:[%s1 + $0xa68] sm:$0xff]
  %v367 = vld [vmem:[%s1 + $0xa70] sm:$0xff]
  %v368 = vld [vmem:[%s1 + $0xa78] sm:$0xff]
  %v369 = vld [vmem:[%s1 + $0xa80] sm:$0xff]
  %v370 = vld [vmem:[%s1 + $0xa88] sm:$0xff]
  %v371 = vld [vmem:[%s1 + $0xa90] sm:$0xff]
  %v372 = vld [vmem:[%s1 + $0xa98] sm:$0xff]
  %v373 = vld [vmem:[%s1 + $0xaa0] sm:$0xff]
  %v374 = vld [vmem:[%s1 + $0xaa8] sm:$0xff]
  %v375 = vld [vmem:[%s1 + $0xab0] sm:$0xff]
  %v376 = vld [vmem:[%s1 + $0xab8] sm:$0xff]
  %v377 = vld [vmem:[%s1 + $0xac0] sm:$0xff]
  %v378 = vld [vmem:[%s1 + $0xac8] sm:$0xff]
  %v379 = vld [vmem:[%s1 + $0xad0] sm:$0xff]
  %v380 = vld [vmem:[%s1 + $0xad8] sm:$0xff]
  %v381 = vld [vmem:[%s1 + $0xae0] sm:$0xff]
  %v382 = vld [vmem:[%s1 + $0xae8] sm:$0xff]
  %v383 = vld [vmem:[%s1 + $0xaf0] sm:$0xff]
  %v384 = vld [vmem:[%s1 + $0xaf8] sm:$0xff]
  %v385 = vld [vmem:[%s1 + $0xb00] sm:$0xff]
  %v386 = vld [vmem:[%s1 + $0xb08] sm:$0xff]
  %v387 = vld [vmem:[%s1 + $0xb10] sm:$0xff]
  %v388 = vld [vmem:[%s1 + $0xb18] sm:$0xff]
  %v389 = vld [vmem:[%s1 + $0xb20] sm:$0xff]
  %v390 = vld [vmem:[%s1 + $0xb28] sm:$0xff]
  %v391 = vld [vmem:[%s1 + $0xb30] sm:$0xff]
  %v392 = vld [vmem:[%s1 + $0xb38] sm:$0xff]
  %v393 = vld [vmem:[%s1 + $0xb40] sm:$0xff]
  %v394 = vld [vmem:[%s1 + $0xb48] sm:$0xff]
  %v395 = vld [vmem:[%s1 + $0xb50] sm:$0xff]
  %v396 = vld [vmem:[%s1 + $0xb58] sm:$0xff]
  %v397 = vld [vmem:[%s1 + $0xb60] sm:$0xff]
  %v398 = vld [vmem:[%s1 + $0xb68] sm:$0xff]
  %v399 = vld [vmem:[%s1 + $0xb70] sm:$0xff]
  %v400 = vld [vmem:[%s1 + $0xb78] sm:$0xff]
  %v401 = vld [vmem:[%s1 + $0xb80] sm:$0xff]
  %v402 = vld [vmem:[%s1 + $0xb88] sm:$0xff]
  %v403 = vld [vmem:[%s1 + $0xb90] sm:$0xff]
  %v404 = vld [vmem:[%s1 + $0xb98] sm:$0xff]
  %v405 = vld [vmem:[%s1 + $0xba0] sm:$0xff]
  %v406 = vld [vmem:[%s1 + $0xba8] sm:$0xff]
  %v407 = vld [vmem:[%s1 + $0xbb0] sm:$0xff]
  %v408 = vld [vmem:[%s1 + $0xbb8] sm:$0xff]
  %v409 = vld [vmem:[%s1 + $0xbc0] sm:$0xff]
  %v410 = vld [vmem:[%s1 + $0xbc8] sm:$0xff]
  %v411 = vld [vmem:[%s1 + $0xbd0] sm:$0xff]
  %v412 = vld [vmem:[%s1 + $0xbd8] sm:$0xff]
  %v413 = vld [vmem:[%s1 + $0xbe0] sm:$0xff]
  %v414 = vld [vmem:[%s1 + $0xbe8] sm:$0xff]
  %v415 = vld [vmem:[%s1 + $0xbf0] sm:$0xff]
  %v416 = vld [vmem:[%s1 + $0xbf8] sm:$0xff]
  %v417 = vld [vmem:[%s1 + $0xc00] sm:$0xff]
  %v418 = vld [vmem:[%s1 + $0xc08] sm:$0xff]
  %v419 = vld [vmem:[%s1 + $0xc10] sm:$0xff]
  %v420 = vld [vmem:[%s1 + $0xc18] sm:$0xff]
  %v421 = vld [vmem:[%s1 + $0xc20] sm:$0xff]
  %v422 = vld [vmem:[%s1 + $0xc28] sm:$0xff]
  %v423 = vld [vmem:[%s1 + $0xc30] sm:$0xff]
  %v424 = vld [vmem:[%s1 + $0xc38] sm:$0xff]
  %v425 = vld [vmem:[%s1 + $0xc40] sm:$0xff]
  %v426 = vld [vmem:[%s1 + $0xc48] sm:$0xff]
  %v427 = vld [vmem:[%s1 + $0xc50] sm:$0xff]
  %v428 = vld [vmem:[%s1 + $0xc58] sm:$0xff]
  %v429 = vld [vmem:[%s1 + $0xc60] sm:$0xff]
  %v430 = vld [vmem:[%s1 + $0xc68] sm:$0xff]
  %v431 = vld [vmem:[%s1 + $0xc70] sm:$0xff]
  %v432 = vld [vmem:[%s1 + $0xc78] sm:$0xff]
  %v433 = vld [vmem:[%s1 + $0xc80] sm:$0xff]
  %v434 = vld [vmem:[%s1 + $0xc88] sm:$0xff]
  %v435 = vld [vmem:[%s1 + $0xc90] sm:$0xff]
  %v436 = vld [vmem:[%s1 + $0xc98] sm:$0xff]
  %v437 = vld [vmem:[%s1 + $0xca0] sm:$0xff]
  %v438 = vld [vmem:[%s1 + $0xca8] sm:$0xff]
  %v439 = vld [vmem:[%s1 + $0xcb0] sm:$0xff]
  %v440 = vld [vmem:[%s1 + $0xcb8] sm:$0xff]
  %v441 = vld [vmem:[%s1 + $0xcc0] sm:$0xff]
  %v442 = vld [vmem:[%s1 + $0xcc8] sm:$0xff]
  %v443 = vld [vmem:[%s1 + $0xcd0] sm:$0xff]
  %v444 = vld [vmem:[%s1 + $0xcd8] sm:$0xff]
  %v445 = vld [vmem:[%s1 + $0xce0] sm:$0xff]
  %v446 = vld [vmem:[%s1 + $0xce8] sm:$0xff]
  %v447 = vld [vmem:[%s1 + $0xcf0] sm:$0xff]
  %v448 = vld [vmem:[%s1 + $0xcf8] sm:$0xff]
  %v449 = vld [vmem:[%s1 + $0xd00] sm:$0xff]
  %v450 = vld [vmem:[%s1 + $0xd08] sm:$0xff]
  %v451 = vld [vmem:[%s1 + $0xd10] sm:$0xff]
  %v452 = vld [vmem:[%s1 + $0xd18] sm:$0xff]
  %v453 = vld [vmem:[%s1 + $0xd20] sm:$0xff]
  %v454 = vld [vmem:[%s1 + $0xd28] sm:$0xff]
  %v455 = vld [vmem:[%s1 + $0xd30] sm:$0xff]
  %v456 = vld [vmem:[%s1 + $0xd38] sm:$0xff]
  %v457 = vld [vmem:[%s1 + $0xd40] sm:$0xff]
  %v458 = vld [vmem:[%s1 + $0xd48] sm:$0xff]
  %v459 = vld [vmem:[%s1 + $0xd50] sm:$0xff]
  %v460 = vld [vmem:[%s1 + $0xd58] sm:$0xff]
  %v461 = vld [vmem:[%s1 + $0xd60] sm:$0xff]
  %v462 = vld [vmem:[%s1 + $0xd68] sm:$0xff]
  %v463 = vld [vmem:[%s1 + $0xd70] sm:$0xff]
  %v464 = vld [vmem:[%s1 + $0xd78] sm:$0xff]
  %v465 = vld [vmem:[%s1 + $0xd80] sm:$0xff]
  %v466 = vld [vmem:[%s1 + $0xd88] sm:$0xff]
  %v467 = vld [vmem:[%s1 + $0xd90] sm:$0xff]
  %v468 = vld [vmem:[%s1 + $0xd98] sm:$0xff]
  %v469 = vld [vmem:[%s1 + $0xda0] sm:$0xff]
  %v470 = vld [vmem:[%s1 + $0xda8] sm:$0xff]
  %v471 = vld [vmem:[%s1 + $0xdb0] sm:$0xff]
  %v472 = vld [vmem:[%s1 + $0xdb8] sm:$0xff]
  %v473 = vld [vmem:[%s1 + $0xdc0] sm:$0xff]
  %v474 = vld [vmem:[%s1 + $0xdc8] sm:$0xff]
  %v475 = vld [vmem:[%s1 + $0xdd0] sm:$0xff]
  %v476 = vld [vmem:[%s1 + $0xdd8] sm:$0xff]
  %v477 = vld [vmem:[%s1 + $0xde0] sm:$0xff]
  %v478 = vld [vmem:[%s1 + $0xde8] sm:$0xff]
  %v479 = vld [vmem:[%s1 + $0xdf0] sm:$0xff]
  %v480 = vld [vmem:[%s1 + $0xdf8] sm:$0xff]
  %v481 = vld [vmem:[%s1 + $0xe00] sm:$0xff]
  %v482 = vld [vmem:[%s1 + $0xe08] sm:$0xff]
  %v483 = vld [vmem:[%s1 + $0xe10] sm:$0xff]
  %v484 = vld [vmem:[%s1 + $0xe18] sm:$0xff]
  %v485 = vld [vmem:[%s1 + $0xe20] sm:$0xff]
  %v486 = vld [vmem:[%s1 + $0xe28] sm:$0xff]
  %v487 = vld [vmem:[%s1 + $0xe30] sm:$0xff]
  %v488 = vld [vmem:[%s1 + $0xe38] sm:$0xff]
  %v489 = vld [vmem:[%s1 + $0xe40] sm:$0xff]
  %v490 = vld [vmem:[%s1 + $0xe48] sm:$0xff]
  %v491 = vld [vmem:[%s1 + $0xe50] sm:$0xff]
  %v492 = vld [vmem:[%s1 + $0xe58] sm:$0xff]
  %v493 = vld [vmem:[%s1 + $0xe60] sm:$0xff]
  %v494 = vld [vmem:[%s1 + $0xe68] sm:$0xff]
  %v495 = vld [vmem:[%s1 + $0xe70] sm:$0xff]
  %v496 = vld [vmem:[%s1 + $0xe78] sm:$0xff]
  %v497 = vld [vmem:[%s1 + $0xe80] sm:$0xff]
  %v498 = vld [vmem:[%s1 + $0xe88] sm:$0xff]
  %v499 = vld [vmem:[%s1 + $0xe90] sm:$0xff]
  %v500 = vld [vmem:[%s1 + $0xe98] sm:$0xff]
  %v501 = vld [vmem:[%s1 + $0xea0] sm:$0xff]
  %v502 = vld [vmem:[%s1 + $0xea8] sm:$0xff]
  %v503 = vld [vmem:[%s1 + $0xeb0] sm:$0xff]
  %v504 = vld [vmem:[%s1 + $0xeb8] sm:$0xff]
  %v505 = vld [vmem:[%s1 + $0xec0] sm:$0xff]
  %v506 = vld [vmem:[%s1 + $0xec8] sm:$0xff]
  %v507 = vld [vmem:[%s1 + $0xed0] sm:$0xff]
  %v508 = vld [vmem:[%s1 + $0xed8] sm:$0xff]
  %v509 = vld [vmem:[%s1 + $0xee0] sm:$0xff]
  %v510 = vld [vmem:[%s1 + $0xee8] sm:$0xff]
  %v511 = vld [vmem:[%s1 + $0xef0] sm:$0xff]
  %v512 = vld [vmem:[%s1 + $0xef8] sm:$0xff]
  %v513 = vld [vmem:[%s1 + $0xf00] sm:$0xff]
  %v514 = vld [vmem:[%s1 + $0xf08] sm:$0xff]
  %v515 = vld [vmem:[%s1 + $0xf10] sm:$0xff]
  %v516 = vld [vmem:[%s1 + $0xf18] sm:$0xff]
  %v517 = vld [vmem:[%s1 + $0xf20] sm:$0xff]
  %v518 = vld [vmem:[%s1 + $0xf28] sm:$0xff]
  %v519 = vld [vmem:[%s1 + $0xf30] sm:$0xff]
  %v520 = vld [vmem:[%s1 + $0xf38] sm:$0xff]
  %v521 = vld [vmem:[%s1 + $0xf40] sm:$0xff]
  %v522 = vld [vmem:[%s1 + $0xf48] sm:$0xff]
  %v523 = vld [vmem:[%s1 + $0xf50] sm:$0xff]
  %v524 = vld [vmem:[%s1 + $0xf58] sm:$0xff]
  %v525 = vld [vmem:[%s1 + $0xf60] sm:$0xff]
  %v526 = vld [vmem:[%s1 + $0xf68] sm:$0xff]
  %v527 = vld [vmem:[%s1 + $0xf70] sm:$0xff]
  %v528 = vld [vmem:[%s1 + $0xf78] sm:$0xff]
  %v529 = vld [vmem:[%s1 + $0xf80] sm:$0xff]
  %v530 = vld [vmem:[%s1 + $0xf88] sm:$0xff]
  %v531 = vld [vmem:[%s1 + $0xf90] sm:$0xff]
  %v532 = vld [vmem:[%s1 + $0xf98] sm:$0xff]
  %v533 = vld [vmem:[%s1 + $0xfa0] sm:$0xff]
  %v534 = vld [vmem:[%s1 + $0xfa8] sm:$0xff]
  %v535 = vld [vmem:[%s1 + $0xfb0] sm:$0xff]
  %v536 = vld [vmem:[%s1 + $0xfb8] sm:$0xff]
  %v537 = vld [vmem:[%s1 + $0xfc0] sm:$0xff]
  %v538 = vld [vmem:[%s1 + $0xfc8] sm:$0xff]
  %v539 = vld [vmem:[%s1 + $0xfd0] sm:$0xff]
  %v540 = vld [vmem:[%s1 + $0xfd8] sm:$0xff]
  %v541 = vld [vmem:[%s1 + $0xfe0] sm:$0xff]
  %v542 = vld [vmem:[%s1 + $0xfe8] sm:$0xff]
  %v543 = vld [vmem:[%s1 + $0xff0] sm:$0xff]
  %v544 = vld [vmem:[%s1 + $0xff8] sm:$0xff]
  %v545 = vld [vmem:[%s1 + $0x1000] sm:$0xff]
  %v546 = vld [vmem:[%s1 + $0x1008] sm:$0xff]
  %v547 = vld [vmem:[%s1 + $0x1010] sm:$0xff]
  %v548 = vld [vmem:[%s1 + $0x1018] sm:$0xff]
  %v549 = vld [vmem:[%s1 + $0x1020] sm:$0xff]
  %v550 = vld [vmem:[%s1 + $0x1028] sm:$0xff]
  %v551 = vld [vmem:[%s1 + $0x1030] sm:$0xff]
  %v552 = vld [vmem:[%s1 + $0x1038] sm:$0xff]
  %v553 = vld [vmem:[%s1 + $0x1040] sm:$0xff]
  %v554 = vld [vmem:[%s1 + $0x1048] sm:$0xff]
  %v555 = vld [vmem:[%s1 + $0x1050] sm:$0xff]
  %v556 = vld [vmem:[%s1 + $0x1058] sm:$0xff]
  %v557 = vld [vmem:[%s1 + $0x1060] sm:$0xff]
  %v558 = vld [vmem:[%s1 + $0x1068] sm:$0xff]
  %v559 = vld [vmem:[%s1 + $0x1070] sm:$0xff]
  %v560 = vld [vmem:[%s1 + $0x1078] sm:$0xff]
  %v561 = vld [vmem:[%s1 + $0x1080] sm:$0xff]
  %v562 = vld [vmem:[%s1 + $0x1088] sm:$0xff]
  %v563 = vld [vmem:[%s1 + $0x1090] sm:$0xff]
  %v564 = vld [vmem:[%s1 + $0x1098] sm:$0xff]
  %v565 = vld [vmem:[%s1 + $0x10a0] sm:$0xff]
  %v566 = vld [vmem:[%s1 + $0x10a8] sm:$0xff]
  %v567 = vld [vmem:[%s1 + $0x10b0] sm:$0xff]
  %v568 = vld [vmem:[%s1 + $0x10b8] sm:$0xff]
  %v569 = vld [vmem:[%s1 + $0x10c0] sm:$0xff]
  %v570 = vld [vmem:[%s1 + $0x10c8] sm:$0xff]
  %v571 = vld [vmem:[%s1 + $0x10d0] sm:$0xff]
  %v572 = vld [vmem:[%s1 + $0x10d8] sm:$0xff]
  %v573 = vld [vmem:[%s1 + $0x10e0] sm:$0xff]
  %v574 = vld [vmem:[%s1 + $0x10e8] sm:$0xff]
  %v575 = vld [vmem:[%s1 + $0x10f0] sm:$0xff]
  %v576 = vld [vmem:[%s1 + $0x10f8] sm:$0xff]
  %v577 = vld [vmem:[%s1 + $0x1100] sm:$0xff]
  %v578 = vld [vmem:[%s1 + $0x1108] sm:$0xff]
  %v579 = vld [vmem:[%s1 + $0x1110] sm:$0xff]
  %v580 = vld [vmem:[%s1 + $0x1118] sm:$0xff]
  %v581 = vld [vmem:[%s1 + $0x1120] sm:$0xff]
  %v582 = vld [vmem:[%s1 + $0x1128] sm:$0xff]
  %v583 = vld [vmem:[%s1 + $0x1130] sm:$0xff]
  %v584 = vld [vmem:[%s1 + $0x1138] sm:$0xff]
  %v585 = vld [vmem:[%s1 + $0x1140] sm:$0xff]
  %v586 = vld [vmem:[%s1 + $0x1148] sm:$0xff]
  %v587 = vld [vmem:[%s1 + $0x1150] sm:$0xff]
  %v588 = vld [vmem:[%s1 + $0x1158] sm:$0xff]
  %v589 = vld [vmem:[%s1 + $0x1160] sm:$0xff]
  %v590 = vld [vmem:[%s1 + $0x1168] sm:$0xff]
  %v591 = vld [vmem:[%s1 + $0x1170] sm:$0xff]
  %v592 = vld [vmem:[%s1 + $0x1178] sm:$0xff]
  %v593 = vld [vmem:[%s1 + $0x1180] sm:$0xff]
  %v594 = vld [vmem:[%s1 + $0x1188] sm:$0xff]
  %v595 = vld [vmem:[%s1 + $0x1190] sm:$0xff]
  %v596 = vld [vmem:[%s1 + $0x1198] sm:$0xff]
  %v597 = vld [vmem:[%s1 + $0x11a0] sm:$0xff]
  %v598 = vld [vmem:[%s1 + $0x11a8] sm:$0xff]
  %v599 = vld [vmem:[%s1 + $0x11b0] sm:$0xff]
  %v600 = vld [vmem:[%s1 + $0x11b8] sm:$0xff]
  %v601 = vld [vmem:[%s1 + $0x11c0] sm:$0xff]
  %v602 = vld [vmem:[%s1 + $0x11c8] sm:$0xff]
  %v603 = vld [vmem:[%s1 + $0x11d0] sm:$0xff]
  %v604 = vld [vmem:[%s1 + $0x11d8] sm:$0xff]
  %v605 = vld [vmem:[%s1 + $0x11e0] sm:$0xff]
  %v606 = vld [vmem:[%s1 + $0x11e8] sm:$0xff]
  %v607 = vld [vmem:[%s1 + $0x11f0] sm:$0xff]
  %v608 = vld [vmem:[%s1 + $0x11f8] sm:$0xff]
  %v609 = vld [vmem:[%s2] sm:$0x3f]
  %v611 = vlaneseq
  %v612 = vshrl.u32 %v611, 7
  %v613 = vsub.s32 0, %v612
  %v614 = vrot.slane %v609, %v613
  %v615 = vlaneseq
  %v616 = vshrl.u32 %v615, 7
  %v617 = vsub.s32 1, %v616
  %v618 = vrot.slane %v609, %v617
  %v619 = vlaneseq
  %v620 = vshrl.u32 %v619, 7
  %v621 = vsub.s32 2, %v620
  %v622 = vrot.slane %v609, %v621
  %v623 = vlaneseq
  %v624 = vshrl.u32 %v623, 7
  %v625 = vsub.s32 3, %v624
  %v626 = vrot.slane %v609, %v625
  %v627 = vlaneseq
  %v628 = vshrl.u32 %v627, 7
  %v629 = vsub.s32 4, %v628
  %v630 = vrot.slane %v609, %v629
  %v631 = vlaneseq
  %v632 = vshrl.u32 %v631, 7
  %v633 = vsub.s32 5, %v632
  %v634 = vrot.slane %v609, %v633
  %v653 = vunpack.c.l.b16 %v21
  %v654 = vunpack.c.h.b16 %v21
  %v655 = vunpack.c.l.b16 %v22
  %v656 = vunpack.c.h.b16 %v22
  %v657 = vunpack.c.l.b16 %v23
  %v658 = vunpack.c.h.b16 %v23
  %v659 = vunpack.c.l.b16 %v24
  %v660 = vunpack.c.h.b16 %v24
  %v661 = vunpack.c.l.b16 %v25
  %v662 = vunpack.c.h.b16 %v25
  %v663 = vunpack.c.l.b16 %v26
  %v664 = vunpack.c.h.b16 %v26
  %v665 = vunpack.c.l.b16 %v27
  %v666 = vunpack.c.h.b16 %v27
  %v667 = vunpack.c.l.b16 %v28
  %v668 = vunpack.c.h.b16 %v28
  %v669 = vunpack.c.l.b16 %v29
  %v670 = vunpack.c.h.b16 %v29
  %v671 = vunpack.c.l.b16 %v30
  %v672 = vunpack.c.h.b16 %v30
  %v673 = vunpack.c.l.b16 %v31
  %v674 = vunpack.c.h.b16 %v31
  %v675 = vunpack.c.l.b16 %v32
  %v676 = vunpack.c.h.b16 %v32
  %v677 = vpack.c.b16 %v665, %v653
  %v678 = vpack.c.b16 %v666, %v654
  %v679 = vpack.c.b16 %v667, %v655
  %v680 = vpack.c.b16 %v668, %v656
  %v681 = vpack.c.b16 %v669, %v657
  %v682 = vpack.c.b16 %v670, %v658
  %v683 = vpack.c.b16 %v671, %v659
  %v684 = vpack.c.b16 %v672, %v660
  %v685 = vpack.c.b16 %v673, %v661
  %v686 = vpack.c.b16 %v674, %v662
  %v687 = vpack.c.b16 %v675, %v663
  %v688 = vpack.c.b16 %v676, %v664
  %v1277 = vunpack.c.l.b16 %v33
  %v1278 = vunpack.c.h.b16 %v33
  %v1279 = vunpack.c.l.b16 %v34
  %v1280 = vunpack.c.h.b16 %v34
  %v1281 = vunpack.c.l.b16 %v35
  %v1282 = vunpack.c.h.b16 %v35
  %v1283 = vunpack.c.l.b16 %v36
  %v1284 = vunpack.c.h.b16 %v36
  %v1285 = vunpack.c.l.b16 %v37
  %v1286 = vunpack.c.h.b16 %v37
  %v1287 = vunpack.c.l.b16 %v38
  %v1288 = vunpack.c.h.b16 %v38
  %v1289 = vunpack.c.l.b16 %v39
  %v1290 = vunpack.c.h.b16 %v39
  %v1291 = vunpack.c.l.b16 %v40
  %v1292 = vunpack.c.h.b16 %v40
  %v1293 = vunpack.c.l.b16 %v41
  %v1294 = vunpack.c.h.b16 %v41
  %v1295 = vunpack.c.l.b16 %v42
  %v1296 = vunpack.c.h.b16 %v42
  %v1297 = vunpack.c.l.b16 %v43
  %v1298 = vunpack.c.h.b16 %v43
  %v1299 = vunpack.c.l.b16 %v44
  %v1300 = vunpack.c.h.b16 %v44
  %v1301 = vunpack.c.l.b16 %v45
  %v1302 = vunpack.c.h.b16 %v45
  %v1303 = vunpack.c.l.b16 %v46
  %v1304 = vunpack.c.h.b16 %v46
  %v1305 = vunpack.c.l.b16 %v47
  %v1306 = vunpack.c.h.b16 %v47
  %v1307 = vunpack.c.l.b16 %v48
  %v1308 = vunpack.c.h.b16 %v48
  %v1309 = vunpack.c.l.b16 %v49
  %v1310 = vunpack.c.h.b16 %v49
  %v1311 = vunpack.c.l.b16 %v50
  %v1312 = vunpack.c.h.b16 %v50
  %v1313 = vunpack.c.l.b16 %v51
  %v1314 = vunpack.c.h.b16 %v51
  %v1315 = vunpack.c.l.b16 %v52
  %v1316 = vunpack.c.h.b16 %v52
  %v1317 = vunpack.c.l.b16 %v53
  %v1318 = vunpack.c.h.b16 %v53
  %v1319 = vunpack.c.l.b16 %v54
  %v1320 = vunpack.c.h.b16 %v54
  %v1321 = vunpack.c.l.b16 %v55
  %v1322 = vunpack.c.h.b16 %v55
  %v1323 = vunpack.c.l.b16 %v56
  %v1324 = vunpack.c.h.b16 %v56
  %v1325 = vunpack.c.l.b16 %v57
  %v1326 = vunpack.c.h.b16 %v57
  %v1327 = vunpack.c.l.b16 %v58
  %v1328 = vunpack.c.h.b16 %v58
  %v1329 = vunpack.c.l.b16 %v59
  %v1330 = vunpack.c.h.b16 %v59
  %v1331 = vunpack.c.l.b16 %v60
  %v1332 = vunpack.c.h.b16 %v60
  %v1333 = vunpack.c.l.b16 %v61
  %v1334 = vunpack.c.h.b16 %v61
  %v1335 = vunpack.c.l.b16 %v62
  %v1336 = vunpack.c.h.b16 %v62
  %v1337 = vunpack.c.l.b16 %v63
  %v1338 = vunpack.c.h.b16 %v63
  %v1339 = vunpack.c.l.b16 %v64
  %v1340 = vunpack.c.h.b16 %v64
  %v1341 = vunpack.c.l.b16 %v65
  %v1342 = vunpack.c.h.b16 %v65
  %v1343 = vunpack.c.l.b16 %v66
  %v1344 = vunpack.c.h.b16 %v66
  %v1345 = vunpack.c.l.b16 %v67
  %v1346 = vunpack.c.h.b16 %v67
  %v1347 = vunpack.c.l.b16 %v68
  %v1348 = vunpack.c.h.b16 %v68
  %v1349 = vunpack.c.l.b16 %v69
  %v1350 = vunpack.c.h.b16 %v69
  %v1351 = vunpack.c.l.b16 %v70
  %v1352 = vunpack.c.h.b16 %v70
  %v1353 = vunpack.c.l.b16 %v71
  %v1354 = vunpack.c.h.b16 %v71
  %v1355 = vunpack.c.l.b16 %v72
  %v1356 = vunpack.c.h.b16 %v72
  %v1357 = vunpack.c.l.b16 %v73
  %v1358 = vunpack.c.h.b16 %v73
  %v1359 = vunpack.c.l.b16 %v74
  %v1360 = vunpack.c.h.b16 %v74
  %v1361 = vunpack.c.l.b16 %v75
  %v1362 = vunpack.c.h.b16 %v75
  %v1363 = vunpack.c.l.b16 %v76
  %v1364 = vunpack.c.h.b16 %v76
  %v1365 = vunpack.c.l.b16 %v77
  %v1366 = vunpack.c.h.b16 %v77
  %v1367 = vunpack.c.l.b16 %v78
  %v1368 = vunpack.c.h.b16 %v78
  %v1369 = vunpack.c.l.b16 %v79
  %v1370 = vunpack.c.h.b16 %v79
  %v1371 = vunpack.c.l.b16 %v80
  %v1372 = vunpack.c.h.b16 %v80
  %v1373 = vunpack.c.l.b16 %v81
  %v1374 = vunpack.c.h.b16 %v81
  %v1375 = vunpack.c.l.b16 %v82
  %v1376 = vunpack.c.h.b16 %v82
  %v1377 = vunpack.c.l.b16 %v83
  %v1378 = vunpack.c.h.b16 %v83
  %v1379 = vunpack.c.l.b16 %v84
  %v1380 = vunpack.c.h.b16 %v84
  %v1381 = vunpack.c.l.b16 %v85
  %v1382 = vunpack.c.h.b16 %v85
  %v1383 = vunpack.c.l.b16 %v86
  %v1384 = vunpack.c.h.b16 %v86
  %v1385 = vunpack.c.l.b16 %v87
  %v1386 = vunpack.c.h.b16 %v87
  %v1387 = vunpack.c.l.b16 %v88
  %v1388 = vunpack.c.h.b16 %v88
  %v1389 = vunpack.c.l.b16 %v89
  %v1390 = vunpack.c.h.b16 %v89
  %v1391 = vunpack.c.l.b16 %v90
  %v1392 = vunpack.c.h.b16 %v90
  %v1393 = vunpack.c.l.b16 %v91
  %v1394 = vunpack.c.h.b16 %v91
  %v1395 = vunpack.c.l.b16 %v92
  %v1396 = vunpack.c.h.b16 %v92
  %v1397 = vunpack.c.l.b16 %v93
  %v1398 = vunpack.c.h.b16 %v93
  %v1399 = vunpack.c.l.b16 %v94
  %v1400 = vunpack.c.h.b16 %v94
  %v1401 = vunpack.c.l.b16 %v95
  %v1402 = vunpack.c.h.b16 %v95
  %v1403 = vunpack.c.l.b16 %v96
  %v1404 = vunpack.c.h.b16 %v96
  %v1405 = vunpack.c.l.b16 %v97
  %v1406 = vunpack.c.h.b16 %v97
  %v1407 = vunpack.c.l.b16 %v98
  %v1408 = vunpack.c.h.b16 %v98
  %v1409 = vunpack.c.l.b16 %v99
  %v1410 = vunpack.c.h.b16 %v99
  %v1411 = vunpack.c.l.b16 %v100
  %v1412 = vunpack.c.h.b16 %v100
  %v1413 = vunpack.c.l.b16 %v101
  %v1414 = vunpack.c.h.b16 %v101
  %v1415 = vunpack.c.l.b16 %v102
  %v1416 = vunpack.c.h.b16 %v102
  %v1417 = vunpack.c.l.b16 %v103
  %v1418 = vunpack.c.h.b16 %v103
  %v1419 = vunpack.c.l.b16 %v104
  %v1420 = vunpack.c.h.b16 %v104
  %v1421 = vunpack.c.l.b16 %v105
  %v1422 = vunpack.c.h.b16 %v105
  %v1423 = vunpack.c.l.b16 %v106
  %v1424 = vunpack.c.h.b16 %v106
  %v1425 = vunpack.c.l.b16 %v107
  %v1426 = vunpack.c.h.b16 %v107
  %v1427 = vunpack.c.l.b16 %v108
  %v1428 = vunpack.c.h.b16 %v108
  %v1429 = vunpack.c.l.b16 %v109
  %v1430 = vunpack.c.h.b16 %v109
  %v1431 = vunpack.c.l.b16 %v110
  %v1432 = vunpack.c.h.b16 %v110
  %v1433 = vunpack.c.l.b16 %v111
  %v1434 = vunpack.c.h.b16 %v111
  %v1435 = vunpack.c.l.b16 %v112
  %v1436 = vunpack.c.h.b16 %v112
  %v1437 = vunpack.c.l.b16 %v113
  %v1438 = vunpack.c.h.b16 %v113
  %v1439 = vunpack.c.l.b16 %v114
  %v1440 = vunpack.c.h.b16 %v114
  %v1441 = vunpack.c.l.b16 %v115
  %v1442 = vunpack.c.h.b16 %v115
  %v1443 = vunpack.c.l.b16 %v116
  %v1444 = vunpack.c.h.b16 %v116
  %v1445 = vunpack.c.l.b16 %v117
  %v1446 = vunpack.c.h.b16 %v117
  %v1447 = vunpack.c.l.b16 %v118
  %v1448 = vunpack.c.h.b16 %v118
  %v1449 = vunpack.c.l.b16 %v119
  %v1450 = vunpack.c.h.b16 %v119
  %v1451 = vunpack.c.l.b16 %v120
  %v1452 = vunpack.c.h.b16 %v120
  %v1453 = vunpack.c.l.b16 %v121
  %v1454 = vunpack.c.h.b16 %v121
  %v1455 = vunpack.c.l.b16 %v122
  %v1456 = vunpack.c.h.b16 %v122
  %v1457 = vunpack.c.l.b16 %v123
  %v1458 = vunpack.c.h.b16 %v123
  %v1459 = vunpack.c.l.b16 %v124
  %v1460 = vunpack.c.h.b16 %v124
  %v1461 = vunpack.c.l.b16 %v125
  %v1462 = vunpack.c.h.b16 %v125
  %v1463 = vunpack.c.l.b16 %v126
  %v1464 = vunpack.c.h.b16 %v126
  %v1465 = vunpack.c.l.b16 %v127
  %v1466 = vunpack.c.h.b16 %v127
  %v1467 = vunpack.c.l.b16 %v128
  %v1468 = vunpack.c.h.b16 %v128
  %v1469 = vunpack.c.l.b16 %v129
  %v1470 = vunpack.c.h.b16 %v129
  %v1471 = vunpack.c.l.b16 %v130
  %v1472 = vunpack.c.h.b16 %v130
  %v1473 = vunpack.c.l.b16 %v131
  %v1474 = vunpack.c.h.b16 %v131
  %v1475 = vunpack.c.l.b16 %v132
  %v1476 = vunpack.c.h.b16 %v132
  %v1477 = vunpack.c.l.b16 %v133
  %v1478 = vunpack.c.h.b16 %v133
  %v1479 = vunpack.c.l.b16 %v134
  %v1480 = vunpack.c.h.b16 %v134
  %v1481 = vunpack.c.l.b16 %v135
  %v1482 = vunpack.c.h.b16 %v135
  %v1483 = vunpack.c.l.b16 %v136
  %v1484 = vunpack.c.h.b16 %v136
  %v1485 = vunpack.c.l.b16 %v137
  %v1486 = vunpack.c.h.b16 %v137
  %v1487 = vunpack.c.l.b16 %v138
  %v1488 = vunpack.c.h.b16 %v138
  %v1489 = vunpack.c.l.b16 %v139
  %v1490 = vunpack.c.h.b16 %v139
  %v1491 = vunpack.c.l.b16 %v140
  %v1492 = vunpack.c.h.b16 %v140
  %v1493 = vunpack.c.l.b16 %v141
  %v1494 = vunpack.c.h.b16 %v141
  %v1495 = vunpack.c.l.b16 %v142
  %v1496 = vunpack.c.h.b16 %v142
  %v1497 = vunpack.c.l.b16 %v143
  %v1498 = vunpack.c.h.b16 %v143
  %v1499 = vunpack.c.l.b16 %v144
  %v1500 = vunpack.c.h.b16 %v144
  %v1501 = vunpack.c.l.b16 %v145
  %v1502 = vunpack.c.h.b16 %v145
  %v1503 = vunpack.c.l.b16 %v146
  %v1504 = vunpack.c.h.b16 %v146
  %v1505 = vunpack.c.l.b16 %v147
  %v1506 = vunpack.c.h.b16 %v147
  %v1507 = vunpack.c.l.b16 %v148
  %v1508 = vunpack.c.h.b16 %v148
  %v1509 = vunpack.c.l.b16 %v149
  %v1510 = vunpack.c.h.b16 %v149
  %v1511 = vunpack.c.l.b16 %v150
  %v1512 = vunpack.c.h.b16 %v150
  %v1513 = vunpack.c.l.b16 %v151
  %v1514 = vunpack.c.h.b16 %v151
  %v1515 = vunpack.c.l.b16 %v152
  %v1516 = vunpack.c.h.b16 %v152
  %v1517 = vunpack.c.l.b16 %v153
  %v1518 = vunpack.c.h.b16 %v153
  %v1519 = vunpack.c.l.b16 %v154
  %v1520 = vunpack.c.h.b16 %v154
  %v1521 = vunpack.c.l.b16 %v155
  %v1522 = vunpack.c.h.b16 %v155
  %v1523 = vunpack.c.l.b16 %v156
  %v1524 = vunpack.c.h.b16 %v156
  %v1525 = vunpack.c.l.b16 %v157
  %v1526 = vunpack.c.h.b16 %v157
  %v1527 = vunpack.c.l.b16 %v158
  %v1528 = vunpack.c.h.b16 %v158
  %v1529 = vunpack.c.l.b16 %v159
  %v1530 = vunpack.c.h.b16 %v159
  %v1531 = vunpack.c.l.b16 %v160
  %v1532 = vunpack.c.h.b16 %v160
  %v1533 = vunpack.c.l.b16 %v161
  %v1534 = vunpack.c.h.b16 %v161
  %v1535 = vunpack.c.l.b16 %v162
  %v1536 = vunpack.c.h.b16 %v162
  %v1537 = vunpack.c.l.b16 %v163
  %v1538 = vunpack.c.h.b16 %v163
  %v1539 = vunpack.c.l.b16 %v164
  %v1540 = vunpack.c.h.b16 %v164
  %v1541 = vunpack.c.l.b16 %v165
  %v1542 = vunpack.c.h.b16 %v165
  %v1543 = vunpack.c.l.b16 %v166
  %v1544 = vunpack.c.h.b16 %v166
  %v1545 = vunpack.c.l.b16 %v167
  %v1546 = vunpack.c.h.b16 %v167
  %v1547 = vunpack.c.l.b16 %v168
  %v1548 = vunpack.c.h.b16 %v168
  %v1549 = vunpack.c.l.b16 %v169
  %v1550 = vunpack.c.h.b16 %v169
  %v1551 = vunpack.c.l.b16 %v170
  %v1552 = vunpack.c.h.b16 %v170
  %v1553 = vunpack.c.l.b16 %v171
  %v1554 = vunpack.c.h.b16 %v171
  %v1555 = vunpack.c.l.b16 %v172
  %v1556 = vunpack.c.h.b16 %v172
  %v1557 = vunpack.c.l.b16 %v173
  %v1558 = vunpack.c.h.b16 %v173
  %v1559 = vunpack.c.l.b16 %v174
  %v1560 = vunpack.c.h.b16 %v174
  %v1561 = vunpack.c.l.b16 %v175
  %v1562 = vunpack.c.h.b16 %v175
  %v1563 = vunpack.c.l.b16 %v176
  %v1564 = vunpack.c.h.b16 %v176
  %v1565 = vunpack.c.l.b16 %v177
  %v1566 = vunpack.c.h.b16 %v177
  %v1567 = vunpack.c.l.b16 %v178
  %v1568 = vunpack.c.h.b16 %v178
  %v1569 = vunpack.c.l.b16 %v179
  %v1570 = vunpack.c.h.b16 %v179
  %v1571 = vunpack.c.l.b16 %v180
  %v1572 = vunpack.c.h.b16 %v180
  %v1573 = vunpack.c.l.b16 %v181
  %v1574 = vunpack.c.h.b16 %v181
  %v1575 = vunpack.c.l.b16 %v182
  %v1576 = vunpack.c.h.b16 %v182
  %v1577 = vunpack.c.l.b16 %v183
  %v1578 = vunpack.c.h.b16 %v183
  %v1579 = vunpack.c.l.b16 %v184
  %v1580 = vunpack.c.h.b16 %v184
  %v1581 = vunpack.c.l.b16 %v185
  %v1582 = vunpack.c.h.b16 %v185
  %v1583 = vunpack.c.l.b16 %v186
  %v1584 = vunpack.c.h.b16 %v186
  %v1585 = vunpack.c.l.b16 %v187
  %v1586 = vunpack.c.h.b16 %v187
  %v1587 = vunpack.c.l.b16 %v188
  %v1588 = vunpack.c.h.b16 %v188
  %v1589 = vunpack.c.l.b16 %v189
  %v1590 = vunpack.c.h.b16 %v189
  %v1591 = vunpack.c.l.b16 %v190
  %v1592 = vunpack.c.h.b16 %v190
  %v1593 = vunpack.c.l.b16 %v191
  %v1594 = vunpack.c.h.b16 %v191
  %v1595 = vunpack.c.l.b16 %v192
  %v1596 = vunpack.c.h.b16 %v192
  %v1597 = vunpack.c.l.b16 %v193
  %v1598 = vunpack.c.h.b16 %v193
  %v1599 = vunpack.c.l.b16 %v194
  %v1600 = vunpack.c.h.b16 %v194
  %v1601 = vunpack.c.l.b16 %v195
  %v1602 = vunpack.c.h.b16 %v195
  %v1603 = vunpack.c.l.b16 %v196
  %v1604 = vunpack.c.h.b16 %v196
  %v1605 = vunpack.c.l.b16 %v197
  %v1606 = vunpack.c.h.b16 %v197
  %v1607 = vunpack.c.l.b16 %v198
  %v1608 = vunpack.c.h.b16 %v198
  %v1609 = vunpack.c.l.b16 %v199
  %v1610 = vunpack.c.h.b16 %v199
  %v1611 = vunpack.c.l.b16 %v200
  %v1612 = vunpack.c.h.b16 %v200
  %v1613 = vunpack.c.l.b16 %v201
  %v1614 = vunpack.c.h.b16 %v201
  %v1615 = vunpack.c.l.b16 %v202
  %v1616 = vunpack.c.h.b16 %v202
  %v1617 = vunpack.c.l.b16 %v203
  %v1618 = vunpack.c.h.b16 %v203
  %v1619 = vunpack.c.l.b16 %v204
  %v1620 = vunpack.c.h.b16 %v204
  %v1621 = vunpack.c.l.b16 %v205
  %v1622 = vunpack.c.h.b16 %v205
  %v1623 = vunpack.c.l.b16 %v206
  %v1624 = vunpack.c.h.b16 %v206
  %v1625 = vunpack.c.l.b16 %v207
  %v1626 = vunpack.c.h.b16 %v207
  %v1627 = vunpack.c.l.b16 %v208
  %v1628 = vunpack.c.h.b16 %v208
  %v1629 = vunpack.c.l.b16 %v209
  %v1630 = vunpack.c.h.b16 %v209
  %v1631 = vunpack.c.l.b16 %v210
  %v1632 = vunpack.c.h.b16 %v210
  %v1633 = vunpack.c.l.b16 %v211
  %v1634 = vunpack.c.h.b16 %v211
  %v1635 = vunpack.c.l.b16 %v212
  %v1636 = vunpack.c.h.b16 %v212
  %v1637 = vunpack.c.l.b16 %v213
  %v1638 = vunpack.c.h.b16 %v213
  %v1639 = vunpack.c.l.b16 %v214
  %v1640 = vunpack.c.h.b16 %v214
  %v1641 = vunpack.c.l.b16 %v215
  %v1642 = vunpack.c.h.b16 %v215
  %v1643 = vunpack.c.l.b16 %v216
  %v1644 = vunpack.c.h.b16 %v216
  %v1645 = vunpack.c.l.b16 %v217
  %v1646 = vunpack.c.h.b16 %v217
  %v1647 = vunpack.c.l.b16 %v218
  %v1648 = vunpack.c.h.b16 %v218
  %v1649 = vunpack.c.l.b16 %v219
  %v1650 = vunpack.c.h.b16 %v219
  %v1651 = vunpack.c.l.b16 %v220
  %v1652 = vunpack.c.h.b16 %v220
  %v1653 = vunpack.c.l.b16 %v221
  %v1654 = vunpack.c.h.b16 %v221
  %v1655 = vunpack.c.l.b16 %v222
  %v1656 = vunpack.c.h.b16 %v222
  %v1657 = vunpack.c.l.b16 %v223
  %v1658 = vunpack.c.h.b16 %v223
  %v1659 = vunpack.c.l.b16 %v224
  %v1660 = vunpack.c.h.b16 %v224
  %v1661 = vunpack.c.l.b16 %v225
  %v1662 = vunpack.c.h.b16 %v225
  %v1663 = vunpack.c.l.b16 %v226
  %v1664 = vunpack.c.h.b16 %v226
  %v1665 = vunpack.c.l.b16 %v227
  %v1666 = vunpack.c.h.b16 %v227
  %v1667 = vunpack.c.l.b16 %v228
  %v1668 = vunpack.c.h.b16 %v228
  %v1669 = vunpack.c.l.b16 %v229
  %v1670 = vunpack.c.h.b16 %v229
  %v1671 = vunpack.c.l.b16 %v230
  %v1672 = vunpack.c.h.b16 %v230
  %v1673 = vunpack.c.l.b16 %v231
  %v1674 = vunpack.c.h.b16 %v231
  %v1675 = vunpack.c.l.b16 %v232
  %v1676 = vunpack.c.h.b16 %v232
  %v1677 = vunpack.c.l.b16 %v233
  %v1678 = vunpack.c.h.b16 %v233
  %v1679 = vunpack.c.l.b16 %v234
  %v1680 = vunpack.c.h.b16 %v234
  %v1681 = vunpack.c.l.b16 %v235
  %v1682 = vunpack.c.h.b16 %v235
  %v1683 = vunpack.c.l.b16 %v236
  %v1684 = vunpack.c.h.b16 %v236
  %v1685 = vunpack.c.l.b16 %v237
  %v1686 = vunpack.c.h.b16 %v237
  %v1687 = vunpack.c.l.b16 %v238
  %v1688 = vunpack.c.h.b16 %v238
  %v1689 = vunpack.c.l.b16 %v239
  %v1690 = vunpack.c.h.b16 %v239
  %v1691 = vunpack.c.l.b16 %v240
  %v1692 = vunpack.c.h.b16 %v240
  %v1693 = vunpack.c.l.b16 %v241
  %v1694 = vunpack.c.h.b16 %v241
  %v1695 = vunpack.c.l.b16 %v242
  %v1696 = vunpack.c.h.b16 %v242
  %v1697 = vunpack.c.l.b16 %v243
  %v1698 = vunpack.c.h.b16 %v243
  %v1699 = vunpack.c.l.b16 %v244
  %v1700 = vunpack.c.h.b16 %v244
  %v1701 = vunpack.c.l.b16 %v245
  %v1702 = vunpack.c.h.b16 %v245
  %v1703 = vunpack.c.l.b16 %v246
  %v1704 = vunpack.c.h.b16 %v246
  %v1705 = vunpack.c.l.b16 %v247
  %v1706 = vunpack.c.h.b16 %v247
  %v1707 = vunpack.c.l.b16 %v248
  %v1708 = vunpack.c.h.b16 %v248
  %v1709 = vunpack.c.l.b16 %v249
  %v1710 = vunpack.c.h.b16 %v249
  %v1711 = vunpack.c.l.b16 %v250
  %v1712 = vunpack.c.h.b16 %v250
  %v1713 = vunpack.c.l.b16 %v251
  %v1714 = vunpack.c.h.b16 %v251
  %v1715 = vunpack.c.l.b16 %v252
  %v1716 = vunpack.c.h.b16 %v252
  %v1717 = vunpack.c.l.b16 %v253
  %v1718 = vunpack.c.h.b16 %v253
  %v1719 = vunpack.c.l.b16 %v254
  %v1720 = vunpack.c.h.b16 %v254
  %v1721 = vunpack.c.l.b16 %v255
  %v1722 = vunpack.c.h.b16 %v255
  %v1723 = vunpack.c.l.b16 %v256
  %v1724 = vunpack.c.h.b16 %v256
  %v1725 = vunpack.c.l.b16 %v257
  %v1726 = vunpack.c.h.b16 %v257
  %v1727 = vunpack.c.l.b16 %v258
  %v1728 = vunpack.c.h.b16 %v258
  %v1729 = vunpack.c.l.b16 %v259
  %v1730 = vunpack.c.h.b16 %v259
  %v1731 = vunpack.c.l.b16 %v260
  %v1732 = vunpack.c.h.b16 %v260
  %v1733 = vunpack.c.l.b16 %v261
  %v1734 = vunpack.c.h.b16 %v261
  %v1735 = vunpack.c.l.b16 %v262
  %v1736 = vunpack.c.h.b16 %v262
  %v1737 = vunpack.c.l.b16 %v263
  %v1738 = vunpack.c.h.b16 %v263
  %v1739 = vunpack.c.l.b16 %v264
  %v1740 = vunpack.c.h.b16 %v264
  %v1741 = vunpack.c.l.b16 %v265
  %v1742 = vunpack.c.h.b16 %v265
  %v1743 = vunpack.c.l.b16 %v266
  %v1744 = vunpack.c.h.b16 %v266
  %v1745 = vunpack.c.l.b16 %v267
  %v1746 = vunpack.c.h.b16 %v267
  %v1747 = vunpack.c.l.b16 %v268
  %v1748 = vunpack.c.h.b16 %v268
  %v1749 = vunpack.c.l.b16 %v269
  %v1750 = vunpack.c.h.b16 %v269
  %v1751 = vunpack.c.l.b16 %v270
  %v1752 = vunpack.c.h.b16 %v270
  %v1753 = vunpack.c.l.b16 %v271
  %v1754 = vunpack.c.h.b16 %v271
  %v1755 = vunpack.c.l.b16 %v272
  %v1756 = vunpack.c.h.b16 %v272
  %v1757 = vunpack.c.l.b16 %v273
  %v1758 = vunpack.c.h.b16 %v273
  %v1759 = vunpack.c.l.b16 %v274
  %v1760 = vunpack.c.h.b16 %v274
  %v1761 = vunpack.c.l.b16 %v275
  %v1762 = vunpack.c.h.b16 %v275
  %v1763 = vunpack.c.l.b16 %v276
  %v1764 = vunpack.c.h.b16 %v276
  %v1765 = vunpack.c.l.b16 %v277
  %v1766 = vunpack.c.h.b16 %v277
  %v1767 = vunpack.c.l.b16 %v278
  %v1768 = vunpack.c.h.b16 %v278
  %v1769 = vunpack.c.l.b16 %v279
  %v1770 = vunpack.c.h.b16 %v279
  %v1771 = vunpack.c.l.b16 %v280
  %v1772 = vunpack.c.h.b16 %v280
  %v1773 = vunpack.c.l.b16 %v281
  %v1774 = vunpack.c.h.b16 %v281
  %v1775 = vunpack.c.l.b16 %v282
  %v1776 = vunpack.c.h.b16 %v282
  %v1777 = vunpack.c.l.b16 %v283
  %v1778 = vunpack.c.h.b16 %v283
  %v1779 = vunpack.c.l.b16 %v284
  %v1780 = vunpack.c.h.b16 %v284
  %v1781 = vunpack.c.l.b16 %v285
  %v1782 = vunpack.c.h.b16 %v285
  %v1783 = vunpack.c.l.b16 %v286
  %v1784 = vunpack.c.h.b16 %v286
  %v1785 = vunpack.c.l.b16 %v287
  %v1786 = vunpack.c.h.b16 %v287
  %v1787 = vunpack.c.l.b16 %v288
  %v1788 = vunpack.c.h.b16 %v288
  %v1789 = vunpack.c.l.b16 %v289
  %v1790 = vunpack.c.h.b16 %v289
  %v1791 = vunpack.c.l.b16 %v290
  %v1792 = vunpack.c.h.b16 %v290
  %v1793 = vunpack.c.l.b16 %v291
  %v1794 = vunpack.c.h.b16 %v291
  %v1795 = vunpack.c.l.b16 %v292
  %v1796 = vunpack.c.h.b16 %v292
  %v1797 = vunpack.c.l.b16 %v293
  %v1798 = vunpack.c.h.b16 %v293
  %v1799 = vunpack.c.l.b16 %v294
  %v1800 = vunpack.c.h.b16 %v294
  %v1801 = vunpack.c.l.b16 %v295
  %v1802 = vunpack.c.h.b16 %v295
  %v1803 = vunpack.c.l.b16 %v296
  %v1804 = vunpack.c.h.b16 %v296
  %v1805 = vunpack.c.l.b16 %v297
  %v1806 = vunpack.c.h.b16 %v297
  %v1807 = vunpack.c.l.b16 %v298
  %v1808 = vunpack.c.h.b16 %v298
  %v1809 = vunpack.c.l.b16 %v299
  %v1810 = vunpack.c.h.b16 %v299
  %v1811 = vunpack.c.l.b16 %v300
  %v1812 = vunpack.c.h.b16 %v300
  %v1813 = vunpack.c.l.b16 %v301
  %v1814 = vunpack.c.h.b16 %v301
  %v1815 = vunpack.c.l.b16 %v302
  %v1816 = vunpack.c.h.b16 %v302
  %v1817 = vunpack.c.l.b16 %v303
  %v1818 = vunpack.c.h.b16 %v303
  %v1819 = vunpack.c.l.b16 %v304
  %v1820 = vunpack.c.h.b16 %v304
  %v1821 = vunpack.c.l.b16 %v305
  %v1822 = vunpack.c.h.b16 %v305
  %v1823 = vunpack.c.l.b16 %v306
  %v1824 = vunpack.c.h.b16 %v306
  %v1825 = vunpack.c.l.b16 %v307
  %v1826 = vunpack.c.h.b16 %v307
  %v1827 = vunpack.c.l.b16 %v308
  %v1828 = vunpack.c.h.b16 %v308
  %v1829 = vunpack.c.l.b16 %v309
  %v1830 = vunpack.c.h.b16 %v309
  %v1831 = vunpack.c.l.b16 %v310
  %v1832 = vunpack.c.h.b16 %v310
  %v1833 = vunpack.c.l.b16 %v311
  %v1834 = vunpack.c.h.b16 %v311
  %v1835 = vunpack.c.l.b16 %v312
  %v1836 = vunpack.c.h.b16 %v312
  %v1837 = vunpack.c.l.b16 %v313
  %v1838 = vunpack.c.h.b16 %v313
  %v1839 = vunpack.c.l.b16 %v314
  %v1840 = vunpack.c.h.b16 %v314
  %v1841 = vunpack.c.l.b16 %v315
  %v1842 = vunpack.c.h.b16 %v315
  %v1843 = vunpack.c.l.b16 %v316
  %v1844 = vunpack.c.h.b16 %v316
  %v1845 = vunpack.c.l.b16 %v317
  %v1846 = vunpack.c.h.b16 %v317
  %v1847 = vunpack.c.l.b16 %v318
  %v1848 = vunpack.c.h.b16 %v318
  %v1849 = vunpack.c.l.b16 %v319
  %v1850 = vunpack.c.h.b16 %v319
  %v1851 = vunpack.c.l.b16 %v320
  %v1852 = vunpack.c.h.b16 %v320
  %v1853 = vunpack.c.l.b16 %v321
  %v1854 = vunpack.c.h.b16 %v321
  %v1855 = vunpack.c.l.b16 %v322
  %v1856 = vunpack.c.h.b16 %v322
  %v1857 = vunpack.c.l.b16 %v323
  %v1858 = vunpack.c.h.b16 %v323
  %v1859 = vunpack.c.l.b16 %v324
  %v1860 = vunpack.c.h.b16 %v324
  %v1861 = vunpack.c.l.b16 %v325
  %v1862 = vunpack.c.h.b16 %v325
  %v1863 = vunpack.c.l.b16 %v326
  %v1864 = vunpack.c.h.b16 %v326
  %v1865 = vunpack.c.l.b16 %v327
  %v1866 = vunpack.c.h.b16 %v327
  %v1867 = vunpack.c.l.b16 %v328
  %v1868 = vunpack.c.h.b16 %v328
  %v1869 = vunpack.c.l.b16 %v329
  %v1870 = vunpack.c.h.b16 %v329
  %v1871 = vunpack.c.l.b16 %v330
  %v1872 = vunpack.c.h.b16 %v330
  %v1873 = vunpack.c.l.b16 %v331
  %v1874 = vunpack.c.h.b16 %v331
  %v1875 = vunpack.c.l.b16 %v332
  %v1876 = vunpack.c.h.b16 %v332
  %v1877 = vunpack.c.l.b16 %v333
  %v1878 = vunpack.c.h.b16 %v333
  %v1879 = vunpack.c.l.b16 %v334
  %v1880 = vunpack.c.h.b16 %v334
  %v1881 = vunpack.c.l.b16 %v335
  %v1882 = vunpack.c.h.b16 %v335
  %v1883 = vunpack.c.l.b16 %v336
  %v1884 = vunpack.c.h.b16 %v336
  %v1885 = vunpack.c.l.b16 %v337
  %v1886 = vunpack.c.h.b16 %v337
  %v1887 = vunpack.c.l.b16 %v338
  %v1888 = vunpack.c.h.b16 %v338
  %v1889 = vunpack.c.l.b16 %v339
  %v1890 = vunpack.c.h.b16 %v339
  %v1891 = vunpack.c.l.b16 %v340
  %v1892 = vunpack.c.h.b16 %v340
  %v1893 = vunpack.c.l.b16 %v341
  %v1894 = vunpack.c.h.b16 %v341
  %v1895 = vunpack.c.l.b16 %v342
  %v1896 = vunpack.c.h.b16 %v342
  %v1897 = vunpack.c.l.b16 %v343
  %v1898 = vunpack.c.h.b16 %v343
  %v1899 = vunpack.c.l.b16 %v344
  %v1900 = vunpack.c.h.b16 %v344
  %v1901 = vunpack.c.l.b16 %v345
  %v1902 = vunpack.c.h.b16 %v345
  %v1903 = vunpack.c.l.b16 %v346
  %v1904 = vunpack.c.h.b16 %v346
  %v1905 = vunpack.c.l.b16 %v347
  %v1906 = vunpack.c.h.b16 %v347
  %v1907 = vunpack.c.l.b16 %v348
  %v1908 = vunpack.c.h.b16 %v348
  %v1909 = vunpack.c.l.b16 %v349
  %v1910 = vunpack.c.h.b16 %v349
  %v1911 = vunpack.c.l.b16 %v350
  %v1912 = vunpack.c.h.b16 %v350
  %v1913 = vunpack.c.l.b16 %v351
  %v1914 = vunpack.c.h.b16 %v351
  %v1915 = vunpack.c.l.b16 %v352
  %v1916 = vunpack.c.h.b16 %v352
  %v1917 = vunpack.c.l.b16 %v353
  %v1918 = vunpack.c.h.b16 %v353
  %v1919 = vunpack.c.l.b16 %v354
  %v1920 = vunpack.c.h.b16 %v354
  %v1921 = vunpack.c.l.b16 %v355
  %v1922 = vunpack.c.h.b16 %v355
  %v1923 = vunpack.c.l.b16 %v356
  %v1924 = vunpack.c.h.b16 %v356
  %v1925 = vunpack.c.l.b16 %v357
  %v1926 = vunpack.c.h.b16 %v357
  %v1927 = vunpack.c.l.b16 %v358
  %v1928 = vunpack.c.h.b16 %v358
  %v1929 = vunpack.c.l.b16 %v359
  %v1930 = vunpack.c.h.b16 %v359
  %v1931 = vunpack.c.l.b16 %v360
  %v1932 = vunpack.c.h.b16 %v360
  %v1933 = vunpack.c.l.b16 %v361
  %v1934 = vunpack.c.h.b16 %v361
  %v1935 = vunpack.c.l.b16 %v362
  %v1936 = vunpack.c.h.b16 %v362
  %v1937 = vunpack.c.l.b16 %v363
  %v1938 = vunpack.c.h.b16 %v363
  %v1939 = vunpack.c.l.b16 %v364
  %v1940 = vunpack.c.h.b16 %v364
  %v1941 = vunpack.c.l.b16 %v365
  %v1942 = vunpack.c.h.b16 %v365
  %v1943 = vunpack.c.l.b16 %v366
  %v1944 = vunpack.c.h.b16 %v366
  %v1945 = vunpack.c.l.b16 %v367
  %v1946 = vunpack.c.h.b16 %v367
  %v1947 = vunpack.c.l.b16 %v368
  %v1948 = vunpack.c.h.b16 %v368
  %v1949 = vunpack.c.l.b16 %v369
  %v1950 = vunpack.c.h.b16 %v369
  %v1951 = vunpack.c.l.b16 %v370
  %v1952 = vunpack.c.h.b16 %v370
  %v1953 = vunpack.c.l.b16 %v371
  %v1954 = vunpack.c.h.b16 %v371
  %v1955 = vunpack.c.l.b16 %v372
  %v1956 = vunpack.c.h.b16 %v372
  %v1957 = vunpack.c.l.b16 %v373
  %v1958 = vunpack.c.h.b16 %v373
  %v1959 = vunpack.c.l.b16 %v374
  %v1960 = vunpack.c.h.b16 %v374
  %v1961 = vunpack.c.l.b16 %v375
  %v1962 = vunpack.c.h.b16 %v375
  %v1963 = vunpack.c.l.b16 %v376
  %v1964 = vunpack.c.h.b16 %v376
  %v1965 = vunpack.c.l.b16 %v377
  %v1966 = vunpack.c.h.b16 %v377
  %v1967 = vunpack.c.l.b16 %v378
  %v1968 = vunpack.c.h.b16 %v378
  %v1969 = vunpack.c.l.b16 %v379
  %v1970 = vunpack.c.h.b16 %v379
  %v1971 = vunpack.c.l.b16 %v380
  %v1972 = vunpack.c.h.b16 %v380
  %v1973 = vunpack.c.l.b16 %v381
  %v1974 = vunpack.c.h.b16 %v381
  %v1975 = vunpack.c.l.b16 %v382
  %v1976 = vunpack.c.h.b16 %v382
  %v1977 = vunpack.c.l.b16 %v383
  %v1978 = vunpack.c.h.b16 %v383
  %v1979 = vunpack.c.l.b16 %v384
  %v1980 = vunpack.c.h.b16 %v384
  %v1981 = vunpack.c.l.b16 %v385
  %v1982 = vunpack.c.h.b16 %v385
  %v1983 = vunpack.c.l.b16 %v386
  %v1984 = vunpack.c.h.b16 %v386
  %v1985 = vunpack.c.l.b16 %v387
  %v1986 = vunpack.c.h.b16 %v387
  %v1987 = vunpack.c.l.b16 %v388
  %v1988 = vunpack.c.h.b16 %v388
  %v1989 = vunpack.c.l.b16 %v389
  %v1990 = vunpack.c.h.b16 %v389
  %v1991 = vunpack.c.l.b16 %v390
  %v1992 = vunpack.c.h.b16 %v390
  %v1993 = vunpack.c.l.b16 %v391
  %v1994 = vunpack.c.h.b16 %v391
  %v1995 = vunpack.c.l.b16 %v392
  %v1996 = vunpack.c.h.b16 %v392
  %v1997 = vunpack.c.l.b16 %v393
  %v1998 = vunpack.c.h.b16 %v393
  %v1999 = vunpack.c.l.b16 %v394
  %v2000 = vunpack.c.h.b16 %v394
  %v2001 = vunpack.c.l.b16 %v395
  %v2002 = vunpack.c.h.b16 %v395
  %v2003 = vunpack.c.l.b16 %v396
  %v2004 = vunpack.c.h.b16 %v396
  %v2005 = vunpack.c.l.b16 %v397
  %v2006 = vunpack.c.h.b16 %v397
  %v2007 = vunpack.c.l.b16 %v398
  %v2008 = vunpack.c.h.b16 %v398
  %v2009 = vunpack.c.l.b16 %v399
  %v2010 = vunpack.c.h.b16 %v399
  %v2011 = vunpack.c.l.b16 %v400
  %v2012 = vunpack.c.h.b16 %v400
  %v2013 = vunpack.c.l.b16 %v401
  %v2014 = vunpack.c.h.b16 %v401
  %v2015 = vunpack.c.l.b16 %v402
  %v2016 = vunpack.c.h.b16 %v402
  %v2017 = vunpack.c.l.b16 %v403
  %v2018 = vunpack.c.h.b16 %v403
  %v2019 = vunpack.c.l.b16 %v404
  %v2020 = vunpack.c.h.b16 %v404
  %v2021 = vunpack.c.l.b16 %v405
  %v2022 = vunpack.c.h.b16 %v405
  %v2023 = vunpack.c.l.b16 %v406
  %v2024 = vunpack.c.h.b16 %v406
  %v2025 = vunpack.c.l.b16 %v407
  %v2026 = vunpack.c.h.b16 %v407
  %v2027 = vunpack.c.l.b16 %v408
  %v2028 = vunpack.c.h.b16 %v408
  %v2029 = vunpack.c.l.b16 %v409
  %v2030 = vunpack.c.h.b16 %v409
  %v2031 = vunpack.c.l.b16 %v410
  %v2032 = vunpack.c.h.b16 %v410
  %v2033 = vunpack.c.l.b16 %v411
  %v2034 = vunpack.c.h.b16 %v411
  %v2035 = vunpack.c.l.b16 %v412
  %v2036 = vunpack.c.h.b16 %v412
  %v2037 = vunpack.c.l.b16 %v413
  %v2038 = vunpack.c.h.b16 %v413
  %v2039 = vunpack.c.l.b16 %v414
  %v2040 = vunpack.c.h.b16 %v414
  %v2041 = vunpack.c.l.b16 %v415
  %v2042 = vunpack.c.h.b16 %v415
  %v2043 = vunpack.c.l.b16 %v416
  %v2044 = vunpack.c.h.b16 %v416
  %v2045 = vunpack.c.l.b16 %v417
  %v2046 = vunpack.c.h.b16 %v417
  %v2047 = vunpack.c.l.b16 %v418
  %v2048 = vunpack.c.h.b16 %v418
  %v2049 = vunpack.c.l.b16 %v419
  %v2050 = vunpack.c.h.b16 %v419
  %v2051 = vunpack.c.l.b16 %v420
  %v2052 = vunpack.c.h.b16 %v420
  %v2053 = vunpack.c.l.b16 %v421
  %v2054 = vunpack.c.h.b16 %v421
  %v2055 = vunpack.c.l.b16 %v422
  %v2056 = vunpack.c.h.b16 %v422
  %v2057 = vunpack.c.l.b16 %v423
  %v2058 = vunpack.c.h.b16 %v423
  %v2059 = vunpack.c.l.b16 %v424
  %v2060 = vunpack.c.h.b16 %v424
  %v2061 = vunpack.c.l.b16 %v425
  %v2062 = vunpack.c.h.b16 %v425
  %v2063 = vunpack.c.l.b16 %v426
  %v2064 = vunpack.c.h.b16 %v426
  %v2065 = vunpack.c.l.b16 %v427
  %v2066 = vunpack.c.h.b16 %v427
  %v2067 = vunpack.c.l.b16 %v428
  %v2068 = vunpack.c.h.b16 %v428
  %v2069 = vunpack.c.l.b16 %v429
  %v2070 = vunpack.c.h.b16 %v429
  %v2071 = vunpack.c.l.b16 %v430
  %v2072 = vunpack.c.h.b16 %v430
  %v2073 = vunpack.c.l.b16 %v431
  %v2074 = vunpack.c.h.b16 %v431
  %v2075 = vunpack.c.l.b16 %v432
  %v2076 = vunpack.c.h.b16 %v432
  %v2077 = vunpack.c.l.b16 %v433
  %v2078 = vunpack.c.h.b16 %v433
  %v2079 = vunpack.c.l.b16 %v434
  %v2080 = vunpack.c.h.b16 %v434
  %v2081 = vunpack.c.l.b16 %v435
  %v2082 = vunpack.c.h.b16 %v435
  %v2083 = vunpack.c.l.b16 %v436
  %v2084 = vunpack.c.h.b16 %v436
  %v2085 = vunpack.c.l.b16 %v437
  %v2086 = vunpack.c.h.b16 %v437
  %v2087 = vunpack.c.l.b16 %v438
  %v2088 = vunpack.c.h.b16 %v438
  %v2089 = vunpack.c.l.b16 %v439
  %v2090 = vunpack.c.h.b16 %v439
  %v2091 = vunpack.c.l.b16 %v440
  %v2092 = vunpack.c.h.b16 %v440
  %v2093 = vunpack.c.l.b16 %v441
  %v2094 = vunpack.c.h.b16 %v441
  %v2095 = vunpack.c.l.b16 %v442
  %v2096 = vunpack.c.h.b16 %v442
  %v2097 = vunpack.c.l.b16 %v443
  %v2098 = vunpack.c.h.b16 %v443
  %v2099 = vunpack.c.l.b16 %v444
  %v2100 = vunpack.c.h.b16 %v444
  %v2101 = vunpack.c.l.b16 %v445
  %v2102 = vunpack.c.h.b16 %v445
  %v2103 = vunpack.c.l.b16 %v446
  %v2104 = vunpack.c.h.b16 %v446
  %v2105 = vunpack.c.l.b16 %v447
  %v2106 = vunpack.c.h.b16 %v447
  %v2107 = vunpack.c.l.b16 %v448
  %v2108 = vunpack.c.h.b16 %v448
  %v2109 = vunpack.c.l.b16 %v449
  %v2110 = vunpack.c.h.b16 %v449
  %v2111 = vunpack.c.l.b16 %v450
  %v2112 = vunpack.c.h.b16 %v450
  %v2113 = vunpack.c.l.b16 %v451
  %v2114 = vunpack.c.h.b16 %v451
  %v2115 = vunpack.c.l.b16 %v452
  %v2116 = vunpack.c.h.b16 %v452
  %v2117 = vunpack.c.l.b16 %v453
  %v2118 = vunpack.c.h.b16 %v453
  %v2119 = vunpack.c.l.b16 %v454
  %v2120 = vunpack.c.h.b16 %v454
  %v2121 = vunpack.c.l.b16 %v455
  %v2122 = vunpack.c.h.b16 %v455
  %v2123 = vunpack.c.l.b16 %v456
  %v2124 = vunpack.c.h.b16 %v456
  %v2125 = vunpack.c.l.b16 %v457
  %v2126 = vunpack.c.h.b16 %v457
  %v2127 = vunpack.c.l.b16 %v458
  %v2128 = vunpack.c.h.b16 %v458
  %v2129 = vunpack.c.l.b16 %v459
  %v2130 = vunpack.c.h.b16 %v459
  %v2131 = vunpack.c.l.b16 %v460
  %v2132 = vunpack.c.h.b16 %v460
  %v2133 = vunpack.c.l.b16 %v461
  %v2134 = vunpack.c.h.b16 %v461
  %v2135 = vunpack.c.l.b16 %v462
  %v2136 = vunpack.c.h.b16 %v462
  %v2137 = vunpack.c.l.b16 %v463
  %v2138 = vunpack.c.h.b16 %v463
  %v2139 = vunpack.c.l.b16 %v464
  %v2140 = vunpack.c.h.b16 %v464
  %v2141 = vunpack.c.l.b16 %v465
  %v2142 = vunpack.c.h.b16 %v465
  %v2143 = vunpack.c.l.b16 %v466
  %v2144 = vunpack.c.h.b16 %v466
  %v2145 = vunpack.c.l.b16 %v467
  %v2146 = vunpack.c.h.b16 %v467
  %v2147 = vunpack.c.l.b16 %v468
  %v2148 = vunpack.c.h.b16 %v468
  %v2149 = vunpack.c.l.b16 %v469
  %v2150 = vunpack.c.h.b16 %v469
  %v2151 = vunpack.c.l.b16 %v470
  %v2152 = vunpack.c.h.b16 %v470
  %v2153 = vunpack.c.l.b16 %v471
  %v2154 = vunpack.c.h.b16 %v471
  %v2155 = vunpack.c.l.b16 %v472
  %v2156 = vunpack.c.h.b16 %v472
  %v2157 = vunpack.c.l.b16 %v473
  %v2158 = vunpack.c.h.b16 %v473
  %v2159 = vunpack.c.l.b16 %v474
  %v2160 = vunpack.c.h.b16 %v474
  %v2161 = vunpack.c.l.b16 %v475
  %v2162 = vunpack.c.h.b16 %v475
  %v2163 = vunpack.c.l.b16 %v476
  %v2164 = vunpack.c.h.b16 %v476
  %v2165 = vunpack.c.l.b16 %v477
  %v2166 = vunpack.c.h.b16 %v477
  %v2167 = vunpack.c.l.b16 %v478
  %v2168 = vunpack.c.h.b16 %v478
  %v2169 = vunpack.c.l.b16 %v479
  %v2170 = vunpack.c.h.b16 %v479
  %v2171 = vunpack.c.l.b16 %v480
  %v2172 = vunpack.c.h.b16 %v480
  %v2173 = vunpack.c.l.b16 %v481
  %v2174 = vunpack.c.h.b16 %v481
  %v2175 = vunpack.c.l.b16 %v482
  %v2176 = vunpack.c.h.b16 %v482
  %v2177 = vunpack.c.l.b16 %v483
  %v2178 = vunpack.c.h.b16 %v483
  %v2179 = vunpack.c.l.b16 %v484
  %v2180 = vunpack.c.h.b16 %v484
  %v2181 = vunpack.c.l.b16 %v485
  %v2182 = vunpack.c.h.b16 %v485
  %v2183 = vunpack.c.l.b16 %v486
  %v2184 = vunpack.c.h.b16 %v486
  %v2185 = vunpack.c.l.b16 %v487
  %v2186 = vunpack.c.h.b16 %v487
  %v2187 = vunpack.c.l.b16 %v488
  %v2188 = vunpack.c.h.b16 %v488
  %v2189 = vunpack.c.l.b16 %v489
  %v2190 = vunpack.c.h.b16 %v489
  %v2191 = vunpack.c.l.b16 %v490
  %v2192 = vunpack.c.h.b16 %v490
  %v2193 = vunpack.c.l.b16 %v491
  %v2194 = vunpack.c.h.b16 %v491
  %v2195 = vunpack.c.l.b16 %v492
  %v2196 = vunpack.c.h.b16 %v492
  %v2197 = vunpack.c.l.b16 %v493
  %v2198 = vunpack.c.h.b16 %v493
  %v2199 = vunpack.c.l.b16 %v494
  %v2200 = vunpack.c.h.b16 %v494
  %v2201 = vunpack.c.l.b16 %v495
  %v2202 = vunpack.c.h.b16 %v495
  %v2203 = vunpack.c.l.b16 %v496
  %v2204 = vunpack.c.h.b16 %v496
  %v2205 = vunpack.c.l.b16 %v497
  %v2206 = vunpack.c.h.b16 %v497
  %v2207 = vunpack.c.l.b16 %v498
  %v2208 = vunpack.c.h.b16 %v498
  %v2209 = vunpack.c.l.b16 %v499
  %v2210 = vunpack.c.h.b16 %v499
  %v2211 = vunpack.c.l.b16 %v500
  %v2212 = vunpack.c.h.b16 %v500
  %v2213 = vunpack.c.l.b16 %v501
  %v2214 = vunpack.c.h.b16 %v501
  %v2215 = vunpack.c.l.b16 %v502
  %v2216 = vunpack.c.h.b16 %v502
  %v2217 = vunpack.c.l.b16 %v503
  %v2218 = vunpack.c.h.b16 %v503
  %v2219 = vunpack.c.l.b16 %v504
  %v2220 = vunpack.c.h.b16 %v504
  %v2221 = vunpack.c.l.b16 %v505
  %v2222 = vunpack.c.h.b16 %v505
  %v2223 = vunpack.c.l.b16 %v506
  %v2224 = vunpack.c.h.b16 %v506
  %v2225 = vunpack.c.l.b16 %v507
  %v2226 = vunpack.c.h.b16 %v507
  %v2227 = vunpack.c.l.b16 %v508
  %v2228 = vunpack.c.h.b16 %v508
  %v2229 = vunpack.c.l.b16 %v509
  %v2230 = vunpack.c.h.b16 %v509
  %v2231 = vunpack.c.l.b16 %v510
  %v2232 = vunpack.c.h.b16 %v510
  %v2233 = vunpack.c.l.b16 %v511
  %v2234 = vunpack.c.h.b16 %v511
  %v2235 = vunpack.c.l.b16 %v512
  %v2236 = vunpack.c.h.b16 %v512
  %v2237 = vunpack.c.l.b16 %v513
  %v2238 = vunpack.c.h.b16 %v513
  %v2239 = vunpack.c.l.b16 %v514
  %v2240 = vunpack.c.h.b16 %v514
  %v2241 = vunpack.c.l.b16 %v515
  %v2242 = vunpack.c.h.b16 %v515
  %v2243 = vunpack.c.l.b16 %v516
  %v2244 = vunpack.c.h.b16 %v516
  %v2245 = vunpack.c.l.b16 %v517
  %v2246 = vunpack.c.h.b16 %v517
  %v2247 = vunpack.c.l.b16 %v518
  %v2248 = vunpack.c.h.b16 %v518
  %v2249 = vunpack.c.l.b16 %v519
  %v2250 = vunpack.c.h.b16 %v519
  %v2251 = vunpack.c.l.b16 %v520
  %v2252 = vunpack.c.h.b16 %v520
  %v2253 = vunpack.c.l.b16 %v521
  %v2254 = vunpack.c.h.b16 %v521
  %v2255 = vunpack.c.l.b16 %v522
  %v2256 = vunpack.c.h.b16 %v522
  %v2257 = vunpack.c.l.b16 %v523
  %v2258 = vunpack.c.h.b16 %v523
  %v2259 = vunpack.c.l.b16 %v524
  %v2260 = vunpack.c.h.b16 %v524
  %v2261 = vunpack.c.l.b16 %v525
  %v2262 = vunpack.c.h.b16 %v525
  %v2263 = vunpack.c.l.b16 %v526
  %v2264 = vunpack.c.h.b16 %v526
  %v2265 = vunpack.c.l.b16 %v527
  %v2266 = vunpack.c.h.b16 %v527
  %v2267 = vunpack.c.l.b16 %v528
  %v2268 = vunpack.c.h.b16 %v528
  %v2269 = vunpack.c.l.b16 %v529
  %v2270 = vunpack.c.h.b16 %v529
  %v2271 = vunpack.c.l.b16 %v530
  %v2272 = vunpack.c.h.b16 %v530
  %v2273 = vunpack.c.l.b16 %v531
  %v2274 = vunpack.c.h.b16 %v531
  %v2275 = vunpack.c.l.b16 %v532
  %v2276 = vunpack.c.h.b16 %v532
  %v2277 = vunpack.c.l.b16 %v533
  %v2278 = vunpack.c.h.b16 %v533
  %v2279 = vunpack.c.l.b16 %v534
  %v2280 = vunpack.c.h.b16 %v534
  %v2281 = vunpack.c.l.b16 %v535
  %v2282 = vunpack.c.h.b16 %v535
  %v2283 = vunpack.c.l.b16 %v536
  %v2284 = vunpack.c.h.b16 %v536
  %v2285 = vunpack.c.l.b16 %v537
  %v2286 = vunpack.c.h.b16 %v537
  %v2287 = vunpack.c.l.b16 %v538
  %v2288 = vunpack.c.h.b16 %v538
  %v2289 = vunpack.c.l.b16 %v539
  %v2290 = vunpack.c.h.b16 %v539
  %v2291 = vunpack.c.l.b16 %v540
  %v2292 = vunpack.c.h.b16 %v540
  %v2293 = vunpack.c.l.b16 %v541
  %v2294 = vunpack.c.h.b16 %v541
  %v2295 = vunpack.c.l.b16 %v542
  %v2296 = vunpack.c.h.b16 %v542
  %v2297 = vunpack.c.l.b16 %v543
  %v2298 = vunpack.c.h.b16 %v543
  %v2299 = vunpack.c.l.b16 %v544
  %v2300 = vunpack.c.h.b16 %v544
  %v2301 = vunpack.c.l.b16 %v545
  %v2302 = vunpack.c.h.b16 %v545
  %v2303 = vunpack.c.l.b16 %v546
  %v2304 = vunpack.c.h.b16 %v546
  %v2305 = vunpack.c.l.b16 %v547
  %v2306 = vunpack.c.h.b16 %v547
  %v2307 = vunpack.c.l.b16 %v548
  %v2308 = vunpack.c.h.b16 %v548
  %v2309 = vunpack.c.l.b16 %v549
  %v2310 = vunpack.c.h.b16 %v549
  %v2311 = vunpack.c.l.b16 %v550
  %v2312 = vunpack.c.h.b16 %v550
  %v2313 = vunpack.c.l.b16 %v551
  %v2314 = vunpack.c.h.b16 %v551
  %v2315 = vunpack.c.l.b16 %v552
  %v2316 = vunpack.c.h.b16 %v552
  %v2317 = vunpack.c.l.b16 %v553
  %v2318 = vunpack.c.h.b16 %v553
  %v2319 = vunpack.c.l.b16 %v554
  %v2320 = vunpack.c.h.b16 %v554
  %v2321 = vunpack.c.l.b16 %v555
  %v2322 = vunpack.c.h.b16 %v555
  %v2323 = vunpack.c.l.b16 %v556
  %v2324 = vunpack.c.h.b16 %v556
  %v2325 = vunpack.c.l.b16 %v557
  %v2326 = vunpack.c.h.b16 %v557
  %v2327 = vunpack.c.l.b16 %v558
  %v2328 = vunpack.c.h.b16 %v558
  %v2329 = vunpack.c.l.b16 %v559
  %v2330 = vunpack.c.h.b16 %v559
  %v2331 = vunpack.c.l.b16 %v560
  %v2332 = vunpack.c.h.b16 %v560
  %v2333 = vunpack.c.l.b16 %v561
  %v2334 = vunpack.c.h.b16 %v561
  %v2335 = vunpack.c.l.b16 %v562
  %v2336 = vunpack.c.h.b16 %v562
  %v2337 = vunpack.c.l.b16 %v563
  %v2338 = vunpack.c.h.b16 %v563
  %v2339 = vunpack.c.l.b16 %v564
  %v2340 = vunpack.c.h.b16 %v564
  %v2341 = vunpack.c.l.b16 %v565
  %v2342 = vunpack.c.h.b16 %v565
  %v2343 = vunpack.c.l.b16 %v566
  %v2344 = vunpack.c.h.b16 %v566
  %v2345 = vunpack.c.l.b16 %v567
  %v2346 = vunpack.c.h.b16 %v567
  %v2347 = vunpack.c.l.b16 %v568
  %v2348 = vunpack.c.h.b16 %v568
  %v2349 = vunpack.c.l.b16 %v569
  %v2350 = vunpack.c.h.b16 %v569
  %v2351 = vunpack.c.l.b16 %v570
  %v2352 = vunpack.c.h.b16 %v570
  %v2353 = vunpack.c.l.b16 %v571
  %v2354 = vunpack.c.h.b16 %v571
  %v2355 = vunpack.c.l.b16 %v572
  %v2356 = vunpack.c.h.b16 %v572
  %v2357 = vunpack.c.l.b16 %v573
  %v2358 = vunpack.c.h.b16 %v573
  %v2359 = vunpack.c.l.b16 %v574
  %v2360 = vunpack.c.h.b16 %v574
  %v2361 = vunpack.c.l.b16 %v575
  %v2362 = vunpack.c.h.b16 %v575
  %v2363 = vunpack.c.l.b16 %v576
  %v2364 = vunpack.c.h.b16 %v576
  %v2365 = vunpack.c.l.b16 %v577
  %v2366 = vunpack.c.h.b16 %v577
  %v2367 = vunpack.c.l.b16 %v578
  %v2368 = vunpack.c.h.b16 %v578
  %v2369 = vunpack.c.l.b16 %v579
  %v2370 = vunpack.c.h.b16 %v579
  %v2371 = vunpack.c.l.b16 %v580
  %v2372 = vunpack.c.h.b16 %v580
  %v2373 = vunpack.c.l.b16 %v581
  %v2374 = vunpack.c.h.b16 %v581
  %v2375 = vunpack.c.l.b16 %v582
  %v2376 = vunpack.c.h.b16 %v582
  %v2377 = vunpack.c.l.b16 %v583
  %v2378 = vunpack.c.h.b16 %v583
  %v2379 = vunpack.c.l.b16 %v584
  %v2380 = vunpack.c.h.b16 %v584
  %v2381 = vunpack.c.l.b16 %v585
  %v2382 = vunpack.c.h.b16 %v585
  %v2383 = vunpack.c.l.b16 %v586
  %v2384 = vunpack.c.h.b16 %v586
  %v2385 = vunpack.c.l.b16 %v587
  %v2386 = vunpack.c.h.b16 %v587
  %v2387 = vunpack.c.l.b16 %v588
  %v2388 = vunpack.c.h.b16 %v588
  %v2389 = vunpack.c.l.b16 %v589
  %v2390 = vunpack.c.h.b16 %v589
  %v2391 = vunpack.c.l.b16 %v590
  %v2392 = vunpack.c.h.b16 %v590
  %v2393 = vunpack.c.l.b16 %v591
  %v2394 = vunpack.c.h.b16 %v591
  %v2395 = vunpack.c.l.b16 %v592
  %v2396 = vunpack.c.h.b16 %v592
  %v2397 = vunpack.c.l.b16 %v593
  %v2398 = vunpack.c.h.b16 %v593
  %v2399 = vunpack.c.l.b16 %v594
  %v2400 = vunpack.c.h.b16 %v594
  %v2401 = vunpack.c.l.b16 %v595
  %v2402 = vunpack.c.h.b16 %v595
  %v2403 = vunpack.c.l.b16 %v596
  %v2404 = vunpack.c.h.b16 %v596
  %v2405 = vunpack.c.l.b16 %v597
  %v2406 = vunpack.c.h.b16 %v597
  %v2407 = vunpack.c.l.b16 %v598
  %v2408 = vunpack.c.h.b16 %v598
  %v2409 = vunpack.c.l.b16 %v599
  %v2410 = vunpack.c.h.b16 %v599
  %v2411 = vunpack.c.l.b16 %v600
  %v2412 = vunpack.c.h.b16 %v600
  %v2413 = vunpack.c.l.b16 %v601
  %v2414 = vunpack.c.h.b16 %v601
  %v2415 = vunpack.c.l.b16 %v602
  %v2416 = vunpack.c.h.b16 %v602
  %v2417 = vunpack.c.l.b16 %v603
  %v2418 = vunpack.c.h.b16 %v603
  %v2419 = vunpack.c.l.b16 %v604
  %v2420 = vunpack.c.h.b16 %v604
  %v2421 = vunpack.c.l.b16 %v605
  %v2422 = vunpack.c.h.b16 %v605
  %v2423 = vunpack.c.l.b16 %v606
  %v2424 = vunpack.c.h.b16 %v606
  %v2425 = vunpack.c.l.b16 %v607
  %v2426 = vunpack.c.h.b16 %v607
  %v2427 = vunpack.c.l.b16 %v608
  %v2428 = vunpack.c.h.b16 %v608
  %v2429 = vpack.c.b16 %v1283, %v1277
  %v2430 = vpack.c.b16 %v1284, %v1278
  %v2431 = vpack.c.b16 %v1285, %v1279
  %v2432 = vpack.c.b16 %v1286, %v1280
  %v2433 = vpack.c.b16 %v1287, %v1281
  %v2434 = vpack.c.b16 %v1288, %v1282
  %v2435 = vpack.c.b16 %v1295, %v1289
  %v2436 = vpack.c.b16 %v1296, %v1290
  %v2437 = vpack.c.b16 %v1297, %v1291
  %v2438 = vpack.c.b16 %v1298, %v1292
  %v2439 = vpack.c.b16 %v1299, %v1293
  %v2440 = vpack.c.b16 %v1300, %v1294
  %v2441 = vpack.c.b16 %v1307, %v1301
  %v2442 = vpack.c.b16 %v1308, %v1302
  %v2443 = vpack.c.b16 %v1309, %v1303
  %v2444 = vpack.c.b16 %v1310, %v1304
  %v2445 = vpack.c.b16 %v1311, %v1305
  %v2446 = vpack.c.b16 %v1312, %v1306
  %v2447 = vpack.c.b16 %v1319, %v1313
  %v2448 = vpack.c.b16 %v1320, %v1314
  %v2449 = vpack.c.b16 %v1321, %v1315
  %v2450 = vpack.c.b16 %v1322, %v1316
  %v2451 = vpack.c.b16 %v1323, %v1317
  %v2452 = vpack.c.b16 %v1324, %v1318
  %v2453 = vpack.c.b16 %v1331, %v1325
  %v2454 = vpack.c.b16 %v1332, %v1326
  %v2455 = vpack.c.b16 %v1333, %v1327
  %v2456 = vpack.c.b16 %v1334, %v1328
  %v2457 = vpack.c.b16 %v1335, %v1329
  %v2458 = vpack.c.b16 %v1336, %v1330
  %v2459 = vpack.c.b16 %v1343, %v1337
  %v2460 = vpack.c.b16 %v1344, %v1338
  %v2461 = vpack.c.b16 %v1345, %v1339
  %v2462 = vpack.c.b16 %v1346, %v1340
  %v2463 = vpack.c.b16 %v1347, %v1341
  %v2464 = vpack.c.b16 %v1348, %v1342
  %v2465 = vpack.c.b16 %v1355, %v1349
  %v2466 = vpack.c.b16 %v1356, %v1350
  %v2467 = vpack.c.b16 %v1357, %v1351
  %v2468 = vpack.c.b16 %v1358, %v1352
  %v2469 = vpack.c.b16 %v1359, %v1353
  %v2470 = vpack.c.b16 %v1360, %v1354
  %v2471 = vpack.c.b16 %v1367, %v1361
  %v2472 = vpack.c.b16 %v1368, %v1362
  %v2473 = vpack.c.b16 %v1369, %v1363
  %v2474 = vpack.c.b16 %v1370, %v1364
  %v2475 = vpack.c.b16 %v1371, %v1365
  %v2476 = vpack.c.b16 %v1372, %v1366
  %v2477 = vpack.c.b16 %v1379, %v1373
  %v2478 = vpack.c.b16 %v1380, %v1374
  %v2479 = vpack.c.b16 %v1381, %v1375
  %v2480 = vpack.c.b16 %v1382, %v1376
  %v2481 = vpack.c.b16 %v1383, %v1377
  %v2482 = vpack.c.b16 %v1384, %v1378
  %v2483 = vpack.c.b16 %v1391, %v1385
  %v2484 = vpack.c.b16 %v1392, %v1386
  %v2485 = vpack.c.b16 %v1393, %v1387
  %v2486 = vpack.c.b16 %v1394, %v1388
  %v2487 = vpack.c.b16 %v1395, %v1389
  %v2488 = vpack.c.b16 %v1396, %v1390
  %v2489 = vpack.c.b16 %v1403, %v1397
  %v2490 = vpack.c.b16 %v1404, %v1398
  %v2491 = vpack.c.b16 %v1405, %v1399
  %v2492 = vpack.c.b16 %v1406, %v1400
  %v2493 = vpack.c.b16 %v1407, %v1401
  %v2494 = vpack.c.b16 %v1408, %v1402
  %v2495 = vpack.c.b16 %v1415, %v1409
  %v2496 = vpack.c.b16 %v1416, %v1410
  %v2497 = vpack.c.b16 %v1417, %v1411
  %v2498 = vpack.c.b16 %v1418, %v1412
  %v2499 = vpack.c.b16 %v1419, %v1413
  %v2500 = vpack.c.b16 %v1420, %v1414
  %v2501 = vpack.c.b16 %v1427, %v1421
  %v2502 = vpack.c.b16 %v1428, %v1422
  %v2503 = vpack.c.b16 %v1429, %v1423
  %v2504 = vpack.c.b16 %v1430, %v1424
  %v2505 = vpack.c.b16 %v1431, %v1425
  %v2506 = vpack.c.b16 %v1432, %v1426
  %v2507 = vpack.c.b16 %v1439, %v1433
  %v2508 = vpack.c.b16 %v1440, %v1434
  %v2509 = vpack.c.b16 %v1441, %v1435
  %v2510 = vpack.c.b16 %v1442, %v1436
  %v2511 = vpack.c.b16 %v1443, %v1437
  %v2512 = vpack.c.b16 %v1444, %v1438
  %v2513 = vpack.c.b16 %v1451, %v1445
  %v2514 = vpack.c.b16 %v1452, %v1446
  %v2515 = vpack.c.b16 %v1453, %v1447
  %v2516 = vpack.c.b16 %v1454, %v1448
  %v2517 = vpack.c.b16 %v1455, %v1449
  %v2518 = vpack.c.b16 %v1456, %v1450
  %v2519 = vpack.c.b16 %v1463, %v1457
  %v2520 = vpack.c.b16 %v1464, %v1458
  %v2521 = vpack.c.b16 %v1465, %v1459
  %v2522 = vpack.c.b16 %v1466, %v1460
  %v2523 = vpack.c.b16 %v1467, %v1461
  %v2524 = vpack.c.b16 %v1468, %v1462
  %v2525 = vpack.c.b16 %v1475, %v1469
  %v2526 = vpack.c.b16 %v1476, %v1470
  %v2527 = vpack.c.b16 %v1477, %v1471
  %v2528 = vpack.c.b16 %v1478, %v1472
  %v2529 = vpack.c.b16 %v1479, %v1473
  %v2530 = vpack.c.b16 %v1480, %v1474
  %v2531 = vpack.c.b16 %v1487, %v1481
  %v2532 = vpack.c.b16 %v1488, %v1482
  %v2533 = vpack.c.b16 %v1489, %v1483
  %v2534 = vpack.c.b16 %v1490, %v1484
  %v2535 = vpack.c.b16 %v1491, %v1485
  %v2536 = vpack.c.b16 %v1492, %v1486
  %v2537 = vpack.c.b16 %v1499, %v1493
  %v2538 = vpack.c.b16 %v1500, %v1494
  %v2539 = vpack.c.b16 %v1501, %v1495
  %v2540 = vpack.c.b16 %v1502, %v1496
  %v2541 = vpack.c.b16 %v1503, %v1497
  %v2542 = vpack.c.b16 %v1504, %v1498
  %v2543 = vpack.c.b16 %v1511, %v1505
  %v2544 = vpack.c.b16 %v1512, %v1506
  %v2545 = vpack.c.b16 %v1513, %v1507
  %v2546 = vpack.c.b16 %v1514, %v1508
  %v2547 = vpack.c.b16 %v1515, %v1509
  %v2548 = vpack.c.b16 %v1516, %v1510
  %v2549 = vpack.c.b16 %v1523, %v1517
  %v2550 = vpack.c.b16 %v1524, %v1518
  %v2551 = vpack.c.b16 %v1525, %v1519
  %v2552 = vpack.c.b16 %v1526, %v1520
  %v2553 = vpack.c.b16 %v1527, %v1521
  %v2554 = vpack.c.b16 %v1528, %v1522
  %v2555 = vpack.c.b16 %v1535, %v1529
  %v2556 = vpack.c.b16 %v1536, %v1530
  %v2557 = vpack.c.b16 %v1537, %v1531
  %v2558 = vpack.c.b16 %v1538, %v1532
  %v2559 = vpack.c.b16 %v1539, %v1533
  %v2560 = vpack.c.b16 %v1540, %v1534
  %v2561 = vpack.c.b16 %v1547, %v1541
  %v2562 = vpack.c.b16 %v1548, %v1542
  %v2563 = vpack.c.b16 %v1549, %v1543
  %v2564 = vpack.c.b16 %v1550, %v1544
  %v2565 = vpack.c.b16 %v1551, %v1545
  %v2566 = vpack.c.b16 %v1552, %v1546
  %v2567 = vpack.c.b16 %v1559, %v1553
  %v2568 = vpack.c.b16 %v1560, %v1554
  %v2569 = vpack.c.b16 %v1561, %v1555
  %v2570 = vpack.c.b16 %v1562, %v1556
  %v2571 = vpack.c.b16 %v1563, %v1557
  %v2572 = vpack.c.b16 %v1564, %v1558
  %v2573 = vpack.c.b16 %v1571, %v1565
  %v2574 = vpack.c.b16 %v1572, %v1566
  %v2575 = vpack.c.b16 %v1573, %v1567
  %v2576 = vpack.c.b16 %v1574, %v1568
  %v2577 = vpack.c.b16 %v1575, %v1569
  %v2578 = vpack.c.b16 %v1576, %v1570
  %v2579 = vpack.c.b16 %v1583, %v1577
  %v2580 = vpack.c.b16 %v1584, %v1578
  %v2581 = vpack.c.b16 %v1585, %v1579
  %v2582 = vpack.c.b16 %v1586, %v1580
  %v2583 = vpack.c.b16 %v1587, %v1581
  %v2584 = vpack.c.b16 %v1588, %v1582
  %v2585 = vpack.c.b16 %v1595, %v1589
  %v2586 = vpack.c.b16 %v1596, %v1590
  %v2587 = vpack.c.b16 %v1597, %v1591
  %v2588 = vpack.c.b16 %v1598, %v1592
  %v2589 = vpack.c.b16 %v1599, %v1593
  %v2590 = vpack.c.b16 %v1600, %v1594
  %v2591 = vpack.c.b16 %v1607, %v1601
  %v2592 = vpack.c.b16 %v1608, %v1602
  %v2593 = vpack.c.b16 %v1609, %v1603
  %v2594 = vpack.c.b16 %v1610, %v1604
  %v2595 = vpack.c.b16 %v1611, %v1605
  %v2596 = vpack.c.b16 %v1612, %v1606
  %v2597 = vpack.c.b16 %v1619, %v1613
  %v2598 = vpack.c.b16 %v1620, %v1614
  %v2599 = vpack.c.b16 %v1621, %v1615
  %v2600 = vpack.c.b16 %v1622, %v1616
  %v2601 = vpack.c.b16 %v1623, %v1617
  %v2602 = vpack.c.b16 %v1624, %v1618
  %v2603 = vpack.c.b16 %v1631, %v1625
  %v2604 = vpack.c.b16 %v1632, %v1626
  %v2605 = vpack.c.b16 %v1633, %v1627
  %v2606 = vpack.c.b16 %v1634, %v1628
  %v2607 = vpack.c.b16 %v1635, %v1629
  %v2608 = vpack.c.b16 %v1636, %v1630
  %v2609 = vpack.c.b16 %v1643, %v1637
  %v2610 = vpack.c.b16 %v1644, %v1638
  %v2611 = vpack.c.b16 %v1645, %v1639
  %v2612 = vpack.c.b16 %v1646, %v1640
  %v2613 = vpack.c.b16 %v1647, %v1641
  %v2614 = vpack.c.b16 %v1648, %v1642
  %v2615 = vpack.c.b16 %v1655, %v1649
  %v2616 = vpack.c.b16 %v1656, %v1650
  %v2617 = vpack.c.b16 %v1657, %v1651
  %v2618 = vpack.c.b16 %v1658, %v1652
  %v2619 = vpack.c.b16 %v1659, %v1653
  %v2620 = vpack.c.b16 %v1660, %v1654
  %v2621 = vpack.c.b16 %v1667, %v1661
  %v2622 = vpack.c.b16 %v1668, %v1662
  %v2623 = vpack.c.b16 %v1669, %v1663
  %v2624 = vpack.c.b16 %v1670, %v1664
  %v2625 = vpack.c.b16 %v1671, %v1665
  %v2626 = vpack.c.b16 %v1672, %v1666
  %v2627 = vpack.c.b16 %v1679, %v1673
  %v2628 = vpack.c.b16 %v1680, %v1674
  %v2629 = vpack.c.b16 %v1681, %v1675
  %v2630 = vpack.c.b16 %v1682, %v1676
  %v2631 = vpack.c.b16 %v1683, %v1677
  %v2632 = vpack.c.b16 %v1684, %v1678
  %v2633 = vpack.c.b16 %v1691, %v1685
  %v2634 = vpack.c.b16 %v1692, %v1686
  %v2635 = vpack.c.b16 %v1693, %v1687
  %v2636 = vpack.c.b16 %v1694, %v1688
  %v2637 = vpack.c.b16 %v1695, %v1689
  %v2638 = vpack.c.b16 %v1696, %v1690
  %v2639 = vpack.c.b16 %v1703, %v1697
  %v2640 = vpack.c.b16 %v1704, %v1698
  %v2641 = vpack.c.b16 %v1705, %v1699
  %v2642 = vpack.c.b16 %v1706, %v1700
  %v2643 = vpack.c.b16 %v1707, %v1701
  %v2644 = vpack.c.b16 %v1708, %v1702
  %v2645 = vpack.c.b16 %v1715, %v1709
  %v2646 = vpack.c.b16 %v1716, %v1710
  %v2647 = vpack.c.b16 %v1717, %v1711
  %v2648 = vpack.c.b16 %v1718, %v1712
  %v2649 = vpack.c.b16 %v1719, %v1713
  %v2650 = vpack.c.b16 %v1720, %v1714
  %v2651 = vpack.c.b16 %v1727, %v1721
  %v2652 = vpack.c.b16 %v1728, %v1722
  %v2653 = vpack.c.b16 %v1729, %v1723
  %v2654 = vpack.c.b16 %v1730, %v1724
  %v2655 = vpack.c.b16 %v1731, %v1725
  %v2656 = vpack.c.b16 %v1732, %v1726
  %v2657 = vpack.c.b16 %v1739, %v1733
  %v2658 = vpack.c.b16 %v1740, %v1734
  %v2659 = vpack.c.b16 %v1741, %v1735
  %v2660 = vpack.c.b16 %v1742, %v1736
  %v2661 = vpack.c.b16 %v1743, %v1737
  %v2662 = vpack.c.b16 %v1744, %v1738
  %v2663 = vpack.c.b16 %v1751, %v1745
  %v2664 = vpack.c.b16 %v1752, %v1746
  %v2665 = vpack.c.b16 %v1753, %v1747
  %v2666 = vpack.c.b16 %v1754, %v1748
  %v2667 = vpack.c.b16 %v1755, %v1749
  %v2668 = vpack.c.b16 %v1756, %v1750
  %v2669 = vpack.c.b16 %v1763, %v1757
  %v2670 = vpack.c.b16 %v1764, %v1758
  %v2671 = vpack.c.b16 %v1765, %v1759
  %v2672 = vpack.c.b16 %v1766, %v1760
  %v2673 = vpack.c.b16 %v1767, %v1761
  %v2674 = vpack.c.b16 %v1768, %v1762
  %v2675 = vpack.c.b16 %v1775, %v1769
  %v2676 = vpack.c.b16 %v1776, %v1770
  %v2677 = vpack.c.b16 %v1777, %v1771
  %v2678 = vpack.c.b16 %v1778, %v1772
  %v2679 = vpack.c.b16 %v1779, %v1773
  %v2680 = vpack.c.b16 %v1780, %v1774
  %v2681 = vpack.c.b16 %v1787, %v1781
  %v2682 = vpack.c.b16 %v1788, %v1782
  %v2683 = vpack.c.b16 %v1789, %v1783
  %v2684 = vpack.c.b16 %v1790, %v1784
  %v2685 = vpack.c.b16 %v1791, %v1785
  %v2686 = vpack.c.b16 %v1792, %v1786
  %v2687 = vpack.c.b16 %v1799, %v1793
  %v2688 = vpack.c.b16 %v1800, %v1794
  %v2689 = vpack.c.b16 %v1801, %v1795
  %v2690 = vpack.c.b16 %v1802, %v1796
  %v2691 = vpack.c.b16 %v1803, %v1797
  %v2692 = vpack.c.b16 %v1804, %v1798
  %v2693 = vpack.c.b16 %v1811, %v1805
  %v2694 = vpack.c.b16 %v1812, %v1806
  %v2695 = vpack.c.b16 %v1813, %v1807
  %v2696 = vpack.c.b16 %v1814, %v1808
  %v2697 = vpack.c.b16 %v1815, %v1809
  %v2698 = vpack.c.b16 %v1816, %v1810
  %v2699 = vpack.c.b16 %v1823, %v1817
  %v2700 = vpack.c.b16 %v1824, %v1818
  %v2701 = vpack.c.b16 %v1825, %v1819
  %v2702 = vpack.c.b16 %v1826, %v1820
  %v2703 = vpack.c.b16 %v1827, %v1821
  %v2704 = vpack.c.b16 %v1828, %v1822
  %v2705 = vpack.c.b16 %v1835, %v1829
  %v2706 = vpack.c.b16 %v1836, %v1830
  %v2707 = vpack.c.b16 %v1837, %v1831
  %v2708 = vpack.c.b16 %v1838, %v1832
  %v2709 = vpack.c.b16 %v1839, %v1833
  %v2710 = vpack.c.b16 %v1840, %v1834
  %v2711 = vpack.c.b16 %v1847, %v1841
  %v2712 = vpack.c.b16 %v1848, %v1842
  %v2713 = vpack.c.b16 %v1849, %v1843
  %v2714 = vpack.c.b16 %v1850, %v1844
  %v2715 = vpack.c.b16 %v1851, %v1845
  %v2716 = vpack.c.b16 %v1852, %v1846
  %v2717 = vpack.c.b16 %v1859, %v1853
  %v2718 = vpack.c.b16 %v1860, %v1854
  %v2719 = vpack.c.b16 %v1861, %v1855
  %v2720 = vpack.c.b16 %v1862, %v1856
  %v2721 = vpack.c.b16 %v1863, %v1857
  %v2722 = vpack.c.b16 %v1864, %v1858
  %v2723 = vpack.c.b16 %v1871, %v1865
  %v2724 = vpack.c.b16 %v1872, %v1866
  %v2725 = vpack.c.b16 %v1873, %v1867
  %v2726 = vpack.c.b16 %v1874, %v1868
  %v2727 = vpack.c.b16 %v1875, %v1869
  %v2728 = vpack.c.b16 %v1876, %v1870
  %v2729 = vpack.c.b16 %v1883, %v1877
  %v2730 = vpack.c.b16 %v1884, %v1878
  %v2731 = vpack.c.b16 %v1885, %v1879
  %v2732 = vpack.c.b16 %v1886, %v1880
  %v2733 = vpack.c.b16 %v1887, %v1881
  %v2734 = vpack.c.b16 %v1888, %v1882
  %v2735 = vpack.c.b16 %v1895, %v1889
  %v2736 = vpack.c.b16 %v1896, %v1890
  %v2737 = vpack.c.b16 %v1897, %v1891
  %v2738 = vpack.c.b16 %v1898, %v1892
  %v2739 = vpack.c.b16 %v1899, %v1893
  %v2740 = vpack.c.b16 %v1900, %v1894
  %v2741 = vpack.c.b16 %v1907, %v1901
  %v2742 = vpack.c.b16 %v1908, %v1902
  %v2743 = vpack.c.b16 %v1909, %v1903
  %v2744 = vpack.c.b16 %v1910, %v1904
  %v2745 = vpack.c.b16 %v1911, %v1905
  %v2746 = vpack.c.b16 %v1912, %v1906
  %v2747 = vpack.c.b16 %v1919, %v1913
  %v2748 = vpack.c.b16 %v1920, %v1914
  %v2749 = vpack.c.b16 %v1921, %v1915
  %v2750 = vpack.c.b16 %v1922, %v1916
  %v2751 = vpack.c.b16 %v1923, %v1917
  %v2752 = vpack.c.b16 %v1924, %v1918
  %v2753 = vpack.c.b16 %v1931, %v1925
  %v2754 = vpack.c.b16 %v1932, %v1926
  %v2755 = vpack.c.b16 %v1933, %v1927
  %v2756 = vpack.c.b16 %v1934, %v1928
  %v2757 = vpack.c.b16 %v1935, %v1929
  %v2758 = vpack.c.b16 %v1936, %v1930
  %v2759 = vpack.c.b16 %v1943, %v1937
  %v2760 = vpack.c.b16 %v1944, %v1938
  %v2761 = vpack.c.b16 %v1945, %v1939
  %v2762 = vpack.c.b16 %v1946, %v1940
  %v2763 = vpack.c.b16 %v1947, %v1941
  %v2764 = vpack.c.b16 %v1948, %v1942
  %v2765 = vpack.c.b16 %v1955, %v1949
  %v2766 = vpack.c.b16 %v1956, %v1950
  %v2767 = vpack.c.b16 %v1957, %v1951
  %v2768 = vpack.c.b16 %v1958, %v1952
  %v2769 = vpack.c.b16 %v1959, %v1953
  %v2770 = vpack.c.b16 %v1960, %v1954
  %v2771 = vpack.c.b16 %v1967, %v1961
  %v2772 = vpack.c.b16 %v1968, %v1962
  %v2773 = vpack.c.b16 %v1969, %v1963
  %v2774 = vpack.c.b16 %v1970, %v1964
  %v2775 = vpack.c.b16 %v1971, %v1965
  %v2776 = vpack.c.b16 %v1972, %v1966
  %v2777 = vpack.c.b16 %v1979, %v1973
  %v2778 = vpack.c.b16 %v1980, %v1974
  %v2779 = vpack.c.b16 %v1981, %v1975
  %v2780 = vpack.c.b16 %v1982, %v1976
  %v2781 = vpack.c.b16 %v1983, %v1977
  %v2782 = vpack.c.b16 %v1984, %v1978
  %v2783 = vpack.c.b16 %v1991, %v1985
  %v2784 = vpack.c.b16 %v1992, %v1986
  %v2785 = vpack.c.b16 %v1993, %v1987
  %v2786 = vpack.c.b16 %v1994, %v1988
  %v2787 = vpack.c.b16 %v1995, %v1989
  %v2788 = vpack.c.b16 %v1996, %v1990
  %v2789 = vpack.c.b16 %v2003, %v1997
  %v2790 = vpack.c.b16 %v2004, %v1998
  %v2791 = vpack.c.b16 %v2005, %v1999
  %v2792 = vpack.c.b16 %v2006, %v2000
  %v2793 = vpack.c.b16 %v2007, %v2001
  %v2794 = vpack.c.b16 %v2008, %v2002
  %v2795 = vpack.c.b16 %v2015, %v2009
  %v2796 = vpack.c.b16 %v2016, %v2010
  %v2797 = vpack.c.b16 %v2017, %v2011
  %v2798 = vpack.c.b16 %v2018, %v2012
  %v2799 = vpack.c.b16 %v2019, %v2013
  %v2800 = vpack.c.b16 %v2020, %v2014
  %v2801 = vpack.c.b16 %v2027, %v2021
  %v2802 = vpack.c.b16 %v2028, %v2022
  %v2803 = vpack.c.b16 %v2029, %v2023
  %v2804 = vpack.c.b16 %v2030, %v2024
  %v2805 = vpack.c.b16 %v2031, %v2025
  %v2806 = vpack.c.b16 %v2032, %v2026
  %v2807 = vpack.c.b16 %v2039, %v2033
  %v2808 = vpack.c.b16 %v2040, %v2034
  %v2809 = vpack.c.b16 %v2041, %v2035
  %v2810 = vpack.c.b16 %v2042, %v2036
  %v2811 = vpack.c.b16 %v2043, %v2037
  %v2812 = vpack.c.b16 %v2044, %v2038
  %v2813 = vpack.c.b16 %v2051, %v2045
  %v2814 = vpack.c.b16 %v2052, %v2046
  %v2815 = vpack.c.b16 %v2053, %v2047
  %v2816 = vpack.c.b16 %v2054, %v2048
  %v2817 = vpack.c.b16 %v2055, %v2049
  %v2818 = vpack.c.b16 %v2056, %v2050
  %v2819 = vpack.c.b16 %v2063, %v2057
  %v2820 = vpack.c.b16 %v2064, %v2058
  %v2821 = vpack.c.b16 %v2065, %v2059
  %v2822 = vpack.c.b16 %v2066, %v2060
  %v2823 = vpack.c.b16 %v2067, %v2061
  %v2824 = vpack.c.b16 %v2068, %v2062
  %v2825 = vpack.c.b16 %v2075, %v2069
  %v2826 = vpack.c.b16 %v2076, %v2070
  %v2827 = vpack.c.b16 %v2077, %v2071
  %v2828 = vpack.c.b16 %v2078, %v2072
  %v2829 = vpack.c.b16 %v2079, %v2073
  %v2830 = vpack.c.b16 %v2080, %v2074
  %v2831 = vpack.c.b16 %v2087, %v2081
  %v2832 = vpack.c.b16 %v2088, %v2082
  %v2833 = vpack.c.b16 %v2089, %v2083
  %v2834 = vpack.c.b16 %v2090, %v2084
  %v2835 = vpack.c.b16 %v2091, %v2085
  %v2836 = vpack.c.b16 %v2092, %v2086
  %v2837 = vpack.c.b16 %v2099, %v2093
  %v2838 = vpack.c.b16 %v2100, %v2094
  %v2839 = vpack.c.b16 %v2101, %v2095
  %v2840 = vpack.c.b16 %v2102, %v2096
  %v2841 = vpack.c.b16 %v2103, %v2097
  %v2842 = vpack.c.b16 %v2104, %v2098
  %v2843 = vpack.c.b16 %v2111, %v2105
  %v2844 = vpack.c.b16 %v2112, %v2106
  %v2845 = vpack.c.b16 %v2113, %v2107
  %v2846 = vpack.c.b16 %v2114, %v2108
  %v2847 = vpack.c.b16 %v2115, %v2109
  %v2848 = vpack.c.b16 %v2116, %v2110
  %v2849 = vpack.c.b16 %v2123, %v2117
  %v2850 = vpack.c.b16 %v2124, %v2118
  %v2851 = vpack.c.b16 %v2125, %v2119
  %v2852 = vpack.c.b16 %v2126, %v2120
  %v2853 = vpack.c.b16 %v2127, %v2121
  %v2854 = vpack.c.b16 %v2128, %v2122
  %v2855 = vpack.c.b16 %v2135, %v2129
  %v2856 = vpack.c.b16 %v2136, %v2130
  %v2857 = vpack.c.b16 %v2137, %v2131
  %v2858 = vpack.c.b16 %v2138, %v2132
  %v2859 = vpack.c.b16 %v2139, %v2133
  %v2860 = vpack.c.b16 %v2140, %v2134
  %v2861 = vpack.c.b16 %v2147, %v2141
  %v2862 = vpack.c.b16 %v2148, %v2142
  %v2863 = vpack.c.b16 %v2149, %v2143
  %v2864 = vpack.c.b16 %v2150, %v2144
  %v2865 = vpack.c.b16 %v2151, %v2145
  %v2866 = vpack.c.b16 %v2152, %v2146
  %v2867 = vpack.c.b16 %v2159, %v2153
  %v2868 = vpack.c.b16 %v2160, %v2154
  %v2869 = vpack.c.b16 %v2161, %v2155
  %v2870 = vpack.c.b16 %v2162, %v2156
  %v2871 = vpack.c.b16 %v2163, %v2157
  %v2872 = vpack.c.b16 %v2164, %v2158
  %v2873 = vpack.c.b16 %v2171, %v2165
  %v2874 = vpack.c.b16 %v2172, %v2166
  %v2875 = vpack.c.b16 %v2173, %v2167
  %v2876 = vpack.c.b16 %v2174, %v2168
  %v2877 = vpack.c.b16 %v2175, %v2169
  %v2878 = vpack.c.b16 %v2176, %v2170
  %v2879 = vpack.c.b16 %v2183, %v2177
  %v2880 = vpack.c.b16 %v2184, %v2178
  %v2881 = vpack.c.b16 %v2185, %v2179
  %v2882 = vpack.c.b16 %v2186, %v2180
  %v2883 = vpack.c.b16 %v2187, %v2181
  %v2884 = vpack.c.b16 %v2188, %v2182
  %v2885 = vpack.c.b16 %v2195, %v2189
  %v2886 = vpack.c.b16 %v2196, %v2190
  %v2887 = vpack.c.b16 %v2197, %v2191
  %v2888 = vpack.c.b16 %v2198, %v2192
  %v2889 = vpack.c.b16 %v2199, %v2193
  %v2890 = vpack.c.b16 %v2200, %v2194
  %v2891 = vpack.c.b16 %v2207, %v2201
  %v2892 = vpack.c.b16 %v2208, %v2202
  %v2893 = vpack.c.b16 %v2209, %v2203
  %v2894 = vpack.c.b16 %v2210, %v2204
  %v2895 = vpack.c.b16 %v2211, %v2205
  %v2896 = vpack.c.b16 %v2212, %v2206
  %v2897 = vpack.c.b16 %v2219, %v2213
  %v2898 = vpack.c.b16 %v2220, %v2214
  %v2899 = vpack.c.b16 %v2221, %v2215
  %v2900 = vpack.c.b16 %v2222, %v2216
  %v2901 = vpack.c.b16 %v2223, %v2217
  %v2902 = vpack.c.b16 %v2224, %v2218
  %v2903 = vpack.c.b16 %v2231, %v2225
  %v2904 = vpack.c.b16 %v2232, %v2226
  %v2905 = vpack.c.b16 %v2233, %v2227
  %v2906 = vpack.c.b16 %v2234, %v2228
  %v2907 = vpack.c.b16 %v2235, %v2229
  %v2908 = vpack.c.b16 %v2236, %v2230
  %v2909 = vpack.c.b16 %v2243, %v2237
  %v2910 = vpack.c.b16 %v2244, %v2238
  %v2911 = vpack.c.b16 %v2245, %v2239
  %v2912 = vpack.c.b16 %v2246, %v2240
  %v2913 = vpack.c.b16 %v2247, %v2241
  %v2914 = vpack.c.b16 %v2248, %v2242
  %v2915 = vpack.c.b16 %v2255, %v2249
  %v2916 = vpack.c.b16 %v2256, %v2250
  %v2917 = vpack.c.b16 %v2257, %v2251
  %v2918 = vpack.c.b16 %v2258, %v2252
  %v2919 = vpack.c.b16 %v2259, %v2253
  %v2920 = vpack.c.b16 %v2260, %v2254
  %v2921 = vpack.c.b16 %v2267, %v2261
  %v2922 = vpack.c.b16 %v2268, %v2262
  %v2923 = vpack.c.b16 %v2269, %v2263
  %v2924 = vpack.c.b16 %v2270, %v2264
  %v2925 = vpack.c.b16 %v2271, %v2265
  %v2926 = vpack.c.b16 %v2272, %v2266
  %v2927 = vpack.c.b16 %v2279, %v2273
  %v2928 = vpack.c.b16 %v2280, %v2274
  %v2929 = vpack.c.b16 %v2281, %v2275
  %v2930 = vpack.c.b16 %v2282, %v2276
  %v2931 = vpack.c.b16 %v2283, %v2277
  %v2932 = vpack.c.b16 %v2284, %v2278
  %v2933 = vpack.c.b16 %v2291, %v2285
  %v2934 = vpack.c.b16 %v2292, %v2286
  %v2935 = vpack.c.b16 %v2293, %v2287
  %v2936 = vpack.c.b16 %v2294, %v2288
  %v2937 = vpack.c.b16 %v2295, %v2289
  %v2938 = vpack.c.b16 %v2296, %v2290
  %v2939 = vpack.c.b16 %v2303, %v2297
  %v2940 = vpack.c.b16 %v2304, %v2298
  %v2941 = vpack.c.b16 %v2305, %v2299
  %v2942 = vpack.c.b16 %v2306, %v2300
  %v2943 = vpack.c.b16 %v2307, %v2301
  %v2944 = vpack.c.b16 %v2308, %v2302
  %v2945 = vpack.c.b16 %v2315, %v2309
  %v2946 = vpack.c.b16 %v2316, %v2310
  %v2947 = vpack.c.b16 %v2317, %v2311
  %v2948 = vpack.c.b16 %v2318, %v2312
  %v2949 = vpack.c.b16 %v2319, %v2313
  %v2950 = vpack.c.b16 %v2320, %v2314
  %v2951 = vpack.c.b16 %v2327, %v2321
  %v2952 = vpack.c.b16 %v2328, %v2322
  %v2953 = vpack.c.b16 %v2329, %v2323
  %v2954 = vpack.c.b16 %v2330, %v2324
  %v2955 = vpack.c.b16 %v2331, %v2325
  %v2956 = vpack.c.b16 %v2332, %v2326
  %v2957 = vpack.c.b16 %v2339, %v2333
  %v2958 = vpack.c.b16 %v2340, %v2334
  %v2959 = vpack.c.b16 %v2341, %v2335
  %v2960 = vpack.c.b16 %v2342, %v2336
  %v2961 = vpack.c.b16 %v2343, %v2337
  %v2962 = vpack.c.b16 %v2344, %v2338
  %v2963 = vpack.c.b16 %v2351, %v2345
  %v2964 = vpack.c.b16 %v2352, %v2346
  %v2965 = vpack.c.b16 %v2353, %v2347
  %v2966 = vpack.c.b16 %v2354, %v2348
  %v2967 = vpack.c.b16 %v2355, %v2349
  %v2968 = vpack.c.b16 %v2356, %v2350
  %v2969 = vpack.c.b16 %v2363, %v2357
  %v2970 = vpack.c.b16 %v2364, %v2358
  %v2971 = vpack.c.b16 %v2365, %v2359
  %v2972 = vpack.c.b16 %v2366, %v2360
  %v2973 = vpack.c.b16 %v2367, %v2361
  %v2974 = vpack.c.b16 %v2368, %v2362
  %v2975 = vpack.c.b16 %v2375, %v2369
  %v2976 = vpack.c.b16 %v2376, %v2370
  %v2977 = vpack.c.b16 %v2377, %v2371
  %v2978 = vpack.c.b16 %v2378, %v2372
  %v2979 = vpack.c.b16 %v2379, %v2373
  %v2980 = vpack.c.b16 %v2380, %v2374
  %v2981 = vpack.c.b16 %v2387, %v2381
  %v2982 = vpack.c.b16 %v2388, %v2382
  %v2983 = vpack.c.b16 %v2389, %v2383
  %v2984 = vpack.c.b16 %v2390, %v2384
  %v2985 = vpack.c.b16 %v2391, %v2385
  %v2986 = vpack.c.b16 %v2392, %v2386
  %v2987 = vpack.c.b16 %v2399, %v2393
  %v2988 = vpack.c.b16 %v2400, %v2394
  %v2989 = vpack.c.b16 %v2401, %v2395
  %v2990 = vpack.c.b16 %v2402, %v2396
  %v2991 = vpack.c.b16 %v2403, %v2397
  %v2992 = vpack.c.b16 %v2404, %v2398
  %v2993 = vpack.c.b16 %v2411, %v2405
  %v2994 = vpack.c.b16 %v2412, %v2406
  %v2995 = vpack.c.b16 %v2413, %v2407
  %v2996 = vpack.c.b16 %v2414, %v2408
  %v2997 = vpack.c.b16 %v2415, %v2409
  %v2998 = vpack.c.b16 %v2416, %v2410
  %v2999 = vpack.c.b16 %v2423, %v2417
  %v3000 = vpack.c.b16 %v2424, %v2418
  %v3001 = vpack.c.b16 %v2425, %v2419
  %v3002 = vpack.c.b16 %v2426, %v2420
  %v3003 = vpack.c.b16 %v2427, %v2421
  %v3004 = vpack.c.b16 %v2428, %v2422
  %3581 = vmatprep.subr.bf16.mxu0 %v2430
  %3582 = vmatpush1.bf16.msra.mxu0 %v2429
  %3583 = vmatprep.subr.bf16.mxu0 %v2436
  %3584 = vmatpush1.bf16.msra.mxu0 %v2435
  %3585 = vmatprep.subr.bf16.mxu0 %v2442
  %3586 = vmatpush1.bf16.msra.mxu0 %v2441
  %3587 = vmatprep.subr.bf16.mxu0 %v2448
  %3588 = vmatpush1.bf16.msra.mxu0 %v2447
  %3589 = vmatprep.subr.bf16.mxu0 %v2454
  %3590 = vmatpush1.bf16.msra.mxu0 %v2453
  %3591 = vmatprep.subr.bf16.mxu0 %v2460
  %3592 = vmatpush1.bf16.msra.mxu0 %v2459
  %3593 = vmatprep.subr.bf16.mxu0 %v2466
  %3594 = vmatpush1.bf16.msra.mxu0 %v2465
  %3595 = vmatprep.subr.bf16.mxu0 %v2472
  %3596 = vmatpush1.bf16.msra.mxu0 %v2471
  %3597 = vmatprep.subr.bf16.mxu0 %v2478
  %3598 = vmatpush1.bf16.msra.mxu0 %v2477
  %3599 = vmatprep.subr.bf16.mxu0 %v2484
  %3600 = vmatpush1.bf16.msra.mxu0 %v2483
  %3601 = vmatprep.subr.bf16.mxu0 %v2490
  %3602 = vmatpush1.bf16.msra.mxu0 %v2489
  %3603 = vmatprep.subr.bf16.mxu0 %v2496
  %3604 = vmatpush1.bf16.msra.mxu0 %v2495
  %3605 = vmatprep.subr.bf16.mxu0 %v2502
  %3606 = vmatpush1.bf16.msra.mxu0 %v2501
  %3607 = vmatprep.subr.bf16.mxu0 %v2508
  %3608 = vmatpush1.bf16.msra.mxu0 %v2507
  %3609 = vmatprep.subr.bf16.mxu0 %v2514
  %3610 = vmatpush1.bf16.msra.mxu0 %v2513
  %3611 = vmatprep.subr.bf16.mxu0 %v2520
  %3612 = vmatpush1.bf16.msra.mxu0 %v2519
  %3613 = vmatprep.mubr.bf16.mxu0 %v678
  %3614 = vmatmul.mubr.bf16.gmra.mrb[0].mxu0 %v677
  %v3615 = vpop.f32.mrb[0].mxu0
  %v3616 = vadd.f32 %v614, %v3615
  %v3617 = vpop.f32.mrb[0].mxu0
  %v3618 = vadd.f32 %v618, %v3617
  %v3619 = vpop.f32.mrb[0].mxu0
  %v3620 = vadd.f32 %v614, %v3619
  %v3621 = vpop.f32.mrb[0].mxu0
  %v3622 = vadd.f32 %v618, %v3621
  %3623 = vdwg.mxu0
  %3624 = vmatprep.subr.bf16.mxu0 %v2526
  %3625 = vmatpush1.bf16.msra.mxu0 %v2525
  %3626 = vmatprep.subr.bf16.mxu0 %v2532
  %3627 = vmatpush1.bf16.msra.mxu0 %v2531
  %3628 = vmatprep.subr.bf16.mxu0 %v2538
  %3629 = vmatpush1.bf16.msra.mxu0 %v2537
  %3630 = vmatprep.subr.bf16.mxu0 %v2544
  %3631 = vmatpush1.bf16.msra.mxu0 %v2543
  %3632 = vmatprep.subr.bf16.mxu0 %v2550
  %3633 = vmatpush1.bf16.msra.mxu0 %v2549
  %3634 = vmatprep.subr.bf16.mxu0 %v2556
  %3635 = vmatpush1.bf16.msra.mxu0 %v2555
  %3636 = vmatprep.subr.bf16.mxu0 %v2562
  %3637 = vmatpush1.bf16.msra.mxu0 %v2561
  %3638 = vmatprep.subr.bf16.mxu0 %v2568
  %3639 = vmatpush1.bf16.msra.mxu0 %v2567
  %3640 = vmatprep.subr.bf16.mxu0 %v2574
  %3641 = vmatpush1.bf16.msra.mxu0 %v2573
  %3642 = vmatprep.subr.bf16.mxu0 %v2580
  %3643 = vmatpush1.bf16.msra.mxu0 %v2579
  %3644 = vmatprep.subr.bf16.mxu0 %v2586
  %3645 = vmatpush1.bf16.msra.mxu0 %v2585
  %3646 = vmatprep.subr.bf16.mxu0 %v2592
  %3647 = vmatpush1.bf16.msra.mxu0 %v2591
  %3648 = vmatprep.subr.bf16.mxu0 %v2598
  %3649 = vmatpush1.bf16.msra.mxu0 %v2597
  %3650 = vmatprep.subr.bf16.mxu0 %v2604
  %3651 = vmatpush1.bf16.msra.mxu0 %v2603
  %3652 = vmatprep.subr.bf16.mxu0 %v2610
  %3653 = vmatpush1.bf16.msra.mxu0 %v2609
  %3654 = vmatprep.subr.bf16.mxu0 %v2616
  %3655 = vmatpush1.bf16.msra.mxu0 %v2615
  %3656 = vmatprep.mubr.bf16.mxu0 %v680
  %3657 = vmatmul.mubr.bf16.gmra.mrb[0].mxu0 %v679
  %v3658 = vpop.f32.mrb[0].mxu0
  %v3659 = vadd.f32 %v3616, %v3658
  %v3660 = vpop.f32.mrb[0].mxu0
  %v3661 = vadd.f32 %v3618, %v3660
  %v3662 = vpop.f32.mrb[0].mxu0
  %v3663 = vadd.f32 %v3620, %v3662
  %v3664 = vpop.f32.mrb[0].mxu0
  %v3665 = vadd.f32 %v3622, %v3664
  %3666 = vdwg.mxu0
  %3667 = vmatprep.subr.bf16.mxu0 %v2622
  %3668 = vmatpush1.bf16.msra.mxu0 %v2621
  %3669 = vmatprep.subr.bf16.mxu0 %v2628
  %3670 = vmatpush1.bf16.msra.mxu0 %v2627
  %3671 = vmatprep.subr.bf16.mxu0 %v2634
  %3672 = vmatpush1.bf16.msra.mxu0 %v2633
  %3673 = vmatprep.subr.bf16.mxu0 %v2640
  %3674 = vmatpush1.bf16.msra.mxu0 %v2639
  %3675 = vmatprep.subr.bf16.mxu0 %v2646
  %3676 = vmatpush1.bf16.msra.mxu0 %v2645
  %3677 = vmatprep.subr.bf16.mxu0 %v2652
  %3678 = vmatpush1.bf16.msra.mxu0 %v2651
  %3679 = vmatprep.subr.bf16.mxu0 %v2658
  %3680 = vmatpush1.bf16.msra.mxu0 %v2657
  %3681 = vmatprep.subr.bf16.mxu0 %v2664
  %3682 = vmatpush1.bf16.msra.mxu0 %v2663
  %3683 = vmatprep.subr.bf16.mxu0 %v2670
  %3684 = vmatpush1.bf16.msra.mxu0 %v2669
  %3685 = vmatprep.subr.bf16.mxu0 %v2676
  %3686 = vmatpush1.bf16.msra.mxu0 %v2675
  %3687 = vmatprep.subr.bf16.mxu0 %v2682
  %3688 = vmatpush1.bf16.msra.mxu0 %v2681
  %3689 = vmatprep.subr.bf16.mxu0 %v2688
  %3690 = vmatpush1.bf16.msra.mxu0 %v2687
  %3691 = vmatprep.subr.bf16.mxu0 %v2694
  %3692 = vmatpush1.bf16.msra.mxu0 %v2693
  %3693 = vmatprep.subr.bf16.mxu0 %v2700
  %3694 = vmatpush1.bf16.msra.mxu0 %v2699
  %3695 = vmatprep.subr.bf16.mxu0 %v2706
  %3696 = vmatpush1.bf16.msra.mxu0 %v2705
  %3697 = vmatprep.subr.bf16.mxu0 %v2712
  %3698 = vmatpush1.bf16.msra.mxu0 %v2711
  %3699 = vmatprep.mubr.bf16.mxu0 %v682
  %3700 = vmatmul.mubr.bf16.gmra.mrb[0].mxu0 %v681
  %v3701 = vpop.f32.mrb[0].mxu0
  %v3702 = vadd.f32 %v3659, %v3701
  %v3703 = vpop.f32.mrb[0].mxu0
  %v3704 = vadd.f32 %v3661, %v3703
  %v3705 = vpop.f32.mrb[0].mxu0
  %v3706 = vadd.f32 %v3663, %v3705
  %v3707 = vpop.f32.mrb[0].mxu0
  %v3708 = vadd.f32 %v3665, %v3707
  %3709 = vdwg.mxu0
  %3710 = vmatprep.subr.bf16.mxu0 %v2718
  %3711 = vmatpush1.bf16.msra.mxu0 %v2717
  %3712 = vmatprep.subr.bf16.mxu0 %v2724
  %3713 = vmatpush1.bf16.msra.mxu0 %v2723
  %3714 = vmatprep.subr.bf16.mxu0 %v2730
  %3715 = vmatpush1.bf16.msra.mxu0 %v2729
  %3716 = vmatprep.subr.bf16.mxu0 %v2736
  %3717 = vmatpush1.bf16.msra.mxu0 %v2735
  %3718 = vmatprep.subr.bf16.mxu0 %v2742
  %3719 = vmatpush1.bf16.msra.mxu0 %v2741
  %3720 = vmatprep.subr.bf16.mxu0 %v2748
  %3721 = vmatpush1.bf16.msra.mxu0 %v2747
  %3722 = vmatprep.subr.bf16.mxu0 %v2754
  %3723 = vmatpush1.bf16.msra.mxu0 %v2753
  %3724 = vmatprep.subr.bf16.mxu0 %v2760
  %3725 = vmatpush1.bf16.msra.mxu0 %v2759
  %3726 = vmatprep.subr.bf16.mxu0 %v2766
  %3727 = vmatpush1.bf16.msra.mxu0 %v2765
  %3728 = vmatprep.subr.bf16.mxu0 %v2772
  %3729 = vmatpush1.bf16.msra.mxu0 %v2771
  %3730 = vmatprep.subr.bf16.mxu0 %v2778
  %3731 = vmatpush1.bf16.msra.mxu0 %v2777
  %3732 = vmatprep.subr.bf16.mxu0 %v2784
  %3733 = vmatpush1.bf16.msra.mxu0 %v2783
  %3734 = vmatprep.subr.bf16.mxu0 %v2790
  %3735 = vmatpush1.bf16.msra.mxu0 %v2789
  %3736 = vmatprep.subr.bf16.mxu0 %v2796
  %3737 = vmatpush1.bf16.msra.mxu0 %v2795
  %3738 = vmatprep.subr.bf16.mxu0 %v2802
  %3739 = vmatpush1.bf16.msra.mxu0 %v2801
  %3740 = vmatprep.subr.bf16.mxu0 %v2808
  %3741 = vmatpush1.bf16.msra.mxu0 %v2807
  %3742 = vmatprep.mubr.bf16.mxu0 %v684
  %3743 = vmatmul.mubr.bf16.gmra.mrb[0].mxu0 %v683
  %v3744 = vpop.f32.mrb[0].mxu0
  %v3745 = vadd.f32 %v3702, %v3744
  %v3746 = vpop.f32.mrb[0].mxu0
  %v3747 = vadd.f32 %v3704, %v3746
  %v3748 = vpop.f32.mrb[0].mxu0
  %v3749 = vadd.f32 %v3706, %v3748
  %v3750 = vpop.f32.mrb[0].mxu0
  %v3751 = vadd.f32 %v3708, %v3750
  %3752 = vdwg.mxu0
  %3753 = vmatprep.subr.bf16.mxu0 %v2814
  %3754 = vmatpush1.bf16.msra.mxu0 %v2813
  %3755 = vmatprep.subr.bf16.mxu0 %v2820
  %3756 = vmatpush1.bf16.msra.mxu0 %v2819
  %3757 = vmatprep.subr.bf16.mxu0 %v2826
  %3758 = vmatpush1.bf16.msra.mxu0 %v2825
  %3759 = vmatprep.subr.bf16.mxu0 %v2832
  %3760 = vmatpush1.bf16.msra.mxu0 %v2831
  %3761 = vmatprep.subr.bf16.mxu0 %v2838
  %3762 = vmatpush1.bf16.msra.mxu0 %v2837
  %3763 = vmatprep.subr.bf16.mxu0 %v2844
  %3764 = vmatpush1.bf16.msra.mxu0 %v2843
  %3765 = vmatprep.subr.bf16.mxu0 %v2850
  %3766 = vmatpush1.bf16.msra.mxu0 %v2849
  %3767 = vmatprep.subr.bf16.mxu0 %v2856
  %3768 = vmatpush1.bf16.msra.mxu0 %v2855
  %3769 = vmatprep.subr.bf16.mxu0 %v2862
  %3770 = vmatpush1.bf16.msra.mxu0 %v2861
  %3771 = vmatprep.subr.bf16.mxu0 %v2868
  %3772 = vmatpush1.bf16.msra.mxu0 %v2867
  %3773 = vmatprep.subr.bf16.mxu0 %v2874
  %3774 = vmatpush1.bf16.msra.mxu0 %v2873
  %3775 = vmatprep.subr.bf16.mxu0 %v2880
  %3776 = vmatpush1.bf16.msra.mxu0 %v2879
  %3777 = vmatprep.subr.bf16.mxu0 %v2886
  %3778 = vmatpush1.bf16.msra.mxu0 %v2885
  %3779 = vmatprep.subr.bf16.mxu0 %v2892
  %3780 = vmatpush1.bf16.msra.mxu0 %v2891
  %3781 = vmatprep.subr.bf16.mxu0 %v2898
  %3782 = vmatpush1.bf16.msra.mxu0 %v2897
  %3783 = vmatprep.subr.bf16.mxu0 %v2904
  %3784 = vmatpush1.bf16.msra.mxu0 %v2903
  %3785 = vmatprep.mubr.bf16.mxu0 %v686
  %3786 = vmatmul.mubr.bf16.gmra.mrb[0].mxu0 %v685
  %v3787 = vpop.f32.mrb[0].mxu0
  %v3788 = vadd.f32 %v3745, %v3787
  %v3789 = vpop.f32.mrb[0].mxu0
  %v3790 = vadd.f32 %v3747, %v3789
  %v3791 = vpop.f32.mrb[0].mxu0
  %v3792 = vadd.f32 %v3749, %v3791
  %v3793 = vpop.f32.mrb[0].mxu0
  %v3794 = vadd.f32 %v3751, %v3793
  %3795 = vdwg.mxu0
  %3796 = vmatprep.subr.bf16.mxu0 %v2910
  %3797 = vmatpush1.bf16.msra.mxu0 %v2909
  %3798 = vmatprep.subr.bf16.mxu0 %v2916
  %3799 = vmatpush1.bf16.msra.mxu0 %v2915
  %3800 = vmatprep.subr.bf16.mxu0 %v2922
  %3801 = vmatpush1.bf16.msra.mxu0 %v2921
  %3802 = vmatprep.subr.bf16.mxu0 %v2928
  %3803 = vmatpush1.bf16.msra.mxu0 %v2927
  %3804 = vmatprep.subr.bf16.mxu0 %v2934
  %3805 = vmatpush1.bf16.msra.mxu0 %v2933
  %3806 = vmatprep.subr.bf16.mxu0 %v2940
  %3807 = vmatpush1.bf16.msra.mxu0 %v2939
  %3808 = vmatprep.subr.bf16.mxu0 %v2946
  %3809 = vmatpush1.bf16.msra.mxu0 %v2945
  %3810 = vmatprep.subr.bf16.mxu0 %v2952
  %3811 = vmatpush1.bf16.msra.mxu0 %v2951
  %3812 = vmatprep.subr.bf16.mxu0 %v2958
  %3813 = vmatpush1.bf16.msra.mxu0 %v2957
  %3814 = vmatprep.subr.bf16.mxu0 %v2964
  %3815 = vmatpush1.bf16.msra.mxu0 %v2963
  %3816 = vmatprep.subr.bf16.mxu0 %v2970
  %3817 = vmatpush1.bf16.msra.mxu0 %v2969
  %3818 = vmatprep.subr.bf16.mxu0 %v2976
  %3819 = vmatpush1.bf16.msra.mxu0 %v2975
  %3820 = vmatprep.subr.bf16.mxu0 %v2982
  %3821 = vmatpush1.bf16.msra.mxu0 %v2981
  %3822 = vmatprep.subr.bf16.mxu0 %v2988
  %3823 = vmatpush1.bf16.msra.mxu0 %v2987
  %3824 = vmatprep.subr.bf16.mxu0 %v2994
  %3825 = vmatpush1.bf16.msra.mxu0 %v2993
  %3826 = vmatprep.subr.bf16.mxu0 %v3000
  %3827 = vmatpush1.bf16.msra.mxu0 %v2999
  %3828 = vmatprep.mubr.bf16.mxu0 %v688
  %3829 = vmatmul.mubr.bf16.gmra.mrb[0].mxu0 %v687
  %v3830 = vpop.f32.mrb[0].mxu0
  %v3831 = vadd.f32 %v3788, %v3830
  %v3832 = vpop.f32.mrb[0].mxu0
  %v3833 = vadd.f32 %v3790, %v3832
  %v3834 = vpop.f32.mrb[0].mxu0
  %v3835 = vadd.f32 %v3792, %v3834
  %v3836 = vpop.f32.mrb[0].mxu0
  %v3837 = vadd.f32 %v3794, %v3836
  %3838 = vdwg.mxu0
  %3839 = vmatprep.subr.bf16.mxu0 %v2432
  %3840 = vmatpush1.bf16.msra.mxu0 %v2431
  %3841 = vmatprep.subr.bf16.mxu0 %v2438
  %3842 = vmatpush1.bf16.msra.mxu0 %v2437
  %3843 = vmatprep.subr.bf16.mxu0 %v2444
  %3844 = vmatpush1.bf16.msra.mxu0 %v2443
  %3845 = vmatprep.subr.bf16.mxu0 %v2450
  %3846 = vmatpush1.bf16.msra.mxu0 %v2449
  %3847 = vmatprep.subr.bf16.mxu0 %v2456
  %3848 = vmatpush1.bf16.msra.mxu0 %v2455
  %3849 = vmatprep.subr.bf16.mxu0 %v2462
  %3850 = vmatpush1.bf16.msra.mxu0 %v2461
  %3851 = vmatprep.subr.bf16.mxu0 %v2468
  %3852 = vmatpush1.bf16.msra.mxu0 %v2467
  %3853 = vmatprep.subr.bf16.mxu0 %v2474
  %3854 = vmatpush1.bf16.msra.mxu0 %v2473
  %3855 = vmatprep.subr.bf16.mxu0 %v2480
  %3856 = vmatpush1.bf16.msra.mxu0 %v2479
  %3857 = vmatprep.subr.bf16.mxu0 %v2486
  %3858 = vmatpush1.bf16.msra.mxu0 %v2485
  %3859 = vmatprep.subr.bf16.mxu0 %v2492
  %3860 = vmatpush1.bf16.msra.mxu0 %v2491
  %3861 = vmatprep.subr.bf16.mxu0 %v2498
  %3862 = vmatpush1.bf16.msra.mxu0 %v2497
  %3863 = vmatprep.subr.bf16.mxu0 %v2504
  %3864 = vmatpush1.bf16.msra.mxu0 %v2503
  %3865 = vmatprep.subr.bf16.mxu0 %v2510
  %3866 = vmatpush1.bf16.msra.mxu0 %v2509
  %3867 = vmatprep.subr.bf16.mxu0 %v2516
  %3868 = vmatpush1.bf16.msra.mxu0 %v2515
  %3869 = vmatprep.subr.bf16.mxu0 %v2522
  %3870 = vmatpush1.bf16.msra.mxu0 %v2521
  %3871 = vmatprep.mubr.bf16.mxu0 %v678
  %3872 = vmatmul.mubr.bf16.gmra.mrb[0].mxu0 %v677
  %v3873 = vpop.f32.mrb[0].mxu0
  %v3874 = vadd.f32 %v622, %v3873
  %v3875 = vpop.f32.mrb[0].mxu0
  %v3876 = vadd.f32 %v626, %v3875
  %v3877 = vpop.f32.mrb[0].mxu0
  %v3878 = vadd.f32 %v622, %v3877
  %v3879 = vpop.f32.mrb[0].mxu0
  %v3880 = vadd.f32 %v626, %v3879
  %3881 = vdwg.mxu0
  %3882 = vmatprep.subr.bf16.mxu0 %v2528
  %3883 = vmatpush1.bf16.msra.mxu0 %v2527
  %3884 = vmatprep.subr.bf16.mxu0 %v2534
  %3885 = vmatpush1.bf16.msra.mxu0 %v2533
  %3886 = vmatprep.subr.bf16.mxu0 %v2540
  %3887 = vmatpush1.bf16.msra.mxu0 %v2539
  %3888 = vmatprep.subr.bf16.mxu0 %v2546
  %3889 = vmatpush1.bf16.msra.mxu0 %v2545
  %3890 = vmatprep.subr.bf16.mxu0 %v2552
  %3891 = vmatpush1.bf16.msra.mxu0 %v2551
  %3892 = vmatprep.subr.bf16.mxu0 %v2558
  %3893 = vmatpush1.bf16.msra.mxu0 %v2557
  %3894 = vmatprep.subr.bf16.mxu0 %v2564
  %3895 = vmatpush1.bf16.msra.mxu0 %v2563
  %3896 = vmatprep.subr.bf16.mxu0 %v2570
  %3897 = vmatpush1.bf16.msra.mxu0 %v2569
  %3898 = vmatprep.subr.bf16.mxu0 %v2576
  %3899 = vmatpush1.bf16.msra.mxu0 %v2575
  %3900 = vmatprep.subr.bf16.mxu0 %v2582
  %3901 = vmatpush1.bf16.msra.mxu0 %v2581
  %3902 = vmatprep.subr.bf16.mxu0 %v2588
  %3903 = vmatpush1.bf16.msra.mxu0 %v2587
  %3904 = vmatprep.subr.bf16.mxu0 %v2594
  %3905 = vmatpush1.bf16.msra.mxu0 %v2593
  %3906 = vmatprep.subr.bf16.mxu0 %v2600
  %3907 = vmatpush1.bf16.msra.mxu0 %v2599
  %3908 = vmatprep.subr.bf16.mxu0 %v2606
  %3909 = vmatpush1.bf16.msra.mxu0 %v2605
  %3910 = vmatprep.subr.bf16.mxu0 %v2612
  %3911 = vmatpush1.bf16.msra.mxu0 %v2611
  %3912 = vmatprep.subr.bf16.mxu0 %v2618
  %3913 = vmatpush1.bf16.msra.mxu0 %v2617
  %3914 = vmatprep.mubr.bf16.mxu0 %v680
  %3915 = vmatmul.mubr.bf16.gmra.mrb[0].mxu0 %v679
  %v3916 = vpop.f32.mrb[0].mxu0
  %v3917 = vadd.f32 %v3874, %v3916
  %v3918 = vpop.f32.mrb[0].mxu0
  %v3919 = vadd.f32 %v3876, %v3918
  %v3920 = vpop.f32.mrb[0].mxu0
  %v3921 = vadd.f32 %v3878, %v3920
  %v3922 = vpop.f32.mrb[0].mxu0
  %v3923 = vadd.f32 %v3880, %v3922
  %3924 = vdwg.mxu0
  %3925 = vmatprep.subr.bf16.mxu0 %v2624
  %3926 = vmatpush1.bf16.msra.mxu0 %v2623
  %3927 = vmatprep.subr.bf16.mxu0 %v2630
  %3928 = vmatpush1.bf16.msra.mxu0 %v2629
  %3929 = vmatprep.subr.bf16.mxu0 %v2636
  %3930 = vmatpush1.bf16.msra.mxu0 %v2635
  %3931 = vmatprep.subr.bf16.mxu0 %v2642
  %3932 = vmatpush1.bf16.msra.mxu0 %v2641
  %3933 = vmatprep.subr.bf16.mxu0 %v2648
  %3934 = vmatpush1.bf16.msra.mxu0 %v2647
  %3935 = vmatprep.subr.bf16.mxu0 %v2654
  %3936 = vmatpush1.bf16.msra.mxu0 %v2653
  %3937 = vmatprep.subr.bf16.mxu0 %v2660
  %3938 = vmatpush1.bf16.msra.mxu0 %v2659
  %3939 = vmatprep.subr.bf16.mxu0 %v2666
  %3940 = vmatpush1.bf16.msra.mxu0 %v2665
  %3941 = vmatprep.subr.bf16.mxu0 %v2672
  %3942 = vmatpush1.bf16.msra.mxu0 %v2671
  %3943 = vmatprep.subr.bf16.mxu0 %v2678
  %3944 = vmatpush1.bf16.msra.mxu0 %v2677
  %3945 = vmatprep.subr.bf16.mxu0 %v2684
  %3946 = vmatpush1.bf16.msra.mxu0 %v2683
  %3947 = vmatprep.subr.bf16.mxu0 %v2690
  %3948 = vmatpush1.bf16.msra.mxu0 %v2689
  %3949 = vmatprep.subr.bf16.mxu0 %v2696
  %3950 = vmatpush1.bf16.msra.mxu0 %v2695
  %3951 = vmatprep.subr.bf16.mxu0 %v2702
  %3952 = vmatpush1.bf16.msra.mxu0 %v2701
  %3953 = vmatprep.subr.bf16.mxu0 %v2708
  %3954 = vmatpush1.bf16.msra.mxu0 %v2707
  %3955 = vmatprep.subr.bf16.mxu0 %v2714
  %3956 = vmatpush1.bf16.msra.mxu0 %v2713
  %3957 = vmatprep.mubr.bf16.mxu0 %v682
  %3958 = vmatmul.mubr.bf16.gmra.mrb[0].mxu0 %v681
  %v3959 = vpop.f32.mrb[0].mxu0
  %v3960 = vadd.f32 %v3917, %v3959
  %v3961 = vpop.f32.mrb[0].mxu0
  %v3962 = vadd.f32 %v3919, %v3961
  %v3963 = vpop.f32.mrb[0].mxu0
  %v3964 = vadd.f32 %v3921, %v3963
  %v3965 = vpop.f32.mrb[0].mxu0
  %v3966 = vadd.f32 %v3923, %v3965
  %3967 = vdwg.mxu0
  %3968 = vmatprep.subr.bf16.mxu0 %v2720
  %3969 = vmatpush1.bf16.msra.mxu0 %v2719
  %3970 = vmatprep.subr.bf16.mxu0 %v2726
  %3971 = vmatpush1.bf16.msra.mxu0 %v2725
  %3972 = vmatprep.subr.bf16.mxu0 %v2732
  %3973 = vmatpush1.bf16.msra.mxu0 %v2731
  %3974 = vmatprep.subr.bf16.mxu0 %v2738
  %3975 = vmatpush1.bf16.msra.mxu0 %v2737
  %3976 = vmatprep.subr.bf16.mxu0 %v2744
  %3977 = vmatpush1.bf16.msra.mxu0 %v2743
  %3978 = vmatprep.subr.bf16.mxu0 %v2750
  %3979 = vmatpush1.bf16.msra.mxu0 %v2749
  %3980 = vmatprep.subr.bf16.mxu0 %v2756
  %3981 = vmatpush1.bf16.msra.mxu0 %v2755
  %3982 = vmatprep.subr.bf16.mxu0 %v2762
  %3983 = vmatpush1.bf16.msra.mxu0 %v2761
  %3984 = vmatprep.subr.bf16.mxu0 %v2768
  %3985 = vmatpush1.bf16.msra.mxu0 %v2767
  %3986 = vmatprep.subr.bf16.mxu0 %v2774
  %3987 = vmatpush1.bf16.msra.mxu0 %v2773
  %3988 = vmatprep.subr.bf16.mxu0 %v2780
  %3989 = vmatpush1.bf16.msra.mxu0 %v2779
  %3990 = vmatprep.subr.bf16.mxu0 %v2786
  %3991 = vmatpush1.bf16.msra.mxu0 %v2785
  %3992 = vmatprep.subr.bf16.mxu0 %v2792
  %3993 = vmatpush1.bf16.msra.mxu0 %v2791
  %3994 = vmatprep.subr.bf16.mxu0 %v2798
  %3995 = vmatpush1.bf16.msra.mxu0 %v2797
  %3996 = vmatprep.subr.bf16.mxu0 %v2804
  %3997 = vmatpush1.bf16.msra.mxu0 %v2803
  %3998 = vmatprep.subr.bf16.mxu0 %v2810
  %3999 = vmatpush1.bf16.msra.mxu0 %v2809
  %4000 = vmatprep.mubr.bf16.mxu0 %v684
  %4001 = vmatmul.mubr.bf16.gmra.mrb[0].mxu0 %v683
  %v4002 = vpop.f32.mrb[0].mxu0
  %v4003 = vadd.f32 %v3960, %v4002
  %v4004 = vpop.f32.mrb[0].mxu0
  %v4005 = vadd.f32 %v3962, %v4004
  %v4006 = vpop.f32.mrb[0].mxu0
  %v4007 = vadd.f32 %v3964, %v4006
  %v4008 = vpop.f32.mrb[0].mxu0
  %v4009 = vadd.f32 %v3966, %v4008
  %4010 = vdwg.mxu0
  %4011 = vmatprep.subr.bf16.mxu0 %v2816
  %4012 = vmatpush1.bf16.msra.mxu0 %v2815
  %4013 = vmatprep.subr.bf16.mxu0 %v2822
  %4014 = vmatpush1.bf16.msra.mxu0 %v2821
  %4015 = vmatprep.subr.bf16.mxu0 %v2828
  %4016 = vmatpush1.bf16.msra.mxu0 %v2827
  %4017 = vmatprep.subr.bf16.mxu0 %v2834
  %4018 = vmatpush1.bf16.msra.mxu0 %v2833
  %4019 = vmatprep.subr.bf16.mxu0 %v2840
  %4020 = vmatpush1.bf16.msra.mxu0 %v2839
  %4021 = vmatprep.subr.bf16.mxu0 %v2846
  %4022 = vmatpush1.bf16.msra.mxu0 %v2845
  %4023 = vmatprep.subr.bf16.mxu0 %v2852
  %4024 = vmatpush1.bf16.msra.mxu0 %v2851
  %4025 = vmatprep.subr.bf16.mxu0 %v2858
  %4026 = vmatpush1.bf16.msra.mxu0 %v2857
  %4027 = vmatprep.subr.bf16.mxu0 %v2864
  %4028 = vmatpush1.bf16.msra.mxu0 %v2863
  %4029 = vmatprep.subr.bf16.mxu0 %v2870
  %4030 = vmatpush1.bf16.msra.mxu0 %v2869
  %4031 = vmatprep.subr.bf16.mxu0 %v2876
  %4032 = vmatpush1.bf16.msra.mxu0 %v2875
  %4033 = vmatprep.subr.bf16.mxu0 %v2882
  %4034 = vmatpush1.bf16.msra.mxu0 %v2881
  %4035 = vmatprep.subr.bf16.mxu0 %v2888
  %4036 = vmatpush1.bf16.msra.mxu0 %v2887
  %4037 = vmatprep.subr.bf16.mxu0 %v2894
  %4038 = vmatpush1.bf16.msra.mxu0 %v2893
  %4039 = vmatprep.subr.bf16.mxu0 %v2900
  %4040 = vmatpush1.bf16.msra.mxu0 %v2899
  %4041 = vmatprep.subr.bf16.mxu0 %v2906
  %4042 = vmatpush1.bf16.msra.mxu0 %v2905
  %4043 = vmatprep.mubr.bf16.mxu0 %v686
  %4044 = vmatmul.mubr.bf16.gmra.mrb[0].mxu0 %v685
  %v4045 = vpop.f32.mrb[0].mxu0
  %v4046 = vadd.f32 %v4003, %v4045
  %v4047 = vpop.f32.mrb[0].mxu0
  %v4048 = vadd.f32 %v4005, %v4047
  %v4049 = vpop.f32.mrb[0].mxu0
  %v4050 = vadd.f32 %v4007, %v4049
  %v4051 = vpop.f32.mrb[0].mxu0
  %v4052 = vadd.f32 %v4009, %v4051
  %4053 = vdwg.mxu0
  %4054 = vmatprep.subr.bf16.mxu0 %v2912
  %4055 = vmatpush1.bf16.msra.mxu0 %v2911
  %4056 = vmatprep.subr.bf16.mxu0 %v2918
  %4057 = vmatpush1.bf16.msra.mxu0 %v2917
  %4058 = vmatprep.subr.bf16.mxu0 %v2924
  %4059 = vmatpush1.bf16.msra.mxu0 %v2923
  %4060 = vmatprep.subr.bf16.mxu0 %v2930
  %4061 = vmatpush1.bf16.msra.mxu0 %v2929
  %4062 = vmatprep.subr.bf16.mxu0 %v2936
  %4063 = vmatpush1.bf16.msra.mxu0 %v2935
  %4064 = vmatprep.subr.bf16.mxu0 %v2942
  %4065 = vmatpush1.bf16.msra.mxu0 %v2941
  %4066 = vmatprep.subr.bf16.mxu0 %v2948
  %4067 = vmatpush1.bf16.msra.mxu0 %v2947
  %4068 = vmatprep.subr.bf16.mxu0 %v2954
  %4069 = vmatpush1.bf16.msra.mxu0 %v2953
  %4070 = vmatprep.subr.bf16.mxu0 %v2960
  %4071 = vmatpush1.bf16.msra.mxu0 %v2959
  %4072 = vmatprep.subr.bf16.mxu0 %v2966
  %4073 = vmatpush1.bf16.msra.mxu0 %v2965
  %4074 = vmatprep.subr.bf16.mxu0 %v2972
  %4075 = vmatpush1.bf16.msra.mxu0 %v2971
  %4076 = vmatprep.subr.bf16.mxu0 %v2978
  %4077 = vmatpush1.bf16.msra.mxu0 %v2977
  %4078 = vmatprep.subr.bf16.mxu0 %v2984
  %4079 = vmatpush1.bf16.msra.mxu0 %v2983
  %4080 = vmatprep.subr.bf16.mxu0 %v2990
  %4081 = vmatpush1.bf16.msra.mxu0 %v2989
  %4082 = vmatprep.subr.bf16.mxu0 %v2996
  %4083 = vmatpush1.bf16.msra.mxu0 %v2995
  %4084 = vmatprep.subr.bf16.mxu0 %v3002
  %4085 = vmatpush1.bf16.msra.mxu0 %v3001
  %4086 = vmatprep.mubr.bf16.mxu0 %v688
  %4087 = vmatmul.mubr.bf16.gmra.mrb[0].mxu0 %v687
  %v4088 = vpop.f32.mrb[0].mxu0
  %v4089 = vadd.f32 %v4046, %v4088
  %v4090 = vpop.f32.mrb[0].mxu0
  %v4091 = vadd.f32 %v4048, %v4090
  %v4092 = vpop.f32.mrb[0].mxu0
  %v4093 = vadd.f32 %v4050, %v4092
  %v4094 = vpop.f32.mrb[0].mxu0
  %v4095 = vadd.f32 %v4052, %v4094
  %4096 = vdwg.mxu0
  %4097 = vmatprep.subr.bf16.mxu0 %v2434
  %4098 = vmatpush1.bf16.msra.mxu0 %v2433
  %4099 = vmatprep.subr.bf16.mxu0 %v2440
  %4100 = vmatpush1.bf16.msra.mxu0 %v2439
  %4101 = vmatprep.subr.bf16.mxu0 %v2446
  %4102 = vmatpush1.bf16.msra.mxu0 %v2445
  %4103 = vmatprep.subr.bf16.mxu0 %v2452
  %4104 = vmatpush1.bf16.msra.mxu0 %v2451
  %4105 = vmatprep.subr.bf16.mxu0 %v2458
  %4106 = vmatpush1.bf16.msra.mxu0 %v2457
  %4107 = vmatprep.subr.bf16.mxu0 %v2464
  %4108 = vmatpush1.bf16.msra.mxu0 %v2463
  %4109 = vmatprep.subr.bf16.mxu0 %v2470
  %4110 = vmatpush1.bf16.msra.mxu0 %v2469
  %4111 = vmatprep.subr.bf16.mxu0 %v2476
  %4112 = vmatpush1.bf16.msra.mxu0 %v2475
  %4113 = vmatprep.subr.bf16.mxu0 %v2482
  %4114 = vmatpush1.bf16.msra.mxu0 %v2481
  %4115 = vmatprep.subr.bf16.mxu0 %v2488
  %4116 = vmatpush1.bf16.msra.mxu0 %v2487
  %4117 = vmatprep.subr.bf16.mxu0 %v2494
  %4118 = vmatpush1.bf16.msra.mxu0 %v2493
  %4119 = vmatprep.subr.bf16.mxu0 %v2500
  %4120 = vmatpush1.bf16.msra.mxu0 %v2499
  %4121 = vmatprep.subr.bf16.mxu0 %v2506
  %4122 = vmatpush1.bf16.msra.mxu0 %v2505
  %4123 = vmatprep.subr.bf16.mxu0 %v2512
  %4124 = vmatpush1.bf16.msra.mxu0 %v2511
  %4125 = vmatprep.subr.bf16.mxu0 %v2518
  %4126 = vmatpush1.bf16.msra.mxu0 %v2517
  %4127 = vmatprep.subr.bf16.mxu0 %v2524
  %4128 = vmatpush1.bf16.msra.mxu0 %v2523
  %4129 = vmatprep.mubr.bf16.mxu0 %v678
  %4130 = vmatmul.mubr.bf16.gmra.mrb[0].mxu0 %v677
  %v4131 = vpop.f32.mrb[0].mxu0
  %v4132 = vadd.f32 %v630, %v4131
  %v4133 = vpop.f32.mrb[0].mxu0
  %v4134 = vadd.f32 %v634, %v4133
  %v4135 = vpop.f32.mrb[0].mxu0
  %v4136 = vadd.f32 %v630, %v4135
  %v4137 = vpop.f32.mrb[0].mxu0
  %v4138 = vadd.f32 %v634, %v4137
  %4139 = vdwg.mxu0
  %4140 = vmatprep.subr.bf16.mxu0 %v2530
  %4141 = vmatpush1.bf16.msra.mxu0 %v2529
  %4142 = vmatprep.subr.bf16.mxu0 %v2536
  %4143 = vmatpush1.bf16.msra.mxu0 %v2535
  %4144 = vmatprep.subr.bf16.mxu0 %v2542
  %4145 = vmatpush1.bf16.msra.mxu0 %v2541
  %4146 = vmatprep.subr.bf16.mxu0 %v2548
  %4147 = vmatpush1.bf16.msra.mxu0 %v2547
  %4148 = vmatprep.subr.bf16.mxu0 %v2554
  %4149 = vmatpush1.bf16.msra.mxu0 %v2553
  %4150 = vmatprep.subr.bf16.mxu0 %v2560
  %4151 = vmatpush1.bf16.msra.mxu0 %v2559
  %4152 = vmatprep.subr.bf16.mxu0 %v2566
  %4153 = vmatpush1.bf16.msra.mxu0 %v2565
  %4154 = vmatprep.subr.bf16.mxu0 %v2572
  %4155 = vmatpush1.bf16.msra.mxu0 %v2571
  %4156 = vmatprep.subr.bf16.mxu0 %v2578
  %4157 = vmatpush1.bf16.msra.mxu0 %v2577
  %4158 = vmatprep.subr.bf16.mxu0 %v2584
  %4159 = vmatpush1.bf16.msra.mxu0 %v2583
  %4160 = vmatprep.subr.bf16.mxu0 %v2590
  %4161 = vmatpush1.bf16.msra.mxu0 %v2589
  %4162 = vmatprep.subr.bf16.mxu0 %v2596
  %4163 = vmatpush1.bf16.msra.mxu0 %v2595
  %4164 = vmatprep.subr.bf16.mxu0 %v2602
  %4165 = vmatpush1.bf16.msra.mxu0 %v2601
  %4166 = vmatprep.subr.bf16.mxu0 %v2608
  %4167 = vmatpush1.bf16.msra.mxu0 %v2607
  %4168 = vmatprep.subr.bf16.mxu0 %v2614
  %4169 = vmatpush1.bf16.msra.mxu0 %v2613
  %4170 = vmatprep.subr.bf16.mxu0 %v2620
  %4171 = vmatpush1.bf16.msra.mxu0 %v2619
  %4172 = vmatprep.mubr.bf16.mxu0 %v680
  %4173 = vmatmul.mubr.bf16.gmra.mrb[0].mxu0 %v679
  %v4174 = vpop.f32.mrb[0].mxu0
  %v4175 = vadd.f32 %v4132, %v4174
  %v4176 = vpop.f32.mrb[0].mxu0
  %v4177 = vadd.f32 %v4134, %v4176
  %v4178 = vpop.f32.mrb[0].mxu0
  %v4179 = vadd.f32 %v4136, %v4178
  %v4180 = vpop.f32.mrb[0].mxu0
  %v4181 = vadd.f32 %v4138, %v4180
  %4182 = vdwg.mxu0
  %4183 = vmatprep.subr.bf16.mxu0 %v2626
  %4184 = vmatpush1.bf16.msra.mxu0 %v2625
  %4185 = vmatprep.subr.bf16.mxu0 %v2632
  %4186 = vmatpush1.bf16.msra.mxu0 %v2631
  %4187 = vmatprep.subr.bf16.mxu0 %v2638
  %4188 = vmatpush1.bf16.msra.mxu0 %v2637
  %4189 = vmatprep.subr.bf16.mxu0 %v2644
  %4190 = vmatpush1.bf16.msra.mxu0 %v2643
  %4191 = vmatprep.subr.bf16.mxu0 %v2650
  %4192 = vmatpush1.bf16.msra.mxu0 %v2649
  %4193 = vmatprep.subr.bf16.mxu0 %v2656
  %4194 = vmatpush1.bf16.msra.mxu0 %v2655
  %4195 = vmatprep.subr.bf16.mxu0 %v2662
  %4196 = vmatpush1.bf16.msra.mxu0 %v2661
  %4197 = vmatprep.subr.bf16.mxu0 %v2668
  %4198 = vmatpush1.bf16.msra.mxu0 %v2667
  %4199 = vmatprep.subr.bf16.mxu0 %v2674
  %4200 = vmatpush1.bf16.msra.mxu0 %v2673
  %4201 = vmatprep.subr.bf16.mxu0 %v2680
  %4202 = vmatpush1.bf16.msra.mxu0 %v2679
  %4203 = vmatprep.subr.bf16.mxu0 %v2686
  %4204 = vmatpush1.bf16.msra.mxu0 %v2685
  %4205 = vmatprep.subr.bf16.mxu0 %v2692
  %4206 = vmatpush1.bf16.msra.mxu0 %v2691
  %4207 = vmatprep.subr.bf16.mxu0 %v2698
  %4208 = vmatpush1.bf16.msra.mxu0 %v2697
  %4209 = vmatprep.subr.bf16.mxu0 %v2704
  %4210 = vmatpush1.bf16.msra.mxu0 %v2703
  %4211 = vmatprep.subr.bf16.mxu0 %v2710
  %4212 = vmatpush1.bf16.msra.mxu0 %v2709
  %4213 = vmatprep.subr.bf16.mxu0 %v2716
  %4214 = vmatpush1.bf16.msra.mxu0 %v2715
  %4215 = vmatprep.mubr.bf16.mxu0 %v682
  %4216 = vmatmul.mubr.bf16.gmra.mrb[0].mxu0 %v681
  %v4217 = vpop.f32.mrb[0].mxu0
  %v4218 = vadd.f32 %v4175, %v4217
  %v4219 = vpop.f32.mrb[0].mxu0
  %v4220 = vadd.f32 %v4177, %v4219
  %v4221 = vpop.f32.mrb[0].mxu0
  %v4222 = vadd.f32 %v4179, %v4221
  %v4223 = vpop.f32.mrb[0].mxu0
  %v4224 = vadd.f32 %v4181, %v4223
  %4225 = vdwg.mxu0
  %4226 = vmatprep.subr.bf16.mxu0 %v2722
  %4227 = vmatpush1.bf16.msra.mxu0 %v2721
  %4228 = vmatprep.subr.bf16.mxu0 %v2728
  %4229 = vmatpush1.bf16.msra.mxu0 %v2727
  %4230 = vmatprep.subr.bf16.mxu0 %v2734
  %4231 = vmatpush1.bf16.msra.mxu0 %v2733
  %4232 = vmatprep.subr.bf16.mxu0 %v2740
  %4233 = vmatpush1.bf16.msra.mxu0 %v2739
  %4234 = vmatprep.subr.bf16.mxu0 %v2746
  %4235 = vmatpush1.bf16.msra.mxu0 %v2745
  %4236 = vmatprep.subr.bf16.mxu0 %v2752
  %4237 = vmatpush1.bf16.msra.mxu0 %v2751
  %4238 = vmatprep.subr.bf16.mxu0 %v2758
  %4239 = vmatpush1.bf16.msra.mxu0 %v2757
  %4240 = vmatprep.subr.bf16.mxu0 %v2764
  %4241 = vmatpush1.bf16.msra.mxu0 %v2763
  %4242 = vmatprep.subr.bf16.mxu0 %v2770
  %4243 = vmatpush1.bf16.msra.mxu0 %v2769
  %4244 = vmatprep.subr.bf16.mxu0 %v2776
  %4245 = vmatpush1.bf16.msra.mxu0 %v2775
  %4246 = vmatprep.subr.bf16.mxu0 %v2782
  %4247 = vmatpush1.bf16.msra.mxu0 %v2781
  %4248 = vmatprep.subr.bf16.mxu0 %v2788
  %4249 = vmatpush1.bf16.msra.mxu0 %v2787
  %4250 = vmatprep.subr.bf16.mxu0 %v2794
  %4251 = vmatpush1.bf16.msra.mxu0 %v2793
  %4252 = vmatprep.subr.bf16.mxu0 %v2800
  %4253 = vmatpush1.bf16.msra.mxu0 %v2799
  %4254 = vmatprep.subr.bf16.mxu0 %v2806
  %4255 = vmatpush1.bf16.msra.mxu0 %v2805
  %4256 = vmatprep.subr.bf16.mxu0 %v2812
  %4257 = vmatpush1.bf16.msra.mxu0 %v2811
  %4258 = vmatprep.mubr.bf16.mxu0 %v684
  %4259 = vmatmul.mubr.bf16.gmra.mrb[0].mxu0 %v683
  %v4260 = vpop.f32.mrb[0].mxu0
  %v4261 = vadd.f32 %v4218, %v4260
  %v4262 = vpop.f32.mrb[0].mxu0
  %v4263 = vadd.f32 %v4220, %v4262
  %v4264 = vpop.f32.mrb[0].mxu0
  %v4265 = vadd.f32 %v4222, %v4264
  %v4266 = vpop.f32.mrb[0].mxu0
  %v4267 = vadd.f32 %v4224, %v4266
  %4268 = vdwg.mxu0
  %4269 = vmatprep.subr.bf16.mxu0 %v2818
  %4270 = vmatpush1.bf16.msra.mxu0 %v2817
  %4271 = vmatprep.subr.bf16.mxu0 %v2824
  %4272 = vmatpush1.bf16.msra.mxu0 %v2823
  %4273 = vmatprep.subr.bf16.mxu0 %v2830
  %4274 = vmatpush1.bf16.msra.mxu0 %v2829
  %4275 = vmatprep.subr.bf16.mxu0 %v2836
  %4276 = vmatpush1.bf16.msra.mxu0 %v2835
  %4277 = vmatprep.subr.bf16.mxu0 %v2842
  %4278 = vmatpush1.bf16.msra.mxu0 %v2841
  %4279 = vmatprep.subr.bf16.mxu0 %v2848
  %4280 = vmatpush1.bf16.msra.mxu0 %v2847
  %4281 = vmatprep.subr.bf16.mxu0 %v2854
  %4282 = vmatpush1.bf16.msra.mxu0 %v2853
  %4283 = vmatprep.subr.bf16.mxu0 %v2860
  %4284 = vmatpush1.bf16.msra.mxu0 %v2859
  %4285 = vmatprep.subr.bf16.mxu0 %v2866
  %4286 = vmatpush1.bf16.msra.mxu0 %v2865
  %4287 = vmatprep.subr.bf16.mxu0 %v2872
  %4288 = vmatpush1.bf16.msra.mxu0 %v2871
  %4289 = vmatprep.subr.bf16.mxu0 %v2878
  %4290 = vmatpush1.bf16.msra.mxu0 %v2877
  %4291 = vmatprep.subr.bf16.mxu0 %v2884
  %4292 = vmatpush1.bf16.msra.mxu0 %v2883
  %4293 = vmatprep.subr.bf16.mxu0 %v2890
  %4294 = vmatpush1.bf16.msra.mxu0 %v2889
  %4295 = vmatprep.subr.bf16.mxu0 %v2896
  %4296 = vmatpush1.bf16.msra.mxu0 %v2895
  %4297 = vmatprep.subr.bf16.mxu0 %v2902
  %4298 = vmatpush1.bf16.msra.mxu0 %v2901
  %4299 = vmatprep.subr.bf16.mxu0 %v2908
  %4300 = vmatpush1.bf16.msra.mxu0 %v2907
  %4301 = vmatprep.mubr.bf16.mxu0 %v686
  %4302 = vmatmul.mubr.bf16.gmra.mrb[0].mxu0 %v685
  %v4303 = vpop.f32.mrb[0].mxu0
  %v4304 = vadd.f32 %v4261, %v4303
  %v4305 = vpop.f32.mrb[0].mxu0
  %v4306 = vadd.f32 %v4263, %v4305
  %v4307 = vpop.f32.mrb[0].mxu0
  %v4308 = vadd.f32 %v4265, %v4307
  %v4309 = vpop.f32.mrb[0].mxu0
  %v4310 = vadd.f32 %v4267, %v4309
  %4311 = vdwg.mxu0
  %4312 = vmatprep.subr.bf16.mxu0 %v2914
  %4313 = vmatpush1.bf16.msra.mxu0 %v2913
  %4314 = vmatprep.subr.bf16.mxu0 %v2920
  %4315 = vmatpush1.bf16.msra.mxu0 %v2919
  %4316 = vmatprep.subr.bf16.mxu0 %v2926
  %4317 = vmatpush1.bf16.msra.mxu0 %v2925
  %4318 = vmatprep.subr.bf16.mxu0 %v2932
  %4319 = vmatpush1.bf16.msra.mxu0 %v2931
  %4320 = vmatprep.subr.bf16.mxu0 %v2938
  %4321 = vmatpush1.bf16.msra.mxu0 %v2937
  %4322 = vmatprep.subr.bf16.mxu0 %v2944
  %4323 = vmatpush1.bf16.msra.mxu0 %v2943
  %4324 = vmatprep.subr.bf16.mxu0 %v2950
  %4325 = vmatpush1.bf16.msra.mxu0 %v2949
  %4326 = vmatprep.subr.bf16.mxu0 %v2956
  %4327 = vmatpush1.bf16.msra.mxu0 %v2955
  %4328 = vmatprep.subr.bf16.mxu0 %v2962
  %4329 = vmatpush1.bf16.msra.mxu0 %v2961
  %4330 = vmatprep.subr.bf16.mxu0 %v2968
  %4331 = vmatpush1.bf16.msra.mxu0 %v2967
  %4332 = vmatprep.subr.bf16.mxu0 %v2974
  %4333 = vmatpush1.bf16.msra.mxu0 %v2973
  %4334 = vmatprep.subr.bf16.mxu0 %v2980
  %4335 = vmatpush1.bf16.msra.mxu0 %v2979
  %4336 = vmatprep.subr.bf16.mxu0 %v2986
  %4337 = vmatpush1.bf16.msra.mxu0 %v2985
  %4338 = vmatprep.subr.bf16.mxu0 %v2992
  %4339 = vmatpush1.bf16.msra.mxu0 %v2991
  %4340 = vmatprep.subr.bf16.mxu0 %v2998
  %4341 = vmatpush1.bf16.msra.mxu0 %v2997
  %4342 = vmatprep.subr.bf16.mxu0 %v3004
  %4343 = vmatpush1.bf16.msra.mxu0 %v3003
  %4344 = vmatprep.mubr.bf16.mxu0 %v688
  %4345 = vmatmul.mubr.bf16.gmra.mrb[0].mxu0 %v687
  %v4346 = vpop.f32.mrb[0].mxu0
  %v4347 = vadd.f32 %v4304, %v4346
  %v4348 = vpop.f32.mrb[0].mxu0
  %v4349 = vadd.f32 %v4306, %v4348
  %v4350 = vpop.f32.mrb[0].mxu0
  %v4351 = vadd.f32 %v4308, %v4350
  %v4352 = vpop.f32.mrb[0].mxu0
  %v4353 = vadd.f32 %v4310, %v4352
  %4354 = vdwg.mxu0
  %v4355 = vmax.f32 %v3831, 0.0
  %v4356 = vmax.f32 %v3833, 0.0
  %v4357 = vmax.f32 %v4089, 0.0
  %v4358 = vmax.f32 %v4091, 0.0
  %v4359 = vmax.f32 %v4347, 0.0
  %v4360 = vmax.f32 %v4349, 0.0
  %v4361 = vmax.f32 %v3835, 0.0
  %v4362 = vmax.f32 %v3837, 0.0
  %v4363 = vmax.f32 %v4093, 0.0
  %v4364 = vmax.f32 %v4095, 0.0
  %v4365 = vmax.f32 %v4351, 0.0
  %v4366 = vmax.f32 %v4353, 0.0
  %v4367 = vpack.c.bf16 %v4361, %v4355
  %v4368 = vpack.c.bf16 %v4362, %v4356
  %v4369 = vpack.c.bf16 %v4363, %v4357
  %v4370 = vpack.c.bf16 %v4364, %v4358
  %v4371 = vpack.c.bf16 %v4365, %v4359
  %v4372 = vpack.c.bf16 %v4366, %v4360
  %v4373 = vld [vmem:[%s3] sm:$0xf]
  %v4374 = vld [vmem:[%s3 + $0x4] sm:$0xf]
  %v4375 = vld [vmem:[%s3 + $0x8] sm:$0xf]
  %v4376 = vld [vmem:[%s3 + $0xc] sm:$0xf]
  %v4377 = vld [vmem:[%s3 + $0x10] sm:$0xf]
  %v4378 = vld [vmem:[%s3 + $0x14] sm:$0xf]
  %v4379 = vld [vmem:[%s3 + $0x18] sm:$0xf]
  %v4380 = vld [vmem:[%s3 + $0x1c] sm:$0xf]
  %v4381 = vld [vmem:[%s3 + $0x20] sm:$0xf]
  %v4382 = vld [vmem:[%s3 + $0x24] sm:$0xf]
  %v4383 = vld [vmem:[%s3 + $0x28] sm:$0xf]
  %v4384 = vld [vmem:[%s3 + $0x2c] sm:$0xf]
  %v4385 = vld [vmem:[%s3 + $0x30] sm:$0xf]
  %v4386 = vld [vmem:[%s3 + $0x34] sm:$0xf]
  %v4387 = vld [vmem:[%s3 + $0x38] sm:$0xf]
  %v4388 = vld [vmem:[%s3 + $0x3c] sm:$0xf]
  %v4389 = vld [vmem:[%s3 + $0x40] sm:$0xf]
  %v4390 = vld [vmem:[%s3 + $0x44] sm:$0xf]
  %v4391 = vld [vmem:[%s3 + $0x48] sm:$0xf]
  %v4392 = vld [vmem:[%s3 + $0x4c] sm:$0xf]
  %v4393 = vld [vmem:[%s3 + $0x50] sm:$0xf]
  %v4394 = vld [vmem:[%s3 + $0x54] sm:$0xf]
  %v4395 = vld [vmem:[%s3 + $0x58] sm:$0xf]
  %v4396 = vld [vmem:[%s3 + $0x5c] sm:$0xf]
  %v4397 = vld [vmem:[%s3 + $0x60] sm:$0xf]
  %v4398 = vld [vmem:[%s3 + $0x64] sm:$0xf]
  %v4399 = vld [vmem:[%s3 + $0x68] sm:$0xf]
  %v4400 = vld [vmem:[%s3 + $0x6c] sm:$0xf]
  %v4401 = vld [vmem:[%s3 + $0x70] sm:$0xf]
  %v4402 = vld [vmem:[%s3 + $0x74] sm:$0xf]
  %v4403 = vld [vmem:[%s3 + $0x78] sm:$0xf]
  %v4404 = vld [vmem:[%s3 + $0x7c] sm:$0xf]
  %v4405 = vld [vmem:[%s3 + $0x80] sm:$0xf]
  %v4406 = vld [vmem:[%s3 + $0x84] sm:$0xf]
  %v4407 = vld [vmem:[%s3 + $0x88] sm:$0xf]
  %v4408 = vld [vmem:[%s3 + $0x8c] sm:$0xf]
  %v4409 = vld [vmem:[%s3 + $0x90] sm:$0xf]
  %v4410 = vld [vmem:[%s3 + $0x94] sm:$0xf]
  %v4411 = vld [vmem:[%s3 + $0x98] sm:$0xf]
  %v4412 = vld [vmem:[%s3 + $0x9c] sm:$0xf]
  %v4413 = vld [vmem:[%s3 + $0xa0] sm:$0xf]
  %v4414 = vld [vmem:[%s3 + $0xa4] sm:$0xf]
  %v4415 = vld [vmem:[%s3 + $0xa8] sm:$0xf]
  %v4416 = vld [vmem:[%s3 + $0xac] sm:$0xf]
  %v4417 = vld [vmem:[%s3 + $0xb0] sm:$0xf]
  %v4418 = vld [vmem:[%s3 + $0xb4] sm:$0xf]
  %v4419 = vld [vmem:[%s3 + $0xb8] sm:$0xf]
  %v4420 = vld [vmem:[%s3 + $0xbc] sm:$0xf]
  %v4421 = vld [vmem:[%s3 + $0xc0] sm:$0xf]
  %v4422 = vld [vmem:[%s3 + $0xc4] sm:$0xf]
  %v4423 = vld [vmem:[%s3 + $0xc8] sm:$0xf]
  %v4424 = vld [vmem:[%s3 + $0xcc] sm:$0xf]
  %v4425 = vld [vmem:[%s3 + $0xd0] sm:$0xf]
  %v4426 = vld [vmem:[%s3 + $0xd4] sm:$0xf]
  %v4427 = vld [vmem:[%s3 + $0xd8] sm:$0xf]
  %v4428 = vld [vmem:[%s3 + $0xdc] sm:$0xf]
  %v4429 = vld [vmem:[%s3 + $0xe0] sm:$0xf]
  %v4430 = vld [vmem:[%s3 + $0xe4] sm:$0xf]
  %v4431 = vld [vmem:[%s3 + $0xe8] sm:$0xf]
  %v4432 = vld [vmem:[%s3 + $0xec] sm:$0xf]
  %v4433 = vld [vmem:[%s3 + $0xf0] sm:$0xf]
  %v4434 = vld [vmem:[%s3 + $0xf4] sm:$0xf]
  %v4435 = vld [vmem:[%s3 + $0xf8] sm:$0xf]
  %v4436 = vld [vmem:[%s3 + $0xfc] sm:$0xf]
  %v4437 = vld [vmem:[%s3 + $0x100] sm:$0xf]
  %v4438 = vld [vmem:[%s3 + $0x104] sm:$0xf]
  %v4439 = vld [vmem:[%s3 + $0x108] sm:$0xf]
  %v4440 = vld [vmem:[%s3 + $0x10c] sm:$0xf]
  %v4441 = vld [vmem:[%s3 + $0x110] sm:$0xf]
  %v4442 = vld [vmem:[%s3 + $0x114] sm:$0xf]
  %v4443 = vld [vmem:[%s3 + $0x118] sm:$0xf]
  %v4444 = vld [vmem:[%s3 + $0x11c] sm:$0xf]
  %v4445 = vld [vmem:[%s3 + $0x120] sm:$0xf]
  %v4446 = vld [vmem:[%s3 + $0x124] sm:$0xf]
  %v4447 = vld [vmem:[%s3 + $0x128] sm:$0xf]
  %v4448 = vld [vmem:[%s3 + $0x12c] sm:$0xf]
  %v4449 = vld [vmem:[%s3 + $0x130] sm:$0xf]
  %v4450 = vld [vmem:[%s3 + $0x134] sm:$0xf]
  %v4451 = vld [vmem:[%s3 + $0x138] sm:$0xf]
  %v4452 = vld [vmem:[%s3 + $0x13c] sm:$0xf]
  %v4453 = vld [vmem:[%s3 + $0x140] sm:$0xf]
  %v4454 = vld [vmem:[%s3 + $0x144] sm:$0xf]
  %v4455 = vld [vmem:[%s3 + $0x148] sm:$0xf]
  %v4456 = vld [vmem:[%s3 + $0x14c] sm:$0xf]
  %v4457 = vld [vmem:[%s3 + $0x150] sm:$0xf]
  %v4458 = vld [vmem:[%s3 + $0x154] sm:$0xf]
  %v4459 = vld [vmem:[%s3 + $0x158] sm:$0xf]
  %v4460 = vld [vmem:[%s3 + $0x15c] sm:$0xf]
  %v4461 = vld [vmem:[%s3 + $0x160] sm:$0xf]
  %v4462 = vld [vmem:[%s3 + $0x164] sm:$0xf]
  %v4463 = vld [vmem:[%s3 + $0x168] sm:$0xf]
  %v4464 = vld [vmem:[%s3 + $0x16c] sm:$0xf]
  %v4465 = vld [vmem:[%s3 + $0x170] sm:$0xf]
  %v4466 = vld [vmem:[%s3 + $0x174] sm:$0xf]
  %v4467 = vld [vmem:[%s3 + $0x178] sm:$0xf]
  %v4468 = vld [vmem:[%s3 + $0x17c] sm:$0xf]
  %v4469 = vld [vmem:[%s4] sm:$0x1]
  %v4471 = vlaneseq
  %v4472 = vshrl.u32 %v4471, 7
  %v4473 = vsub.s32 0, %v4472
  %v4474 = vrot.slane %v4469, %v4473
  %v4572 = vunpack.c.l.b16 %v4373
  %v4573 = vunpack.c.l.b16 %v4374
  %v4574 = vunpack.c.l.b16 %v4375
  %v4575 = vunpack.c.l.b16 %v4376
  %v4576 = vunpack.c.l.b16 %v4377
  %v4577 = vunpack.c.l.b16 %v4378
  %v4578 = vunpack.c.l.b16 %v4379
  %v4579 = vunpack.c.l.b16 %v4380
  %v4580 = vunpack.c.l.b16 %v4381
  %v4581 = vunpack.c.l.b16 %v4382
  %v4582 = vunpack.c.l.b16 %v4383
  %v4583 = vunpack.c.l.b16 %v4384
  %v4584 = vunpack.c.l.b16 %v4385
  %v4585 = vunpack.c.l.b16 %v4386
  %v4586 = vunpack.c.l.b16 %v4387
  %v4587 = vunpack.c.l.b16 %v4388
  %v4588 = vunpack.c.l.b16 %v4389
  %v4589 = vunpack.c.l.b16 %v4390
  %v4590 = vunpack.c.l.b16 %v4391
  %v4591 = vunpack.c.l.b16 %v4392
  %v4592 = vunpack.c.l.b16 %v4393
  %v4593 = vunpack.c.l.b16 %v4394
  %v4594 = vunpack.c.l.b16 %v4395
  %v4595 = vunpack.c.l.b16 %v4396
  %v4596 = vunpack.c.l.b16 %v4397
  %v4597 = vunpack.c.l.b16 %v4398
  %v4598 = vunpack.c.l.b16 %v4399
  %v4599 = vunpack.c.l.b16 %v4400
  %v4600 = vunpack.c.l.b16 %v4401
  %v4601 = vunpack.c.l.b16 %v4402
  %v4602 = vunpack.c.l.b16 %v4403
  %v4603 = vunpack.c.l.b16 %v4404
  %v4604 = vunpack.c.l.b16 %v4405
  %v4605 = vunpack.c.l.b16 %v4406
  %v4606 = vunpack.c.l.b16 %v4407
  %v4607 = vunpack.c.l.b16 %v4408
  %v4608 = vunpack.c.l.b16 %v4409
  %v4609 = vunpack.c.l.b16 %v4410
  %v4610 = vunpack.c.l.b16 %v4411
  %v4611 = vunpack.c.l.b16 %v4412
  %v4612 = vunpack.c.l.b16 %v4413
  %v4613 = vunpack.c.l.b16 %v4414
  %v4614 = vunpack.c.l.b16 %v4415
  %v4615 = vunpack.c.l.b16 %v4416
  %v4616 = vunpack.c.l.b16 %v4417
  %v4617 = vunpack.c.l.b16 %v4418
  %v4618 = vunpack.c.l.b16 %v4419
  %v4619 = vunpack.c.l.b16 %v4420
  %v4620 = vunpack.c.l.b16 %v4421
  %v4621 = vunpack.c.l.b16 %v4422
  %v4622 = vunpack.c.l.b16 %v4423
  %v4623 = vunpack.c.l.b16 %v4424
  %v4624 = vunpack.c.l.b16 %v4425
  %v4625 = vunpack.c.l.b16 %v4426
  %v4626 = vunpack.c.l.b16 %v4427
  %v4627 = vunpack.c.l.b16 %v4428
  %v4628 = vunpack.c.l.b16 %v4429
  %v4629 = vunpack.c.l.b16 %v4430
  %v4630 = vunpack.c.l.b16 %v4431
  %v4631 = vunpack.c.l.b16 %v4432
  %v4632 = vunpack.c.l.b16 %v4433
  %v4633 = vunpack.c.l.b16 %v4434
  %v4634 = vunpack.c.l.b16 %v4435
  %v4635 = vunpack.c.l.b16 %v4436
  %v4636 = vunpack.c.l.b16 %v4437
  %v4637 = vunpack.c.l.b16 %v4438
  %v4638 = vunpack.c.l.b16 %v4439
  %v4639 = vunpack.c.l.b16 %v4440
  %v4640 = vunpack.c.l.b16 %v4441
  %v4641 = vunpack.c.l.b16 %v4442
  %v4642 = vunpack.c.l.b16 %v4443
  %v4643 = vunpack.c.l.b16 %v4444
  %v4644 = vunpack.c.l.b16 %v4445
  %v4645 = vunpack.c.l.b16 %v4446
  %v4646 = vunpack.c.l.b16 %v4447
  %v4647 = vunpack.c.l.b16 %v4448
  %v4648 = vunpack.c.l.b16 %v4449
  %v4649 = vunpack.c.l.b16 %v4450
  %v4650 = vunpack.c.l.b16 %v4451
  %v4651 = vunpack.c.l.b16 %v4452
  %v4652 = vunpack.c.l.b16 %v4453
  %v4653 = vunpack.c.l.b16 %v4454
  %v4654 = vunpack.c.l.b16 %v4455
  %v4655 = vunpack.c.l.b16 %v4456
  %v4656 = vunpack.c.l.b16 %v4457
  %v4657 = vunpack.c.l.b16 %v4458
  %v4658 = vunpack.c.l.b16 %v4459
  %v4659 = vunpack.c.l.b16 %v4460
  %v4660 = vunpack.c.l.b16 %v4461
  %v4661 = vunpack.c.l.b16 %v4462
  %v4662 = vunpack.c.l.b16 %v4463
  %v4663 = vunpack.c.l.b16 %v4464
  %v4664 = vunpack.c.l.b16 %v4465
  %v4665 = vunpack.c.l.b16 %v4466
  %v4666 = vunpack.c.l.b16 %v4467
  %v4667 = vunpack.c.l.b16 %v4468
  %v4668 = vpack.c.b16 %v4573, %v4572
  %v4669 = vpack.c.b16 %v4575, %v4574
  %v4670 = vpack.c.b16 %v4577, %v4576
  %v4671 = vpack.c.b16 %v4579, %v4578
  %v4672 = vpack.c.b16 %v4581, %v4580
  %v4673 = vpack.c.b16 %v4583, %v4582
  %v4674 = vpack.c.b16 %v4585, %v4584
  %v4675 = vpack.c.b16 %v4587, %v4586
  %v4676 = vpack.c.b16 %v4589, %v4588
  %v4677 = vpack.c.b16 %v4591, %v4590
  %v4678 = vpack.c.b16 %v4593, %v4592
  %v4679 = vpack.c.b16 %v4595, %v4594
  %v4680 = vpack.c.b16 %v4597, %v4596
  %v4681 = vpack.c.b16 %v4599, %v4598
  %v4682 = vpack.c.b16 %v4601, %v4600
  %v4683 = vpack.c.b16 %v4603, %v4602
  %v4684 = vpack.c.b16 %v4605, %v4604
  %v4685 = vpack.c.b16 %v4607, %v4606
  %v4686 = vpack.c.b16 %v4609, %v4608
  %v4687 = vpack.c.b16 %v4611, %v4610
  %v4688 = vpack.c.b16 %v4613, %v4612
  %v4689 = vpack.c.b16 %v4615, %v4614
  %v4690 = vpack.c.b16 %v4617, %v4616
  %v4691 = vpack.c.b16 %v4619, %v4618
  %v4692 = vpack.c.b16 %v4621, %v4620
  %v4693 = vpack.c.b16 %v4623, %v4622
  %v4694 = vpack.c.b16 %v4625, %v4624
  %v4695 = vpack.c.b16 %v4627, %v4626
  %v4696 = vpack.c.b16 %v4629, %v4628
  %v4697 = vpack.c.b16 %v4631, %v4630
  %v4698 = vpack.c.b16 %v4633, %v4632
  %v4699 = vpack.c.b16 %v4635, %v4634
  %v4700 = vpack.c.b16 %v4637, %v4636
  %v4701 = vpack.c.b16 %v4639, %v4638
  %v4702 = vpack.c.b16 %v4641, %v4640
  %v4703 = vpack.c.b16 %v4643, %v4642
  %v4704 = vpack.c.b16 %v4645, %v4644
  %v4705 = vpack.c.b16 %v4647, %v4646
  %v4706 = vpack.c.b16 %v4649, %v4648
  %v4707 = vpack.c.b16 %v4651, %v4650
  %v4708 = vpack.c.b16 %v4653, %v4652
  %v4709 = vpack.c.b16 %v4655, %v4654
  %v4710 = vpack.c.b16 %v4657, %v4656
  %v4711 = vpack.c.b16 %v4659, %v4658
  %v4712 = vpack.c.b16 %v4661, %v4660
  %v4713 = vpack.c.b16 %v4663, %v4662
  %v4714 = vpack.c.b16 %v4665, %v4664
  %v4715 = vpack.c.b16 %v4667, %v4666
  %4764 = vmatprep.subr.bf16.mxu0 0
  %4765 = vmatpush1.bf16.msra.mxu0 %v4668
  %4766 = vmatprep.subr.bf16.mxu0 0
  %4767 = vmatpush1.bf16.msra.mxu0 %v4669
  %4768 = vmatprep.subr.bf16.mxu0 0
  %4769 = vmatpush1.bf16.msra.mxu0 %v4670
  %4770 = vmatprep.subr.bf16.mxu0 0
  %4771 = vmatpush1.bf16.msra.mxu0 %v4671
  %4772 = vmatprep.subr.bf16.mxu0 0
  %4773 = vmatpush1.bf16.msra.mxu0 %v4672
  %4774 = vmatprep.subr.bf16.mxu0 0
  %4775 = vmatpush1.bf16.msra.mxu0 %v4673
  %4776 = vmatprep.subr.bf16.mxu0 0
  %4777 = vmatpush1.bf16.msra.mxu0 %v4674
  %4778 = vmatprep.subr.bf16.mxu0 0
  %4779 = vmatpush1.bf16.msra.mxu0 %v4675
  %4780 = vmatprep.subr.bf16.mxu0 0
  %4781 = vmatpush1.bf16.msra.mxu0 %v4676
  %4782 = vmatprep.subr.bf16.mxu0 0
  %4783 = vmatpush1.bf16.msra.mxu0 %v4677
  %4784 = vmatprep.subr.bf16.mxu0 0
  %4785 = vmatpush1.bf16.msra.mxu0 %v4678
  %4786 = vmatprep.subr.bf16.mxu0 0
  %4787 = vmatpush1.bf16.msra.mxu0 %v4679
  %4788 = vmatprep.subr.bf16.mxu0 0
  %4789 = vmatpush1.bf16.msra.mxu0 %v4680
  %4790 = vmatprep.subr.bf16.mxu0 0
  %4791 = vmatpush1.bf16.msra.mxu0 %v4681
  %4792 = vmatprep.subr.bf16.mxu0 0
  %4793 = vmatpush1.bf16.msra.mxu0 %v4682
  %4794 = vmatprep.subr.bf16.mxu0 0
  %4795 = vmatpush1.bf16.msra.mxu0 %v4683
  %4796 = vmatprep.mubr.bf16.mxu0 %v4368
  %4797 = vmatmul.mubr.bf16.gmra.mrb[0].mxu0 %v4367
  %v4798 = vpop.f32.mrb[0].mxu0
  %v4799 = vadd.f32 %v4474, %v4798
  %v4800 = vpop.f32.mrb[0].mxu0
  %v4801 = vpop.f32.mrb[0].mxu0
  %v4802 = vadd.f32 %v4474, %v4801
  %v4803 = vpop.f32.mrb[0].mxu0
  %4804 = vdwg.mxu0
  %4805 = vmatprep.subr.bf16.mxu0 0
  %4806 = vmatpush1.bf16.msra.mxu0 %v4684
  %4807 = vmatprep.subr.bf16.mxu0 0
  %4808 = vmatpush1.bf16.msra.mxu0 %v4685
  %4809 = vmatprep.subr.bf16.mxu0 0
  %4810 = vmatpush1.bf16.msra.mxu0 %v4686
  %4811 = vmatprep.subr.bf16.mxu0 0
  %4812 = vmatpush1.bf16.msra.mxu0 %v4687
  %4813 = vmatprep.subr.bf16.mxu0 0
  %4814 = vmatpush1.bf16.msra.mxu0 %v4688
  %4815 = vmatprep.subr.bf16.mxu0 0
  %4816 = vmatpush1.bf16.msra.mxu0 %v4689
  %4817 = vmatprep.subr.bf16.mxu0 0
  %4818 = vmatpush1.bf16.msra.mxu0 %v4690
  %4819 = vmatprep.subr.bf16.mxu0 0
  %4820 = vmatpush1.bf16.msra.mxu0 %v4691
  %4821 = vmatprep.subr.bf16.mxu0 0
  %4822 = vmatpush1.bf16.msra.mxu0 %v4692
  %4823 = vmatprep.subr.bf16.mxu0 0
  %4824 = vmatpush1.bf16.msra.mxu0 %v4693
  %4825 = vmatprep.subr.bf16.mxu0 0
  %4826 = vmatpush1.bf16.msra.mxu0 %v4694
  %4827 = vmatprep.subr.bf16.mxu0 0
  %4828 = vmatpush1.bf16.msra.mxu0 %v4695
  %4829 = vmatprep.subr.bf16.mxu0 0
  %4830 = vmatpush1.bf16.msra.mxu0 %v4696
  %4831 = vmatprep.subr.bf16.mxu0 0
  %4832 = vmatpush1.bf16.msra.mxu0 %v4697
  %4833 = vmatprep.subr.bf16.mxu0 0
  %4834 = vmatpush1.bf16.msra.mxu0 %v4698
  %4835 = vmatprep.subr.bf16.mxu0 0
  %4836 = vmatpush1.bf16.msra.mxu0 %v4699
  %4837 = vmatprep.mubr.bf16.mxu0 %v4370
  %4838 = vmatmul.mubr.bf16.gmra.mrb[0].mxu0 %v4369
  %v4839 = vpop.f32.mrb[0].mxu0
  %v4840 = vadd.f32 %v4799, %v4839
  %v4841 = vpop.f32.mrb[0].mxu0
  %v4842 = vpop.f32.mrb[0].mxu0
  %v4843 = vadd.f32 %v4802, %v4842
  %v4844 = vpop.f32.mrb[0].mxu0
  %4845 = vdwg.mxu0
  %4846 = vmatprep.subr.bf16.mxu0 0
  %4847 = vmatpush1.bf16.msra.mxu0 %v4700
  %4848 = vmatprep.subr.bf16.mxu0 0
  %4849 = vmatpush1.bf16.msra.mxu0 %v4701
  %4850 = vmatprep.subr.bf16.mxu0 0
  %4851 = vmatpush1.bf16.msra.mxu0 %v4702
  %4852 = vmatprep.subr.bf16.mxu0 0
  %4853 = vmatpush1.bf16.msra.mxu0 %v4703
  %4854 = vmatprep.subr.bf16.mxu0 0
  %4855 = vmatpush1.bf16.msra.mxu0 %v4704
  %4856 = vmatprep.subr.bf16.mxu0 0
  %4857 = vmatpush1.bf16.msra.mxu0 %v4705
  %4858 = vmatprep.subr.bf16.mxu0 0
  %4859 = vmatpush1.bf16.msra.mxu0 %v4706
  %4860 = vmatprep.subr.bf16.mxu0 0
  %4861 = vmatpush1.bf16.msra.mxu0 %v4707
  %4862 = vmatprep.subr.bf16.mxu0 0
  %4863 = vmatpush1.bf16.msra.mxu0 %v4708
  %4864 = vmatprep.subr.bf16.mxu0 0
  %4865 = vmatpush1.bf16.msra.mxu0 %v4709
  %4866 = vmatprep.subr.bf16.mxu0 0
  %4867 = vmatpush1.bf16.msra.mxu0 %v4710
  %4868 = vmatprep.subr.bf16.mxu0 0
  %4869 = vmatpush1.bf16.msra.mxu0 %v4711
  %4870 = vmatprep.subr.bf16.mxu0 0
  %4871 = vmatpush1.bf16.msra.mxu0 %v4712
  %4872 = vmatprep.subr.bf16.mxu0 0
  %4873 = vmatpush1.bf16.msra.mxu0 %v4713
  %4874 = vmatprep.subr.bf16.mxu0 0
  %4875 = vmatpush1.bf16.msra.mxu0 %v4714
  %4876 = vmatprep.subr.bf16.mxu0 0
  %4877 = vmatpush1.bf16.msra.mxu0 %v4715
  %4878 = vmatprep.mubr.bf16.mxu0 %v4372
  %4879 = vmatmul.mubr.bf16.gmra.mrb[0].mxu0 %v4371
  %v4880 = vpop.f32.mrb[0].mxu0
  %v4881 = vadd.f32 %v4840, %v4880
  %v4882 = vpop.f32.mrb[0].mxu0
  %v4883 = vpop.f32.mrb[0].mxu0
  %v4884 = vadd.f32 %v4843, %v4883
  %v4885 = vpop.f32.mrb[0].mxu0
  %4886 = vdwg.mxu0
  %4887 = vmax.xlane.f32.xlu0 %v4881
  %v4888 = vpop.xlane.xlu0 %4887
  %4889 = vmax.xlane.f32.xlu0 %v4884
  %v4890 = vpop.xlane.xlu0 %4889
  %v4891 = vsub.f32 %v4881, %v4888
  %v4892 = vsub.f32 %v4884, %v4890
  %v4893 = vmul.f32 %v4891, 1.442695
  %v4894 = vpow.pop %v4893
  %v4895 = vmul.f32 %v4892, 1.442695
  %v4896 = vpow.pop %v4895
  %4897 = vadd.xlane.f32.xlu0 %v4894
  %v4898 = vpop.xlane.xlu0 %4897
  %4899 = vadd.xlane.f32.xlu0 %v4896
  %v4900 = vpop.xlane.xlu0 %4899
  %v4901 = vrcp.pop %v4898
  %v4902 = vrcp.pop %v4900
  %v4903 = vmul.f32 %v4894, %v4901
  %v4904 = vmul.f32 %v4896, %v4902
  %4905 = vst [vmem:[%s5] sm:$0xff] %v4903
  %4906 = vst [vmem:[%s5 + $0x8] sm:$0xff] %v4904
  // Predicated region
  $region22: #{_device_forward.1} parent=0 // pred_check
    _
  $region23: #{_device_forward.1} parent=0 // pred_check_branch
    %4908 = sbr.rel (0) target = $region25
  $region24: #{_device_forward.1} parent=0 // pred_region
    _
  $region25: #{_device_forward.1} parent=0 // pred_fallthru
    _
  // Predicated region
  $region26: #{_device_forward.1} parent=0 // pred_check
    _
  $region27: #{_device_forward.1} parent=0 // pred_check_branch
    %4910 = sbr.rel (0) target = $region29
  $region28: #{_device_forward.1} parent=0 // pred_region
    _
  $region29: #{_device_forward.1} parent=0 // pred_fallthru
    _

</llo_original>
